<compile_context>
chip_gen: v5e
topology: v5e:2x2
jax: 0.10.0
libtpu: 0.0.40
codegen_flags: <defaults>
</compile_context>

<pallas_src>
import jax
import jax.numpy as jnp
from jax import lax
from jax.experimental import pallas as pl
from jax.experimental.pallas import tpu as pltpu  # noqa: F401  (kept for parity / future grid)

# ---------------------------------------------------------------------------
# Model / problem sizes (small, consistent with the module's forward)
# ---------------------------------------------------------------------------
ELEM_EMB_LEN = 24    # raw atom embedding length
NBR_FEA_LEN = 16     # bond feature length (B)
ELEM_FEA_LEN = 32    # hidden atom feature length (F)
N_GRAPH = 4          # number of CGCNNConv layers
N_CRYSTALS = 2       # crystals batched into one kernel call
N_ATOMS_PER = 16     # atoms per crystal
N_ATOMS = N_CRYSTALS * N_ATOMS_PER   # 32 atoms total
M_NBRS = 4           # neighbors per atom
N_EDGES = N_ATOMS * M_NBRS           # 128 flattened edges
BN_EPS = 1e-5


def _softplus(x):
    # PyTorch nn.Softplus(beta=1, threshold=20)
    return jnp.where(x > 20.0, x, jnp.log1p(jnp.exp(jnp.minimum(x, 20.0))))


# ---------------------------------------------------------------------------
# Fused Pallas kernel: embedding + N_GRAPH CGCNNConv layers
# ---------------------------------------------------------------------------
def _fused_descriptor_kernel(
    idx_ref,       # (E, 2) int32   packed [self_idx | nbr_idx] columns (gather one-hot)
    sidx_row_ref,  # (1, E) int32   self_idx as a row (scatter one-hot) -- kept explicit:
                   #                the alternative is an in-kernel sublane->lane relayout;
                   #                at this size it's a wash and the input is guaranteed to lower.
    atom_ref,      # (N, elem_emb_len) f32  raw atom features
    bond_ref,      # (E, B) f32     bond features (layer-invariant)
    emb_w_ref,     # (elem_emb_len, F) f32
    emb_b_ref,     # (1, F) f32
    wcat_ref,      # (L, F, 4F) bf16   [W_self | W_nbr] rows of fc_full, BN1-folded
    wb_ref,        # (B, L*2F) bf16    bond rows of fc_full for ALL layers, BN1-folded
    b1_ref,        # (1, L*2F) f32     fc_full bias folded with BN1 shift, ALL layers
    s2_ref,        # (L, 1, F) f32     BN2 scale
    t2_ref,        # (L, 1, F) f32     BN2 shift
    out_ref,       # (N, F) f32
):
    n = atom_ref.shape[0]
    e = bond_ref.shape[0]
    f = emb_w_ref.shape[1]
    f2 = 2 * f
    n_layers = wcat_ref.shape[0]

    # ---- One-hot gather/scatter matrices, built once (VPU compares; exact in bf16).
    sidx_col = idx_ref[:, 0:1]                                  # (E, 1)
    nidx_col = idx_ref[:, 1:2]                                  # (E, 1)
    iota_e2n = lax.broadcasted_iota(jnp.int32, (e, 2 * n), 1)
    # Fused gather one-hot: cols 0..N-1 pick the self projection, cols N..2N-1
    # pick the neighbor projection (sidx < N and nidx + N >= N, so no overlap).
    g_cat = jnp.logical_or(iota_e2n == sidx_col, iota_e2n == nidx_col + n)
    g_cat = g_cat.astype(jnp.float32).astype(jnp.bfloat16)      # (E, 2N)  bf16-exact
    iota_ne = lax.broadcasted_iota(jnp.int32, (n, e), 0)
    gst = (iota_ne == sidx_row_ref[...]).astype(jnp.float32).astype(jnp.bfloat16)  # (N, E)

    # ---- Bond projection for ALL layers (+ folded BN1 bias), hoisted off the
    # serial x-recurrence: one lane-dense (E,B)@(B,L*2F) matmul before the loop.
    bond_bf16 = bond_ref[...].astype(jnp.bfloat16)
    bond_proj = (
        jnp.dot(bond_bf16, wb_ref[...], preferred_element_type=jnp.float32)
        + b1_ref[...]
    )                                                           # (E, L*2F) f32

    # ---- Embedding: x = atom_fea @ W_emb + b_emb (one-time, kept f32)
    x = (
        jnp.dot(atom_ref[...], emb_w_ref[...], preferred_element_type=jnp.float32)
        + emb_b_ref[...]
    )                                                           # (N, F) f32

    # ---- Unrolled layer loop; x carried in registers/VMEM, never hits HBM.
    for layer in range(n_layers):
        # One 128-lane-wide projection covering BOTH self and neighbor halves.
        p = jnp.dot(x.astype(jnp.bfloat16), wcat_ref[layer],
                    preferred_element_type=jnp.float32)         # (N, 4F) f32
        # Sublane-concat self-half over nbr-half -> (2N, 2F) operand for the
        # fused gather (plain vst/vld, no XLU work).
        p_stack = jnp.concatenate([p[:, :f2], p[:, f2:]], axis=0).astype(jnp.bfloat16)

        # z == BN1(fc_full(cat([self, nbr, bond], dim=1)))       (E, 2F)
        z = (
            jnp.dot(g_cat, p_stack, preferred_element_type=jnp.float32)
            + bond_proj[:, layer * f2:(layer + 1) * f2]
        )

        # Sigmoid gate: EUP exp + approx EUP reciprocal (no VPU Newton divide).
        filter_fea = pl.reciprocal(1.0 + jnp.exp(-z[:, :f]), approx=True)
        core_fea = _softplus(z[:, f:])
        nbr_msg = (filter_fea * core_fea).astype(jnp.bfloat16)  # (E, F)

        # scatter_reduce(sum) over self_idx == gst @ msg, then BN2 + residual.
        summed = jnp.dot(gst, nbr_msg, preferred_element_type=jnp.float32)  # (N, F)
        summed = summed * s2_ref[layer] + t2_ref[layer]
        x = _softplus(x + summed)

    out_ref[...] = x.astype(out_ref.dtype)


# ---------------------------------------------------------------------------
# Host-side parameter preparation (run ONCE at model-load time, per review):
# fold BN1 into fc_full, concat/stack per-layer weights into MXU-friendly slabs.
# ---------------------------------------------------------------------------
def prepare_params(params):
    f = ELEM_FEA_LEN
    wcat, wb_cols, b1_cols, s2, t2 = [], [], [], [], []
    for layer in params["convs"]:
        s1 = layer["bn1_g"] / jnp.sqrt(layer["bn1_var"] + BN_EPS)   # (2F,)
        t1 = layer["bn1_b"] - layer["bn1_mean"] * s1                # (2F,)
        w_fold = layer["w_full"] * s1[None, :]     # fold BN1 scale into weights
        b_fold = layer["b_full"] * s1 + t1         # fold BN1 shift into bias
        # [W_self | W_nbr] -> one (F, 4F) lane-dense slab per layer
        wcat.append(jnp.concatenate([w_fold[:f], w_fold[f:2 * f]], axis=1))
        wb_cols.append(w_fold[2 * f:])             # (B, 2F) bond rows
        b1_cols.append(b_fold)                     # (2F,)
        s2l = layer["bn2_g"] / jnp.sqrt(layer["bn2_var"] + BN_EPS)
        t2l = layer["bn2_b"] - layer["bn2_mean"] * s2l
        s2.append(s2l.reshape(1, f))
        t2.append(t2l.reshape(1, f))

    return {
        "emb_w": params["emb_w"].astype(jnp.float32),               # (emb, F)
        "emb_b": params["emb_b"].reshape(1, f).astype(jnp.float32), # (1, F)
        "wcat": jnp.stack(wcat).astype(jnp.bfloat16),               # (L, F, 4F)
        "wb": jnp.concatenate(wb_cols, axis=1).astype(jnp.bfloat16),  # (B, L*2F)
        "b1": jnp.concatenate(b1_cols).reshape(1, -1).astype(jnp.float32),  # (1, L*2F)
        "s2": jnp.stack(s2).astype(jnp.float32),                    # (L, 1, F)
        "t2": jnp.stack(t2).astype(jnp.float32),                    # (L, 1, F)
    }


# ---------------------------------------------------------------------------
# Forward wrapper: one fused pallas_call, jitted so index packing etc. is cached.
# ---------------------------------------------------------------------------
def _descriptor_network_impl(atom_fea, nbr_fea, self_idx, nbr_idx, prep):
    n_atoms = atom_fea.shape[0]
    f = prep["emb_w"].shape[1]
    sidx = self_idx.astype(jnp.int32)
    nidx = nbr_idx.astype(jnp.int32)
    idx_cols = jnp.stack([sidx, nidx], axis=1)   # (E, 2) packed gather columns
    sidx_row = sidx.reshape(1, -1)               # (1, E) scatter row

    # No grid: the whole problem (weights + edge list + NxF atom state) fits
    # trivially in VMEM on v5e/v6e/v7x, so a single invocation avoids all
    # per-step pipeline overhead.
    # TODO(synk): for production-scale inputs add a "parallel" crystal grid
    # axis (v7x: two TensorCores, but only 64 MiB VMEM -> use ~half the
    # v5e/v6e tile and set pltpu.CompilerParams(vmem_limit_bytes=...) explicitly).
    return pl.pallas_call(
        _fused_descriptor_kernel,
        out_shape=jax.ShapeDtypeStruct((n_atoms, f), jnp.float32),
    )(
        idx_cols, sidx_row,
        atom_fea.astype(jnp.float32), nbr_fea.astype(jnp.float32),
        prep["emb_w"], prep["emb_b"],
        prep["wcat"], prep["wb"], prep["b1"], prep["s2"], prep["t2"],
    )


descriptor_network = jax.jit(_descriptor_network_impl)


# ---------------------------------------------------------------------------
# Pure-JAX reference (mirrors the PyTorch forward, inference-mode BN, f32)
# ---------------------------------------------------------------------------
def descriptor_network_ref(atom_fea, nbr_fea, self_idx, nbr_idx, params):
    f = ELEM_FEA_LEN
    n_atoms = atom_fea.shape[0]
    x = atom_fea @ params["emb_w"] + params["emb_b"]
    for layer in params["convs"]:
        atom_nbr = x[nbr_idx, :]
        atom_self = x[self_idx, :]
        total = jnp.concatenate([atom_self, atom_nbr, nbr_fea], axis=1)
        z = total @ layer["w_full"] + layer["b_full"]
        z = (z - layer["bn1_mean"]) / jnp.sqrt(layer["bn1_var"] + BN_EPS) \
            * layer["bn1_g"] + layer["bn1_b"]
        filt = jax.nn.sigmoid(z[:, :f])
        core = _softplus(z[:, f:])
        msg = filt * core
        summed = jax.ops.segment_sum(msg, self_idx, num_segments=n_atoms)
        summed = (summed - layer["bn2_mean"]) / jnp.sqrt(layer["bn2_var"] + BN_EPS) \
            * layer["bn2_g"] + layer["bn2_b"]
        x = _softplus(x + summed)
    return x


# ---------------------------------------------------------------------------
# Deterministic parameter init
# ---------------------------------------------------------------------------
def init_params(key):
    f, b2 = ELEM_FEA_LEN, NBR_FEA_LEN
    keys = jax.random.split(key, 2 + N_GRAPH)
    params = {
        "emb_w": 0.1 * jax.random.normal(keys[0], (ELEM_EMB_LEN, f), jnp.float32),
        "emb_b": 0.1 * jax.random.normal(keys[1], (f,), jnp.float32),
        "convs": [],
    }
    for i in range(N_GRAPH):
        k = jax.random.split(keys[2 + i], 10)
        params["convs"].append({
            "w_full": 0.1 * jax.random.normal(k[0], (2 * f + b2, 2 * f), jnp.float32),
            "b_full": 0.1 * jax.random.normal(k[1], (2 * f,), jnp.float32),
            "bn1_g": 1.0 + 0.1 * jax.random.normal(k[2], (2 * f,), jnp.float32),
            "bn1_b": 0.1 * jax.random.normal(k[3], (2 * f,), jnp.float32),
            "bn1_mean": 0.1 * jax.random.normal(k[4], (2 * f,), jnp.float32),
            "bn1_var": 1.0 + 0.1 * jax.random.uniform(k[5], (2 * f,), jnp.float32),
            "bn2_g": 1.0 + 0.1 * jax.random.normal(k[6], (f,), jnp.float32),
            "bn2_b": 0.1 * jax.random.normal(k[7], (f,), jnp.float32),
            "bn2_mean": 0.1 * jax.random.normal(k[8], (f,), jnp.float32),
            "bn2_var": 1.0 + 0.1 * jax.random.uniform(k[9], (f,), jnp.float32),
        })
    return params


# ---------------------------------------------------------------------------
if __name__ == "__main__":
    key = jax.random.PRNGKey(0)
    k_param, k_atom, k_bond, k_nbr = jax.random.split(key, 4)

    params = init_params(k_param)
    prep = prepare_params(params)    # BN folding done ONCE at model-load time

    atom_fea = jax.random.normal(k_atom, (N_ATOMS, ELEM_EMB_LEN), jnp.float32)
    nbr_fea = jax.random.normal(k_bond, (N_EDGES, NBR_FEA_LEN), jnp.float32)
    # Two crystals batched into one kernel call: global atom indices make the
    # one-hot scatter block-diagonal automatically (perf review: batching lever).
    self_idx = jnp.repeat(jnp.arange(N_ATOMS, dtype=jnp.int32), M_NBRS)
    crystal_base = (self_idx // N_ATOMS_PER) * N_ATOMS_PER
    nbr_local = jax.random.randint(k_nbr, (N_EDGES,), 0, N_ATOMS_PER, jnp.int32)
    nbr_idx = crystal_base + nbr_local

    out = descriptor_network(atom_fea, nbr_fea, self_idx, nbr_idx, prep)
    out = jax.block_until_ready(out)

    ref = descriptor_network_ref(atom_fea, nbr_fea, self_idx, nbr_idx, params)
    ref = jax.block_until_ready(ref)

    assert out.shape == (N_ATOMS, ELEM_FEA_LEN), out.shape
    assert out.dtype == jnp.float32, out.dtype
    # bf16 MXU operands (adopted per the perf review) consume tolerance beyond
    # the pure-f32 path; 2e-2 rtol/atol covers 4 layers of bf16 rounding while
    # still catching any structural / indexing error.
    max_abs = float(jnp.max(jnp.abs(out - ref)))
    max_rel = float(jnp.max(jnp.abs(out - ref) / (jnp.abs(ref) + 1e-3)))
    assert jnp.allclose(out, ref, rtol=2e-2, atol=2e-2), (max_abs, max_rel)

    print("KERNEL_OK")
</pallas_src>

<mosaic_0001>
module attributes {stable_mosaic.version = 11 : i64} {
  func.func @_fused_descriptor_kernel(%arg0: memref<128x2xi32, #tpu.memory_space<vmem>>, %arg1: memref<1x128xi32, #tpu.memory_space<vmem>>, %arg2: memref<32x24xf32, #tpu.memory_space<vmem>>, %arg3: memref<128x16xf32, #tpu.memory_space<vmem>>, %arg4: memref<24x32xf32, #tpu.memory_space<vmem>>, %arg5: memref<1x32xf32, #tpu.memory_space<vmem>>, %arg6: memref<4x32x128xbf16, #tpu.memory_space<vmem>>, %arg7: memref<16x256xbf16, #tpu.memory_space<vmem>>, %arg8: memref<1x256xf32, #tpu.memory_space<vmem>>, %arg9: memref<4x1x32xf32, #tpu.memory_space<vmem>>, %arg10: memref<4x1x32xf32, #tpu.memory_space<vmem>>, %arg11: memref<32x32xf32, #tpu.memory_space<vmem>>) attributes {dimension_semantics = [], scalar_prefetch = 0 : i64, scratch_operands = 0 : i64, tpu.core_type = #tpu.core_type<tc>} {
    %c0 = arith.constant 0 : index
    %c0_0 = arith.constant 0 : index
    %0 = vector.load %arg0[%c0, %c0_0] : memref<128x2xi32, #tpu.memory_space<vmem>>, vector<128x1xi32>
    %c0_1 = arith.constant 0 : index
    %c1 = arith.constant 1 : index
    %1 = vector.load %arg0[%c0_1, %c1] : memref<128x2xi32, #tpu.memory_space<vmem>>, vector<128x1xi32>
    %2 = tpu.iota {dimensions = array<i32: 1>} : vector<128x64xi32>
    %3 = vector.broadcast %0 : vector<128x1xi32> to vector<128x64xi32>
    %4 = arith.cmpi eq, %2, %3 : vector<128x64xi32>
    %c32_i32 = arith.constant 32 : i32
    %5 = vector.broadcast %c32_i32 : i32 to vector<128x1xi32>
    %6 = arith.addi %1, %5 : vector<128x1xi32>
    %7 = vector.broadcast %6 : vector<128x1xi32> to vector<128x64xi32>
    %8 = arith.cmpi eq, %2, %7 : vector<128x64xi32>
    %9 = arith.ori %4, %8 : vector<128x64xi1>
    %10 = arith.extui %9 : vector<128x64xi1> to vector<128x64xi32>
    %11 = arith.sitofp %10 : vector<128x64xi32> to vector<128x64xf32>
    %12 = arith.truncf %11 : vector<128x64xf32> to vector<128x64xbf16>
    %13 = tpu.iota {dimensions = array<i32: 0>} : vector<32x128xi32>
    %c0_2 = arith.constant 0 : index
    %c0_3 = arith.constant 0 : index
    %14 = vector.load %arg1[%c0_2, %c0_3] : memref<1x128xi32, #tpu.memory_space<vmem>>, vector<1x128xi32>
    %15 = vector.broadcast %14 : vector<1x128xi32> to vector<32x128xi32>
    %16 = arith.cmpi eq, %13, %15 : vector<32x128xi32>
    %17 = arith.extui %16 : vector<32x128xi1> to vector<32x128xi32>
    %18 = arith.sitofp %17 : vector<32x128xi32> to vector<32x128xf32>
    %19 = arith.truncf %18 : vector<32x128xf32> to vector<32x128xbf16>
    %c0_4 = arith.constant 0 : index
    %c0_5 = arith.constant 0 : index
    %20 = vector.load %arg3[%c0_4, %c0_5] : memref<128x16xf32, #tpu.memory_space<vmem>>, vector<128x16xf32>
    %21 = arith.truncf %20 : vector<128x16xf32> to vector<128x16xbf16>
    %c0_6 = arith.constant 0 : index
    %c0_7 = arith.constant 0 : index
    %22 = vector.load %arg7[%c0_6, %c0_7] : memref<16x256xbf16, #tpu.memory_space<vmem>>, vector<16x256xbf16>
    %cst = arith.constant dense<0.000000e+00> : vector<128x256xf32>
    %23 = tpu.matmul %21, %22, %cst {dimension_numbers = #tpu.dot_dimension_numbers<[1], [0], [0], [1], [0, 0, 1, 1], [], []>} : vector<128x16xbf16>, vector<16x256xbf16>, vector<128x256xf32> -> vector<128x256xf32>
    %c0_8 = arith.constant 0 : index
    %c0_9 = arith.constant 0 : index
    %24 = vector.load %arg8[%c0_8, %c0_9] : memref<1x256xf32, #tpu.memory_space<vmem>>, vector<1x256xf32>
    %25 = vector.broadcast %24 : vector<1x256xf32> to vector<128x256xf32>
    %26 = arith.addf %23, %25 : vector<128x256xf32>
    %c0_10 = arith.constant 0 : index
    %c0_11 = arith.constant 0 : index
    %27 = vector.load %arg2[%c0_10, %c0_11] : memref<32x24xf32, #tpu.memory_space<vmem>>, vector<32x24xf32>
    %c0_12 = arith.constant 0 : index
    %c0_13 = arith.constant 0 : index
    %28 = vector.load %arg4[%c0_12, %c0_13] : memref<24x32xf32, #tpu.memory_space<vmem>>, vector<24x32xf32>
    %cst_14 = arith.constant dense<0.000000e+00> : vector<32x32xf32>
    %29 = tpu.matmul %27, %28, %cst_14 {dimension_numbers = #tpu.dot_dimension_numbers<[1], [0], [0], [1], [0, 0, 1, 1], [], []>} : vector<32x24xf32>, vector<24x32xf32>, vector<32x32xf32> -> vector<32x32xf32>
    %c0_15 = arith.constant 0 : index
    %c0_16 = arith.constant 0 : index
    %30 = vector.load %arg5[%c0_15, %c0_16] : memref<1x32xf32, #tpu.memory_space<vmem>>, vector<1x32xf32>
    %31 = vector.broadcast %30 : vector<1x32xf32> to vector<32x32xf32>
    %32 = arith.addf %29, %31 : vector<32x32xf32>
    %33 = arith.truncf %32 : vector<32x32xf32> to vector<32x32xbf16>
    %c0_17 = arith.constant 0 : index
    %c0_18 = arith.constant 0 : index
    %c0_19 = arith.constant 0 : index
    %34 = vector.load %arg6[%c0_17, %c0_18, %c0_19] : memref<4x32x128xbf16, #tpu.memory_space<vmem>>, vector<1x32x128xbf16>
    %35 = vector.shape_cast %34 : vector<1x32x128xbf16> to vector<32x128xbf16>
    %cst_20 = arith.constant dense<0.000000e+00> : vector<32x128xf32>
    %36 = tpu.matmul %33, %35, %cst_20 {dimension_numbers = #tpu.dot_dimension_numbers<[1], [0], [0], [1], [0, 0, 1, 1], [], []>} : vector<32x32xbf16>, vector<32x128xbf16>, vector<32x128xf32> -> vector<32x128xf32>
    %37 = vector.extract_strided_slice %36 {offsets = [0, 0], sizes = [32, 64], strides = [1, 1]} : vector<32x128xf32> to vector<32x64xf32>
    %38 = vector.extract_strided_slice %36 {offsets = [0, 64], sizes = [32, 64], strides = [1, 1]} : vector<32x128xf32> to vector<32x64xf32>
    %39 = tpu.concatenate %37, %38 in 0 : vector<32x64xf32>, vector<32x64xf32> -> vector<64x64xf32>
    %40 = arith.truncf %39 : vector<64x64xf32> to vector<64x64xbf16>
    %cst_21 = arith.constant dense<0.000000e+00> : vector<128x64xf32>
    %41 = tpu.matmul %12, %40, %cst_21 {dimension_numbers = #tpu.dot_dimension_numbers<[1], [0], [0], [1], [0, 0, 1, 1], [], []>} : vector<128x64xbf16>, vector<64x64xbf16>, vector<128x64xf32> -> vector<128x64xf32>
    %42 = vector.extract_strided_slice %26 {offsets = [0, 0], sizes = [128, 64], strides = [1, 1]} : vector<128x256xf32> to vector<128x64xf32>
    %43 = arith.addf %41, %42 : vector<128x64xf32>
    %44 = vector.extract_strided_slice %43 {offsets = [0, 0], sizes = [128, 32], strides = [1, 1]} : vector<128x64xf32> to vector<128x32xf32>
    %cst_22 = arith.constant 0.000000e+00 : f32
    %45 = vector.broadcast %cst_22 : f32 to vector<128x32xf32>
    %46 = arith.subf %45, %44 : vector<128x32xf32>
    %47 = math.exp %46 : vector<128x32xf32>
    %cst_23 = arith.constant 1.000000e+00 : f32
    %48 = vector.broadcast %cst_23 : f32 to vector<128x32xf32>
    %49 = arith.addf %48, %47 : vector<128x32xf32>
    %50 = tpu.reciprocal %49 {approx = true} : vector<128x32xf32> -> vector<128x32xf32>
    %51 = vector.extract_strided_slice %43 {offsets = [0, 32], sizes = [128, 32], strides = [1, 1]} : vector<128x64xf32> to vector<128x32xf32>
    %cst_24 = arith.constant 2.000000e+01 : f32
    %52 = vector.broadcast %cst_24 : f32 to vector<128x32xf32>
    %53 = arith.cmpf ogt, %51, %52 : vector<128x32xf32>
    %cst_25 = arith.constant 2.000000e+01 : f32
    %54 = vector.broadcast %cst_25 : f32 to vector<128x32xf32>
    %55 = arith.minimumf %51, %54 : vector<128x32xf32>
    %56 = math.exp %55 : vector<128x32xf32>
    %57 = math.log1p %56 : vector<128x32xf32>
    %58 = arith.select %53, %51, %57 : vector<128x32xi1>, vector<128x32xf32>
    %59 = arith.mulf %50, %58 : vector<128x32xf32>
    %60 = arith.truncf %59 : vector<128x32xf32> to vector<128x32xbf16>
    %cst_26 = arith.constant dense<0.000000e+00> : vector<32x32xf32>
    %61 = tpu.matmul %19, %60, %cst_26 {dimension_numbers = #tpu.dot_dimension_numbers<[1], [0], [0], [1], [0, 0, 1, 1], [], []>} : vector<32x128xbf16>, vector<128x32xbf16>, vector<32x32xf32> -> vector<32x32xf32>
    %c0_27 = arith.constant 0 : index
    %c0_28 = arith.constant 0 : index
    %c0_29 = arith.constant 0 : index
    %62 = vector.load %arg9[%c0_27, %c0_28, %c0_29] : memref<4x1x32xf32, #tpu.memory_space<vmem>>, vector<1x1x32xf32>
    %63 = vector.shape_cast %62 : vector<1x1x32xf32> to vector<1x32xf32>
    %64 = vector.broadcast %63 : vector<1x32xf32> to vector<32x32xf32>
    %65 = arith.mulf %61, %64 : vector<32x32xf32>
    %c0_30 = arith.constant 0 : index
    %c0_31 = arith.constant 0 : index
    %c0_32 = arith.constant 0 : index
    %66 = vector.load %arg10[%c0_30, %c0_31, %c0_32] : memref<4x1x32xf32, #tpu.memory_space<vmem>>, vector<1x1x32xf32>
    %67 = vector.shape_cast %66 : vector<1x1x32xf32> to vector<1x32xf32>
    %68 = vector.broadcast %67 : vector<1x32xf32> to vector<32x32xf32>
    %69 = arith.addf %65, %68 : vector<32x32xf32>
    %70 = arith.addf %32, %69 : vector<32x32xf32>
    %cst_33 = arith.constant 2.000000e+01 : f32
    %71 = vector.broadcast %cst_33 : f32 to vector<32x32xf32>
    %72 = arith.cmpf ogt, %70, %71 : vector<32x32xf32>
    %cst_34 = arith.constant 2.000000e+01 : f32
    %73 = vector.broadcast %cst_34 : f32 to vector<32x32xf32>
    %74 = arith.minimumf %70, %73 : vector<32x32xf32>
    %75 = math.exp %74 : vector<32x32xf32>
    %76 = math.log1p %75 : vector<32x32xf32>
    %77 = arith.select %72, %70, %76 : vector<32x32xi1>, vector<32x32xf32>
    %78 = arith.truncf %77 : vector<32x32xf32> to vector<32x32xbf16>
    %c1_35 = arith.constant 1 : index
    %c0_36 = arith.constant 0 : index
    %c0_37 = arith.constant 0 : index
    %79 = vector.load %arg6[%c1_35, %c0_36, %c0_37] : memref<4x32x128xbf16, #tpu.memory_space<vmem>>, vector<1x32x128xbf16>
    %80 = vector.shape_cast %79 : vector<1x32x128xbf16> to vector<32x128xbf16>
    %cst_38 = arith.constant dense<0.000000e+00> : vector<32x128xf32>
    %81 = tpu.matmul %78, %80, %cst_38 {dimension_numbers = #tpu.dot_dimension_numbers<[1], [0], [0], [1], [0, 0, 1, 1], [], []>} : vector<32x32xbf16>, vector<32x128xbf16>, vector<32x128xf32> -> vector<32x128xf32>
    %82 = vector.extract_strided_slice %81 {offsets = [0, 0], sizes = [32, 64], strides = [1, 1]} : vector<32x128xf32> to vector<32x64xf32>
    %83 = vector.extract_strided_slice %81 {offsets = [0, 64], sizes = [32, 64], strides = [1, 1]} : vector<32x128xf32> to vector<32x64xf32>
    %84 = tpu.concatenate %82, %83 in 0 : vector<32x64xf32>, vector<32x64xf32> -> vector<64x64xf32>
    %85 = arith.truncf %84 : vector<64x64xf32> to vector<64x64xbf16>
    %cst_39 = arith.constant dense<0.000000e+00> : vector<128x64xf32>
    %86 = tpu.matmul %12, %85, %cst_39 {dimension_numbers = #tpu.dot_dimension_numbers<[1], [0], [0], [1], [0, 0, 1, 1], [], []>} : vector<128x64xbf16>, vector<64x64xbf16>, vector<128x64xf32> -> vector<128x64xf32>
    %87 = vector.extract_strided_slice %26 {offsets = [0, 64], sizes = [128, 64], strides = [1, 1]} : vector<128x256xf32> to vector<128x64xf32>
    %88 = arith.addf %86, %87 : vector<128x64xf32>
    %89 = vector.extract_strided_slice %88 {offsets = [0, 0], sizes = [128, 32], strides = [1, 1]} : vector<128x64xf32> to vector<128x32xf32>
    %cst_40 = arith.constant 0.000000e+00 : f32
    %90 = vector.broadcast %cst_40 : f32 to vector<128x32xf32>
    %91 = arith.subf %90, %89 : vector<128x32xf32>
    %92 = math.exp %91 : vector<128x32xf32>
    %cst_41 = arith.constant 1.000000e+00 : f32
    %93 = vector.broadcast %cst_41 : f32 to vector<128x32xf32>
    %94 = arith.addf %93, %92 : vector<128x32xf32>
    %95 = tpu.reciprocal %94 {approx = true} : vector<128x32xf32> -> vector<128x32xf32>
    %96 = vector.extract_strided_slice %88 {offsets = [0, 32], sizes = [128, 32], strides = [1, 1]} : vector<128x64xf32> to vector<128x32xf32>
    %cst_42 = arith.constant 2.000000e+01 : f32
    %97 = vector.broadcast %cst_42 : f32 to vector<128x32xf32>
    %98 = arith.cmpf ogt, %96, %97 : vector<128x32xf32>
    %cst_43 = arith.constant 2.000000e+01 : f32
    %99 = vector.broadcast %cst_43 : f32 to vector<128x32xf32>
    %100 = arith.minimumf %96, %99 : vector<128x32xf32>
    %101 = math.exp %100 : vector<128x32xf32>
    %102 = math.log1p %101 : vector<128x32xf32>
    %103 = arith.select %98, %96, %102 : vector<128x32xi1>, vector<128x32xf32>
    %104 = arith.mulf %95, %103 : vector<128x32xf32>
    %105 = arith.truncf %104 : vector<128x32xf32> to vector<128x32xbf16>
    %cst_44 = arith.constant dense<0.000000e+00> : vector<32x32xf32>
    %106 = tpu.matmul %19, %105, %cst_44 {dimension_numbers = #tpu.dot_dimension_numbers<[1], [0], [0], [1], [0, 0, 1, 1], [], []>} : vector<32x128xbf16>, vector<128x32xbf16>, vector<32x32xf32> -> vector<32x32xf32>
    %c1_45 = arith.constant 1 : index
    %c0_46 = arith.constant 0 : index
    %c0_47 = arith.constant 0 : index
    %107 = vector.load %arg9[%c1_45, %c0_46, %c0_47] : memref<4x1x32xf32, #tpu.memory_space<vmem>>, vector<1x1x32xf32>
    %108 = vector.shape_cast %107 : vector<1x1x32xf32> to vector<1x32xf32>
    %109 = vector.broadcast %108 : vector<1x32xf32> to vector<32x32xf32>
    %110 = arith.mulf %106, %109 : vector<32x32xf32>
    %c1_48 = arith.constant 1 : index
    %c0_49 = arith.constant 0 : index
    %c0_50 = arith.constant 0 : index
    %111 = vector.load %arg10[%c1_48, %c0_49, %c0_50] : memref<4x1x32xf32, #tpu.memory_space<vmem>>, vector<1x1x32xf32>
    %112 = vector.shape_cast %111 : vector<1x1x32xf32> to vector<1x32xf32>
    %113 = vector.broadcast %112 : vector<1x32xf32> to vector<32x32xf32>
    %114 = arith.addf %110, %113 : vector<32x32xf32>
    %115 = arith.addf %77, %114 : vector<32x32xf32>
    %cst_51 = arith.constant 2.000000e+01 : f32
    %116 = vector.broadcast %cst_51 : f32 to vector<32x32xf32>
    %117 = arith.cmpf ogt, %115, %116 : vector<32x32xf32>
    %cst_52 = arith.constant 2.000000e+01 : f32
    %118 = vector.broadcast %cst_52 : f32 to vector<32x32xf32>
    %119 = arith.minimumf %115, %118 : vector<32x32xf32>
    %120 = math.exp %119 : vector<32x32xf32>
    %121 = math.log1p %120 : vector<32x32xf32>
    %122 = arith.select %117, %115, %121 : vector<32x32xi1>, vector<32x32xf32>
    %123 = arith.truncf %122 : vector<32x32xf32> to vector<32x32xbf16>
    %c2 = arith.constant 2 : index
    %c0_53 = arith.constant 0 : index
    %c0_54 = arith.constant 0 : index
    %124 = vector.load %arg6[%c2, %c0_53, %c0_54] : memref<4x32x128xbf16, #tpu.memory_space<vmem>>, vector<1x32x128xbf16>
    %125 = vector.shape_cast %124 : vector<1x32x128xbf16> to vector<32x128xbf16>
    %cst_55 = arith.constant dense<0.000000e+00> : vector<32x128xf32>
    %126 = tpu.matmul %123, %125, %cst_55 {dimension_numbers = #tpu.dot_dimension_numbers<[1], [0], [0], [1], [0, 0, 1, 1], [], []>} : vector<32x32xbf16>, vector<32x128xbf16>, vector<32x128xf32> -> vector<32x128xf32>
    %127 = vector.extract_strided_slice %126 {offsets = [0, 0], sizes = [32, 64], strides = [1, 1]} : vector<32x128xf32> to vector<32x64xf32>
    %128 = vector.extract_strided_slice %126 {offsets = [0, 64], sizes = [32, 64], strides = [1, 1]} : vector<32x128xf32> to vector<32x64xf32>
    %129 = tpu.concatenate %127, %128 in 0 : vector<32x64xf32>, vector<32x64xf32> -> vector<64x64xf32>
    %130 = arith.truncf %129 : vector<64x64xf32> to vector<64x64xbf16>
    %cst_56 = arith.constant dense<0.000000e+00> : vector<128x64xf32>
    %131 = tpu.matmul %12, %130, %cst_56 {dimension_numbers = #tpu.dot_dimension_numbers<[1], [0], [0], [1], [0, 0, 1, 1], [], []>} : vector<128x64xbf16>, vector<64x64xbf16>, vector<128x64xf32> -> vector<128x64xf32>
    %132 = vector.extract_strided_slice %26 {offsets = [0, 128], sizes = [128, 64], strides = [1, 1]} : vector<128x256xf32> to vector<128x64xf32>
    %133 = arith.addf %131, %132 : vector<128x64xf32>
    %134 = vector.extract_strided_slice %133 {offsets = [0, 0], sizes = [128, 32], strides = [1, 1]} : vector<128x64xf32> to vector<128x32xf32>
    %cst_57 = arith.constant 0.000000e+00 : f32
    %135 = vector.broadcast %cst_57 : f32 to vector<128x32xf32>
    %136 = arith.subf %135, %134 : vector<128x32xf32>
    %137 = math.exp %136 : vector<128x32xf32>
    %cst_58 = arith.constant 1.000000e+00 : f32
    %138 = vector.broadcast %cst_58 : f32 to vector<128x32xf32>
    %139 = arith.addf %138, %137 : vector<128x32xf32>
    %140 = tpu.reciprocal %139 {approx = true} : vector<128x32xf32> -> vector<128x32xf32>
    %141 = vector.extract_strided_slice %133 {offsets = [0, 32], sizes = [128, 32], strides = [1, 1]} : vector<128x64xf32> to vector<128x32xf32>
    %cst_59 = arith.constant 2.000000e+01 : f32
    %142 = vector.broadcast %cst_59 : f32 to vector<128x32xf32>
    %143 = arith.cmpf ogt, %141, %142 : vector<128x32xf32>
    %cst_60 = arith.constant 2.000000e+01 : f32
    %144 = vector.broadcast %cst_60 : f32 to vector<128x32xf32>
    %145 = arith.minimumf %141, %144 : vector<128x32xf32>
    %146 = math.exp %145 : vector<128x32xf32>
    %147 = math.log1p %146 : vector<128x32xf32>
    %148 = arith.select %143, %141, %147 : vector<128x32xi1>, vector<128x32xf32>
    %149 = arith.mulf %140, %148 : vector<128x32xf32>
    %150 = arith.truncf %149 : vector<128x32xf32> to vector<128x32xbf16>
    %cst_61 = arith.constant dense<0.000000e+00> : vector<32x32xf32>
    %151 = tpu.matmul %19, %150, %cst_61 {dimension_numbers = #tpu.dot_dimension_numbers<[1], [0], [0], [1], [0, 0, 1, 1], [], []>} : vector<32x128xbf16>, vector<128x32xbf16>, vector<32x32xf32> -> vector<32x32xf32>
    %c2_62 = arith.constant 2 : index
    %c0_63 = arith.constant 0 : index
    %c0_64 = arith.constant 0 : index
    %152 = vector.load %arg9[%c2_62, %c0_63, %c0_64] : memref<4x1x32xf32, #tpu.memory_space<vmem>>, vector<1x1x32xf32>
    %153 = vector.shape_cast %152 : vector<1x1x32xf32> to vector<1x32xf32>
    %154 = vector.broadcast %153 : vector<1x32xf32> to vector<32x32xf32>
    %155 = arith.mulf %151, %154 : vector<32x32xf32>
    %c2_65 = arith.constant 2 : index
    %c0_66 = arith.constant 0 : index
    %c0_67 = arith.constant 0 : index
    %156 = vector.load %arg10[%c2_65, %c0_66, %c0_67] : memref<4x1x32xf32, #tpu.memory_space<vmem>>, vector<1x1x32xf32>
    %157 = vector.shape_cast %156 : vector<1x1x32xf32> to vector<1x32xf32>
    %158 = vector.broadcast %157 : vector<1x32xf32> to vector<32x32xf32>
    %159 = arith.addf %155, %158 : vector<32x32xf32>
    %160 = arith.addf %122, %159 : vector<32x32xf32>
    %cst_68 = arith.constant 2.000000e+01 : f32
    %161 = vector.broadcast %cst_68 : f32 to vector<32x32xf32>
    %162 = arith.cmpf ogt, %160, %161 : vector<32x32xf32>
    %cst_69 = arith.constant 2.000000e+01 : f32
    %163 = vector.broadcast %cst_69 : f32 to vector<32x32xf32>
    %164 = arith.minimumf %160, %163 : vector<32x32xf32>
    %165 = math.exp %164 : vector<32x32xf32>
    %166 = math.log1p %165 : vector<32x32xf32>
    %167 = arith.select %162, %160, %166 : vector<32x32xi1>, vector<32x32xf32>
    %168 = arith.truncf %167 : vector<32x32xf32> to vector<32x32xbf16>
    %c3 = arith.constant 3 : index
    %c0_70 = arith.constant 0 : index
    %c0_71 = arith.constant 0 : index
    %169 = vector.load %arg6[%c3, %c0_70, %c0_71] : memref<4x32x128xbf16, #tpu.memory_space<vmem>>, vector<1x32x128xbf16>
    %170 = vector.shape_cast %169 : vector<1x32x128xbf16> to vector<32x128xbf16>
    %cst_72 = arith.constant dense<0.000000e+00> : vector<32x128xf32>
    %171 = tpu.matmul %168, %170, %cst_72 {dimension_numbers = #tpu.dot_dimension_numbers<[1], [0], [0], [1], [0, 0, 1, 1], [], []>} : vector<32x32xbf16>, vector<32x128xbf16>, vector<32x128xf32> -> vector<32x128xf32>
    %172 = vector.extract_strided_slice %171 {offsets = [0, 0], sizes = [32, 64], strides = [1, 1]} : vector<32x128xf32> to vector<32x64xf32>
    %173 = vector.extract_strided_slice %171 {offsets = [0, 64], sizes = [32, 64], strides = [1, 1]} : vector<32x128xf32> to vector<32x64xf32>
    %174 = tpu.concatenate %172, %173 in 0 : vector<32x64xf32>, vector<32x64xf32> -> vector<64x64xf32>
    %175 = arith.truncf %174 : vector<64x64xf32> to vector<64x64xbf16>
    %cst_73 = arith.constant dense<0.000000e+00> : vector<128x64xf32>
    %176 = tpu.matmul %12, %175, %cst_73 {dimension_numbers = #tpu.dot_dimension_numbers<[1], [0], [0], [1], [0, 0, 1, 1], [], []>} : vector<128x64xbf16>, vector<64x64xbf16>, vector<128x64xf32> -> vector<128x64xf32>
    %177 = vector.extract_strided_slice %26 {offsets = [0, 192], sizes = [128, 64], strides = [1, 1]} : vector<128x256xf32> to vector<128x64xf32>
    %178 = arith.addf %176, %177 : vector<128x64xf32>
    %179 = vector.extract_strided_slice %178 {offsets = [0, 0], sizes = [128, 32], strides = [1, 1]} : vector<128x64xf32> to vector<128x32xf32>
    %cst_74 = arith.constant 0.000000e+00 : f32
    %180 = vector.broadcast %cst_74 : f32 to vector<128x32xf32>
    %181 = arith.subf %180, %179 : vector<128x32xf32>
    %182 = math.exp %181 : vector<128x32xf32>
    %cst_75 = arith.constant 1.000000e+00 : f32
    %183 = vector.broadcast %cst_75 : f32 to vector<128x32xf32>
    %184 = arith.addf %183, %182 : vector<128x32xf32>
    %185 = tpu.reciprocal %184 {approx = true} : vector<128x32xf32> -> vector<128x32xf32>
    %186 = vector.extract_strided_slice %178 {offsets = [0, 32], sizes = [128, 32], strides = [1, 1]} : vector<128x64xf32> to vector<128x32xf32>
    %cst_76 = arith.constant 2.000000e+01 : f32
    %187 = vector.broadcast %cst_76 : f32 to vector<128x32xf32>
    %188 = arith.cmpf ogt, %186, %187 : vector<128x32xf32>
    %cst_77 = arith.constant 2.000000e+01 : f32
    %189 = vector.broadcast %cst_77 : f32 to vector<128x32xf32>
    %190 = arith.minimumf %186, %189 : vector<128x32xf32>
    %191 = math.exp %190 : vector<128x32xf32>
    %192 = math.log1p %191 : vector<128x32xf32>
    %193 = arith.select %188, %186, %192 : vector<128x32xi1>, vector<128x32xf32>
    %194 = arith.mulf %185, %193 : vector<128x32xf32>
    %195 = arith.truncf %194 : vector<128x32xf32> to vector<128x32xbf16>
    %cst_78 = arith.constant dense<0.000000e+00> : vector<32x32xf32>
    %196 = tpu.matmul %19, %195, %cst_78 {dimension_numbers = #tpu.dot_dimension_numbers<[1], [0], [0], [1], [0, 0, 1, 1], [], []>} : vector<32x128xbf16>, vector<128x32xbf16>, vector<32x32xf32> -> vector<32x32xf32>
    %c3_79 = arith.constant 3 : index
    %c0_80 = arith.constant 0 : index
    %c0_81 = arith.constant 0 : index
    %197 = vector.load %arg9[%c3_79, %c0_80, %c0_81] : memref<4x1x32xf32, #tpu.memory_space<vmem>>, vector<1x1x32xf32>
    %198 = vector.shape_cast %197 : vector<1x1x32xf32> to vector<1x32xf32>
    %199 = vector.broadcast %198 : vector<1x32xf32> to vector<32x32xf32>
    %200 = arith.mulf %196, %199 : vector<32x32xf32>
    %c3_82 = arith.constant 3 : index
    %c0_83 = arith.constant 0 : index
    %c0_84 = arith.constant 0 : index
    %201 = vector.load %arg10[%c3_82, %c0_83, %c0_84] : memref<4x1x32xf32, #tpu.memory_space<vmem>>, vector<1x1x32xf32>
    %202 = vector.shape_cast %201 : vector<1x1x32xf32> to vector<1x32xf32>
    %203 = vector.broadcast %202 : vector<1x32xf32> to vector<32x32xf32>
    %204 = arith.addf %200, %203 : vector<32x32xf32>
    %205 = arith.addf %167, %204 : vector<32x32xf32>
    %cst_85 = arith.constant 2.000000e+01 : f32
    %206 = vector.broadcast %cst_85 : f32 to vector<32x32xf32>
    %207 = arith.cmpf ogt, %205, %206 : vector<32x32xf32>
    %cst_86 = arith.constant 2.000000e+01 : f32
    %208 = vector.broadcast %cst_86 : f32 to vector<32x32xf32>
    %209 = arith.minimumf %205, %208 : vector<32x32xf32>
    %210 = math.exp %209 : vector<32x32xf32>
    %211 = math.log1p %210 : vector<32x32xf32>
    %212 = arith.select %207, %205, %211 : vector<32x32xi1>, vector<32x32xf32>
    %c0_87 = arith.constant 0 : index
    %c0_88 = arith.constant 0 : index
    %213 = vector.load %arg11[%c0_87, %c0_88] : memref<32x32xf32, #tpu.memory_space<vmem>>, vector<32x32xf32>
    tpu.vector_store %arg11[%c0_87, %c0_88], %212 {strides = array<i32>} : memref<32x32xf32, #tpu.memory_space<vmem>>, vector<32x32xf32>,
    return
  }
}

</mosaic_0001>

<llo_original>
// kernel: _descriptor_network_impl.1
$region0: #{_descriptor_network_impl.1}
  #allocation0 [shape = 'u32[]', space=smem, size = 0x4, offset = 0x4, fixed_abs, tag = 'smem constant byte address 0x4 - core index']
  #allocation1 [shape = 'u32[72,128]{1,0:T(1,128)}', space=vmem, size = 0x9000, scoped, tag = 'internal scratch']
  %s0 = inlined_call_operand.vmem [shape: s32[128,2], index: 0, kind: input, shape index: {}]
  %s1 = inlined_call_operand.vmem [shape: s32[1,128], index: 1, kind: input, shape index: {}]
  %s2 = inlined_call_operand.vmem [shape: f32[32,24], index: 2, kind: input, shape index: {}]
  %s3 = inlined_call_operand.vmem [shape: f32[128,16], index: 3, kind: input, shape index: {}]
  %s4 = inlined_call_operand.vmem [shape: f32[24,32], index: 4, kind: input, shape index: {}]
  %s5 = inlined_call_operand.vmem [shape: f32[1,32], index: 5, kind: input, shape index: {}]
  %s6 = inlined_call_operand.vmem [shape: bf16[4,32,128], index: 6, kind: input, shape index: {}]
  %s7 = inlined_call_operand.vmem [shape: bf16[16,256], index: 7, kind: input, shape index: {}]
  %s8 = inlined_call_operand.vmem [shape: f32[1,256], index: 8, kind: input, shape index: {}]
  %s9 = inlined_call_operand.vmem [shape: f32[4,1,32], index: 9, kind: input, shape index: {}]
  %s10 = inlined_call_operand.vmem [shape: f32[4,1,32], index: 10, kind: input, shape index: {}]
  %s11 = inlined_call_operand.hbm [shape: f32[32,32], index: 11, kind: output, shape index: {}]
  %s12 = sld [smem:[#allocation0]]
  $region54: #{_descriptor_network_impl.1} parent=0
    _
  %s14 = ssub.s32 1, %s12
  %s15 = scalar_select 0, %s14, %s12
  $region1: #{_descriptor_network_impl.1} parent=0
    #allocation2 [shape = 'u8[16384]{0}', space=vmem, size = 0x4000, scoped, tag = 'output window, operand 0, single buffered']
    #allocation3 [shape = 's32[1]{0}', space=sflag, size = 0x4, scoped, tag = 'scoped memory for _descriptor_network_impl.1']
    %16 = vsyncpa [#allocation3], 0
    // Predicated region
    $region2: #{_descriptor_network_impl.1} parent=1 // pred_check
      _
    $region3: #{_descriptor_network_impl.1} parent=1 // pred_check_branch
      %18 = sbr.rel (0) target = $region5
    $region4: #{_descriptor_network_impl.1} parent=1 // pred_region
      _
    $region5: #{_descriptor_network_impl.1} parent=1 // pred_fallthru
      _
    // Predicated region
    $region6: #{_descriptor_network_impl.1} parent=1 // pred_check
      _
    $region7: #{_descriptor_network_impl.1} parent=1 // pred_check_branch
      %20 = sbr.rel (0) target = $region9
    $region8: #{_descriptor_network_impl.1} parent=1 // pred_region
      _
    $region9: #{_descriptor_network_impl.1} parent=1 // pred_fallthru
      _
    // Predicated region
    $region10: #{_descriptor_network_impl.1} parent=1 // pred_check
      _
    $region11: #{_descriptor_network_impl.1} parent=1 // pred_check_branch
      %22 = sbr.rel (0) target = $region13
    $region12: #{_descriptor_network_impl.1} parent=1 // pred_region
      _
    $region13: #{_descriptor_network_impl.1} parent=1 // pred_fallthru
      _
    // Predicated region
    $region14: #{_descriptor_network_impl.1} parent=1 // pred_check
      _
    $region15: #{_descriptor_network_impl.1} parent=1 // pred_check_branch
      %24 = sbr.rel (0) target = $region17
    $region16: #{_descriptor_network_impl.1} parent=1 // pred_region
      _
    $region17: #{_descriptor_network_impl.1} parent=1 // pred_fallthru
      _
    // Predicated region
    $region18: #{_descriptor_network_impl.1} parent=1 // pred_check
      _
    $region19: #{_descriptor_network_impl.1} parent=1 // pred_check_branch
      %26 = sbr.rel (0) target = $region21
    $region20: #{_descriptor_network_impl.1} parent=1 // pred_region
      _
    $region21: #{_descriptor_network_impl.1} parent=1 // pred_fallthru
      _
    // Predicated region
    $region22: #{_descriptor_network_impl.1} parent=1 // pred_check
      _
    $region23: #{_descriptor_network_impl.1} parent=1 // pred_check_branch
      %28 = sbr.rel (0) target = $region25
    $region24: #{_descriptor_network_impl.1} parent=1 // pred_region
      _
    $region25: #{_descriptor_network_impl.1} parent=1 // pred_fallthru
      _
    // Predicated region
    $region26: #{_descriptor_network_impl.1} parent=1 // pred_check
      _
    $region27: #{_descriptor_network_impl.1} parent=1 // pred_check_branch
      %30 = sbr.rel (0) target = $region29
    $region28: #{_descriptor_network_impl.1} parent=1 // pred_region
      _
    $region29: #{_descriptor_network_impl.1} parent=1 // pred_fallthru
      _
    // Predicated region
    $region30: #{_descriptor_network_impl.1} parent=1 // pred_check
      _
    $region31: #{_descriptor_network_impl.1} parent=1 // pred_check_branch
      %32 = sbr.rel (0) target = $region33
    $region32: #{_descriptor_network_impl.1} parent=1 // pred_region
      _
    $region33: #{_descriptor_network_impl.1} parent=1 // pred_fallthru
      _
    // Predicated region
    $region34: #{_descriptor_network_impl.1} parent=1 // pred_check
      _
    $region35: #{_descriptor_network_impl.1} parent=1 // pred_check_branch
      %34 = sbr.rel (0) target = $region37
    $region36: #{_descriptor_network_impl.1} parent=1 // pred_region
      _
    $region37: #{_descriptor_network_impl.1} parent=1 // pred_fallthru
      _
    // Predicated region
    $region38: #{_descriptor_network_impl.1} parent=1 // pred_check
      _
    $region39: #{_descriptor_network_impl.1} parent=1 // pred_check_branch
      %36 = sbr.rel (0) target = $region41
    $region40: #{_descriptor_network_impl.1} parent=1 // pred_region
      _
    $region41: #{_descriptor_network_impl.1} parent=1 // pred_fallthru
      _
    // Predicated region
    $region42: #{_descriptor_network_impl.1} parent=1 // pred_check
      _
    $region43: #{_descriptor_network_impl.1} parent=1 // pred_check_branch
      %38 = sbr.rel (0) target = $region45
    $region44: #{_descriptor_network_impl.1} parent=1 // pred_region
      _
    $region45: #{_descriptor_network_impl.1} parent=1 // pred_fallthru
      _
    %v40 = vld [vmem:[%s0] sm:$0xff]
    %v41 = vld [vmem:[%s0 + $0x8] sm:$0xff]
    %v42 = vld [vmem:[%s0 + $0x10] sm:$0xff]
    %v43 = vld [vmem:[%s0 + $0x18] sm:$0xff]
    %v44 = vld [vmem:[%s0 + $0x20] sm:$0xff]
    %v45 = vld [vmem:[%s0 + $0x28] sm:$0xff]
    %v46 = vld [vmem:[%s0 + $0x30] sm:$0xff]
    %v47 = vld [vmem:[%s0 + $0x38] sm:$0xff]
    %v48 = vld [vmem:[%s0 + $0x40] sm:$0xff]
    %v49 = vld [vmem:[%s0 + $0x48] sm:$0xff]
    %v50 = vld [vmem:[%s0 + $0x50] sm:$0xff]
    %v51 = vld [vmem:[%s0 + $0x58] sm:$0xff]
    %v52 = vld [vmem:[%s0 + $0x60] sm:$0xff]
    %v53 = vld [vmem:[%s0 + $0x68] sm:$0xff]
    %v54 = vld [vmem:[%s0 + $0x70] sm:$0xff]
    %v55 = vld [vmem:[%s0 + $0x78] sm:$0xff]
    %v56 = vlaneseq
    %v57 = vand.u32 %v56, 127
    %58 = vset.pattern.permute.xlu0 0
    %59 = vperm.xlu0 %58, %v40
    %v60 = vpop.permute.xlu0 %59
    %61 = vset.pattern.permute.xlu0 0
    %62 = vperm.xlu0 %61, %v41
    %v63 = vpop.permute.xlu0 %62
    %64 = vset.pattern.permute.xlu0 0
    %65 = vperm.xlu0 %64, %v42
    %v66 = vpop.permute.xlu0 %65
    %67 = vset.pattern.permute.xlu0 0
    %68 = vperm.xlu0 %67, %v43
    %v69 = vpop.permute.xlu0 %68
    %70 = vset.pattern.permute.xlu0 0
    %71 = vperm.xlu0 %70, %v44
    %v72 = vpop.permute.xlu0 %71
    %73 = vset.pattern.permute.xlu0 0
    %74 = vperm.xlu0 %73, %v45
    %v75 = vpop.permute.xlu0 %74
    %76 = vset.pattern.permute.xlu0 0
    %77 = vperm.xlu0 %76, %v46
    %v78 = vpop.permute.xlu0 %77
    %79 = vset.pattern.permute.xlu0 0
    %80 = vperm.xlu0 %79, %v47
    %v81 = vpop.permute.xlu0 %80
    %82 = vset.pattern.permute.xlu0 0
    %83 = vperm.xlu0 %82, %v48
    %v84 = vpop.permute.xlu0 %83
    %85 = vset.pattern.permute.xlu0 0
    %86 = vperm.xlu0 %85, %v49
    %v87 = vpop.permute.xlu0 %86
    %88 = vset.pattern.permute.xlu0 0
    %89 = vperm.xlu0 %88, %v50
    %v90 = vpop.permute.xlu0 %89
    %91 = vset.pattern.permute.xlu0 0
    %92 = vperm.xlu0 %91, %v51
    %v93 = vpop.permute.xlu0 %92
    %94 = vset.pattern.permute.xlu0 0
    %95 = vperm.xlu0 %94, %v52
    %v96 = vpop.permute.xlu0 %95
    %97 = vset.pattern.permute.xlu0 0
    %98 = vperm.xlu0 %97, %v53
    %v99 = vpop.permute.xlu0 %98
    %100 = vset.pattern.permute.xlu0 0
    %101 = vperm.xlu0 %100, %v54
    %v102 = vpop.permute.xlu0 %101
    %103 = vset.pattern.permute.xlu0 0
    %104 = vperm.xlu0 %103, %v55
    %v105 = vpop.permute.xlu0 %104
    %vm106 = vcmp.eq.s32.totalorder %v57, %v60
    %vm107 = vcmp.eq.s32.totalorder %v57, %v63
    %vm108 = vcmp.eq.s32.totalorder %v57, %v66
    %vm109 = vcmp.eq.s32.totalorder %v57, %v69
    %vm110 = vcmp.eq.s32.totalorder %v57, %v72
    %vm111 = vcmp.eq.s32.totalorder %v57, %v75
    %vm112 = vcmp.eq.s32.totalorder %v57, %v78
    %vm113 = vcmp.eq.s32.totalorder %v57, %v81
    %vm114 = vcmp.eq.s32.totalorder %v57, %v84
    %vm115 = vcmp.eq.s32.totalorder %v57, %v87
    %vm116 = vcmp.eq.s32.totalorder %v57, %v90
    %vm117 = vcmp.eq.s32.totalorder %v57, %v93
    %vm118 = vcmp.eq.s32.totalorder %v57, %v96
    %vm119 = vcmp.eq.s32.totalorder %v57, %v99
    %vm120 = vcmp.eq.s32.totalorder %v57, %v102
    %vm121 = vcmp.eq.s32.totalorder %v57, %v105
    %v122 = vadd.s32 %v40, 32
    %v123 = vadd.s32 %v41, 32
    %v124 = vadd.s32 %v42, 32
    %v125 = vadd.s32 %v43, 32
    %v126 = vadd.s32 %v44, 32
    %v127 = vadd.s32 %v45, 32
    %v128 = vadd.s32 %v46, 32
    %v129 = vadd.s32 %v47, 32
    %v130 = vadd.s32 %v48, 32
    %v131 = vadd.s32 %v49, 32
    %v132 = vadd.s32 %v50, 32
    %v133 = vadd.s32 %v51, 32
    %v134 = vadd.s32 %v52, 32
    %v135 = vadd.s32 %v53, 32
    %v136 = vadd.s32 %v54, 32
    %v137 = vadd.s32 %v55, 32
    %138 = vset.pattern.permute.xlu0 1
    %139 = vperm.xlu0 %138, %v122
    %v140 = vpop.permute.xlu0 %139
    %141 = vset.pattern.permute.xlu0 1
    %142 = vperm.xlu0 %141, %v123
    %v143 = vpop.permute.xlu0 %142
    %144 = vset.pattern.permute.xlu0 1
    %145 = vperm.xlu0 %144, %v124
    %v146 = vpop.permute.xlu0 %145
    %147 = vset.pattern.permute.xlu0 1
    %148 = vperm.xlu0 %147, %v125
    %v149 = vpop.permute.xlu0 %148
    %150 = vset.pattern.permute.xlu0 1
    %151 = vperm.xlu0 %150, %v126
    %v152 = vpop.permute.xlu0 %151
    %153 = vset.pattern.permute.xlu0 1
    %154 = vperm.xlu0 %153, %v127
    %v155 = vpop.permute.xlu0 %154
    %156 = vset.pattern.permute.xlu0 1
    %157 = vperm.xlu0 %156, %v128
    %v158 = vpop.permute.xlu0 %157
    %159 = vset.pattern.permute.xlu0 1
    %160 = vperm.xlu0 %159, %v129
    %v161 = vpop.permute.xlu0 %160
    %162 = vset.pattern.permute.xlu0 1
    %163 = vperm.xlu0 %162, %v130
    %v164 = vpop.permute.xlu0 %163
    %165 = vset.pattern.permute.xlu0 1
    %166 = vperm.xlu0 %165, %v131
    %v167 = vpop.permute.xlu0 %166
    %168 = vset.pattern.permute.xlu0 1
    %169 = vperm.xlu0 %168, %v132
    %v170 = vpop.permute.xlu0 %169
    %171 = vset.pattern.permute.xlu0 1
    %172 = vperm.xlu0 %171, %v133
    %v173 = vpop.permute.xlu0 %172
    %174 = vset.pattern.permute.xlu0 1
    %175 = vperm.xlu0 %174, %v134
    %v176 = vpop.permute.xlu0 %175
    %177 = vset.pattern.permute.xlu0 1
    %178 = vperm.xlu0 %177, %v135
    %v179 = vpop.permute.xlu0 %178
    %180 = vset.pattern.permute.xlu0 1
    %181 = vperm.xlu0 %180, %v136
    %v182 = vpop.permute.xlu0 %181
    %183 = vset.pattern.permute.xlu0 1
    %184 = vperm.xlu0 %183, %v137
    %v185 = vpop.permute.xlu0 %184
    %vm186 = vcmp.eq.s32.totalorder %v57, %v140
    %vm187 = vcmp.eq.s32.totalorder %v57, %v143
    %vm188 = vcmp.eq.s32.totalorder %v57, %v146
    %vm189 = vcmp.eq.s32.totalorder %v57, %v149
    %vm190 = vcmp.eq.s32.totalorder %v57, %v152
    %vm191 = vcmp.eq.s32.totalorder %v57, %v155
    %vm192 = vcmp.eq.s32.totalorder %v57, %v158
    %vm193 = vcmp.eq.s32.totalorder %v57, %v161
    %vm194 = vcmp.eq.s32.totalorder %v57, %v164
    %vm195 = vcmp.eq.s32.totalorder %v57, %v167
    %vm196 = vcmp.eq.s32.totalorder %v57, %v170
    %vm197 = vcmp.eq.s32.totalorder %v57, %v173
    %vm198 = vcmp.eq.s32.totalorder %v57, %v176
    %vm199 = vcmp.eq.s32.totalorder %v57, %v179
    %vm200 = vcmp.eq.s32.totalorder %v57, %v182
    %vm201 = vcmp.eq.s32.totalorder %v57, %v185
    %vm202 = vmor %vm106, %vm186
    %vm203 = vmor %vm107, %vm187
    %vm204 = vmor %vm108, %vm188
    %vm205 = vmor %vm109, %vm189
    %vm206 = vmor %vm110, %vm190
    %vm207 = vmor %vm111, %vm191
    %vm208 = vmor %vm112, %vm192
    %vm209 = vmor %vm113, %vm193
    %vm210 = vmor %vm114, %vm194
    %vm211 = vmor %vm115, %vm195
    %vm212 = vmor %vm116, %vm196
    %vm213 = vmor %vm117, %vm197
    %vm214 = vmor %vm118, %vm198
    %vm215 = vmor %vm119, %vm199
    %vm216 = vmor %vm120, %vm200
    %vm217 = vmor %vm121, %vm201
    %v218 = vsel %vm202, 1, 0
    %v219 = vsel %vm203, 1, 0
    %v220 = vsel %vm204, 1, 0
    %v221 = vsel %vm205, 1, 0
    %v222 = vsel %vm206, 1, 0
    %v223 = vsel %vm207, 1, 0
    %v224 = vsel %vm208, 1, 0
    %v225 = vsel %vm209, 1, 0
    %v226 = vsel %vm210, 1, 0
    %v227 = vsel %vm211, 1, 0
    %v228 = vsel %vm212, 1, 0
    %v229 = vsel %vm213, 1, 0
    %v230 = vsel %vm214, 1, 0
    %v231 = vsel %vm215, 1, 0
    %v232 = vsel %vm216, 1, 0
    %v233 = vsel %vm217, 1, 0
    %v234 = vcvt.s32.f32 %v218
    %v235 = vcvt.s32.f32 %v219
    %v236 = vcvt.s32.f32 %v220
    %v237 = vcvt.s32.f32 %v221
    %v238 = vcvt.s32.f32 %v222
    %v239 = vcvt.s32.f32 %v223
    %v240 = vcvt.s32.f32 %v224
    %v241 = vcvt.s32.f32 %v225
    %v242 = vcvt.s32.f32 %v226
    %v243 = vcvt.s32.f32 %v227
    %v244 = vcvt.s32.f32 %v228
    %v245 = vcvt.s32.f32 %v229
    %v246 = vcvt.s32.f32 %v230
    %v247 = vcvt.s32.f32 %v231
    %v248 = vcvt.s32.f32 %v232
    %v249 = vcvt.s32.f32 %v233
    %v250 = vpack.c.bf16 %v235, %v234
    %v251 = vpack.c.bf16 %v237, %v236
    %v252 = vpack.c.bf16 %v239, %v238
    %v253 = vpack.c.bf16 %v241, %v240
    %v254 = vpack.c.bf16 %v243, %v242
    %v255 = vpack.c.bf16 %v245, %v244
    %v256 = vpack.c.bf16 %v247, %v246
    %v257 = vpack.c.bf16 %v249, %v248
    %v258 = vlaneseq
    %v259 = vshrl.u32 %v258, 7
    %v260 = vadd.s32 %v259, 8
    %v261 = vadd.s32 %v259, 16
    %v262 = vadd.s32 %v259, 24
    %v263 = vld [vmem:[%s1] sm:$0x1]
    %v264 = vperm.slane %v263, 0
    %vm265 = vcmp.eq.s32.totalorder %v259, %v264
    %vm266 = vcmp.eq.s32.totalorder %v260, %v264
    %vm267 = vcmp.eq.s32.totalorder %v261, %v264
    %vm268 = vcmp.eq.s32.totalorder %v262, %v264
    %v269 = vsel %vm265, 1, 0
    %v270 = vsel %vm266, 1, 0
    %v271 = vsel %vm267, 1, 0
    %v272 = vsel %vm268, 1, 0
    %v273 = vcvt.s32.f32 %v269
    %v274 = vcvt.s32.f32 %v270
    %v275 = vcvt.s32.f32 %v271
    %v276 = vcvt.s32.f32 %v272
    %v277 = vpack.c.bf16 %v274, %v273
    %v278 = vpack.c.bf16 %v276, %v275
    %v279 = vld [vmem:[%s3] sm:$0xff]
    %v280 = vld [vmem:[%s3 + $0x8] sm:$0xff]
    %v281 = vld [vmem:[%s3 + $0x10] sm:$0xff]
    %v282 = vld [vmem:[%s3 + $0x18] sm:$0xff]
    %v283 = vld [vmem:[%s3 + $0x20] sm:$0xff]
    %v284 = vld [vmem:[%s3 + $0x28] sm:$0xff]
    %v285 = vld [vmem:[%s3 + $0x30] sm:$0xff]
    %v286 = vld [vmem:[%s3 + $0x38] sm:$0xff]
    %v287 = vld [vmem:[%s3 + $0x40] sm:$0xff]
    %v288 = vld [vmem:[%s3 + $0x48] sm:$0xff]
    %v289 = vld [vmem:[%s3 + $0x50] sm:$0xff]
    %v290 = vld [vmem:[%s3 + $0x58] sm:$0xff]
    %v291 = vld [vmem:[%s3 + $0x60] sm:$0xff]
    %v292 = vld [vmem:[%s3 + $0x68] sm:$0xff]
    %v293 = vld [vmem:[%s3 + $0x70] sm:$0xff]
    %v294 = vld [vmem:[%s3 + $0x78] sm:$0xff]
    %v295 = vpack.c.bf16 %v280, %v279
    %v296 = vpack.c.bf16 %v282, %v281
    %v297 = vpack.c.bf16 %v284, %v283
    %v298 = vpack.c.bf16 %v286, %v285
    %v299 = vpack.c.bf16 %v288, %v287
    %v300 = vpack.c.bf16 %v290, %v289
    %v301 = vpack.c.bf16 %v292, %v291
    %v302 = vpack.c.bf16 %v294, %v293
    %v303 = vld [vmem:[%s7] sm:$0xff]
    %v304 = vld [vmem:[%s7 + $0x8] sm:$0xff]
    %v305 = vld [vmem:[%s8] sm:$0x3]
    %v307 = vperm.slane %v305, 0
    %v308 = vperm.slane %v305, 1
    %v313 = vunpack.c.l.b16 %v303
    %v314 = vunpack.c.h.b16 %v303
    %v315 = vunpack.c.l.b16 %v304
    %v316 = vunpack.c.h.b16 %v304
    %v317 = vpack.c.b16 %v315, %v313
    %v318 = vpack.c.b16 %v316, %v314
    %vm321 = vcmask 130048
    %v323 = vsel %vm321, %v295, 0
    %v326 = vsel %vm321, %v296, 0
    %v329 = vsel %vm321, %v297, 0
    %v332 = vsel %vm321, %v298, 0
    %v335 = vsel %vm321, %v299, 0
    %v338 = vsel %vm321, %v300, 0
    %v341 = vsel %vm321, %v301, 0
    %v344 = vsel %vm321, %v302, 0
    %346 = vmatpush.bf16.msra.mxu0 0
    %347 = vmatpush.bf16.msra.mxu0 0
    %348 = vmatpush.bf16.msra.mxu0 0
    %349 = vmatpush.bf16.msra.mxu0 0
    %350 = vmatpush.bf16.msra.mxu0 0
    %351 = vmatpush.bf16.msra.mxu0 0
    %352 = vmatpush.bf16.msra.mxu0 0
    %353 = vmatpush.bf16.msra.mxu0 %v317
    %354 = vmatmul.bf16.gmra.mxu0 %v323
    %v355 = vpop.f32.mrf.mxu0
    %v356 = vadd.f32 %v307, %v355
    %v357 = vpop.f32.mrf.mxu0
    %v358 = vadd.f32 %v307, %v357
    %359 = vmatmul.bf16.gmra.mxu0 %v326
    %v360 = vpop.f32.mrf.mxu0
    %v361 = vadd.f32 %v307, %v360
    %v362 = vpop.f32.mrf.mxu0
    %v363 = vadd.f32 %v307, %v362
    %364 = vmatmul.bf16.gmra.mxu0 %v329
    %v365 = vpop.f32.mrf.mxu0
    %v366 = vadd.f32 %v307, %v365
    %v367 = vpop.f32.mrf.mxu0
    %v368 = vadd.f32 %v307, %v367
    %369 = vmatmul.bf16.gmra.mxu0 %v332
    %v370 = vpop.f32.mrf.mxu0
    %v371 = vadd.f32 %v307, %v370
    %v372 = vpop.f32.mrf.mxu0
    %v373 = vadd.f32 %v307, %v372
    %374 = vmatmul.bf16.gmra.mxu0 %v335
    %v375 = vpop.f32.mrf.mxu0
    %v376 = vadd.f32 %v307, %v375
    %v377 = vpop.f32.mrf.mxu0
    %v378 = vadd.f32 %v307, %v377
    %379 = vmatmul.bf16.gmra.mxu0 %v338
    %v380 = vpop.f32.mrf.mxu0
    %v381 = vadd.f32 %v307, %v380
    %v382 = vpop.f32.mrf.mxu0
    %v383 = vadd.f32 %v307, %v382
    %384 = vmatmul.bf16.gmra.mxu0 %v341
    %v385 = vpop.f32.mrf.mxu0
    %v386 = vadd.f32 %v307, %v385
    %v387 = vpop.f32.mrf.mxu0
    %v388 = vadd.f32 %v307, %v387
    %389 = vmatmul.bf16.gmra.mxu0 %v344
    %v390 = vpop.f32.mrf.mxu0
    %v391 = vadd.f32 %v307, %v390
    %v392 = vpop.f32.mrf.mxu0
    %v393 = vadd.f32 %v307, %v392
    %394 = vdwg.mxu0
    %395 = vmatpush.bf16.msra.mxu0 0
    %396 = vmatpush.bf16.msra.mxu0 0
    %397 = vmatpush.bf16.msra.mxu0 0
    %398 = vmatpush.bf16.msra.mxu0 0
    %399 = vmatpush.bf16.msra.mxu0 0
    %400 = vmatpush.bf16.msra.mxu0 0
    %401 = vmatpush.bf16.msra.mxu0 0
    %402 = vmatpush.bf16.msra.mxu0 %v318
    %403 = vmatmul.bf16.gmra.mxu0 %v323
    %v404 = vpop.f32.mrf.mxu0
    %v405 = vadd.f32 %v308, %v404
    %v406 = vpop.f32.mrf.mxu0
    %v407 = vadd.f32 %v308, %v406
    %408 = vmatmul.bf16.gmra.mxu0 %v326
    %v409 = vpop.f32.mrf.mxu0
    %v410 = vadd.f32 %v308, %v409
    %v411 = vpop.f32.mrf.mxu0
    %v412 = vadd.f32 %v308, %v411
    %413 = vmatmul.bf16.gmra.mxu0 %v329
    %v414 = vpop.f32.mrf.mxu0
    %v415 = vadd.f32 %v308, %v414
    %v416 = vpop.f32.mrf.mxu0
    %v417 = vadd.f32 %v308, %v416
    %418 = vmatmul.bf16.gmra.mxu0 %v332
    %v419 = vpop.f32.mrf.mxu0
    %v420 = vadd.f32 %v308, %v419
    %v421 = vpop.f32.mrf.mxu0
    %v422 = vadd.f32 %v308, %v421
    %423 = vmatmul.bf16.gmra.mxu0 %v335
    %v424 = vpop.f32.mrf.mxu0
    %v425 = vadd.f32 %v308, %v424
    %v426 = vpop.f32.mrf.mxu0
    %v427 = vadd.f32 %v308, %v426
    %428 = vmatmul.bf16.gmra.mxu0 %v338
    %v429 = vpop.f32.mrf.mxu0
    %v430 = vadd.f32 %v308, %v429
    %v431 = vpop.f32.mrf.mxu0
    %v432 = vadd.f32 %v308, %v431
    %433 = vmatmul.bf16.gmra.mxu0 %v341
    %v434 = vpop.f32.mrf.mxu0
    %v435 = vadd.f32 %v308, %v434
    %v436 = vpop.f32.mrf.mxu0
    %v437 = vadd.f32 %v308, %v436
    %438 = vmatmul.bf16.gmra.mxu0 %v344
    %v439 = vpop.f32.mrf.mxu0
    %v440 = vadd.f32 %v308, %v439
    %v441 = vpop.f32.mrf.mxu0
    %v442 = vadd.f32 %v308, %v441
    %443 = vdwg.mxu0
    %v444 = vld [vmem:[%s2] sm:$0xff]
    %v445 = vld [vmem:[%s2 + $0x8] sm:$0xff]
    %v446 = vld [vmem:[%s2 + $0x10] sm:$0xff]
    %v447 = vld [vmem:[%s2 + $0x18] sm:$0xff]
    %v448 = vld [vmem:[%s4] sm:$0xff]
    %v449 = vld [vmem:[%s4 + $0x8] sm:$0xff]
    %v450 = vld [vmem:[%s4 + $0x10] sm:$0xff]
    %v451 = vld [vmem:[%s5] sm:$0x1]
    %v453 = vperm.slane %v451, 0
    %vm455 = vcmask 195584
    %v457 = vsel %vm455, %v444, 0
    %v460 = vsel %vm455, %v445, 0
    %v463 = vsel %vm455, %v446, 0
    %v466 = vsel %vm455, %v447, 0
    %468 = vmatpush.msra.mxu0 0.0
    %469 = vmatpush.msra.mxu0 0.0
    %470 = vmatpush.msra.mxu0 0.0
    %471 = vmatpush.msra.mxu0 0.0
    %472 = vmatpush.msra.mxu0 0.0
    %473 = vmatpush.msra.mxu0 0.0
    %474 = vmatpush.msra.mxu0 0.0
    %475 = vmatpush.msra.mxu0 0.0
    %476 = vmatpush.msra.mxu0 0.0
    %477 = vmatpush.msra.mxu0 0.0
    %478 = vmatpush.msra.mxu0 0.0
    %479 = vmatpush.msra.mxu0 0.0
    %480 = vmatpush.msra.mxu0 0.0
    %481 = vmatpush.msra.mxu0 %v450
    %482 = vmatpush.msra.mxu0 %v449
    %483 = vmatpush.msra.mxu0 %v448
    %484 = vmatmul.f32.gmra.mxu0 %v457
    %v485 = vpop.f32.mrf.mxu0
    %v486 = vadd.f32 %v453, %v485
    %487 = vmatmul.f32.gmra.mxu0 %v460
    %v488 = vpop.f32.mrf.mxu0
    %v489 = vadd.f32 %v453, %v488
    %490 = vmatmul.f32.gmra.mxu0 %v463
    %v491 = vpop.f32.mrf.mxu0
    %v492 = vadd.f32 %v453, %v491
    %493 = vmatmul.f32.gmra.mxu0 %v466
    %v494 = vpop.f32.mrf.mxu0
    %v495 = vadd.f32 %v453, %v494
    %496 = vdwg.mxu0
    %v497 = vpack.c.bf16 %v489, %v486
    %v498 = vpack.c.bf16 %v495, %v492
    %v499 = vld [vmem:[%s6] sm:$0xf]
    %v500 = vld [vmem:[%s6 + $0x4] sm:$0xf]
    %v501 = vld [vmem:[%s6 + $0x8] sm:$0xf]
    %v502 = vld [vmem:[%s6 + $0xc] sm:$0xf]
    %v507 = vunpack.c.l.b16 %v499
    %v508 = vunpack.c.l.b16 %v500
    %v509 = vunpack.c.l.b16 %v501
    %v510 = vunpack.c.l.b16 %v502
    %v511 = vpack.c.b16 %v508, %v507
    %v512 = vpack.c.b16 %v510, %v509
    %vm515 = vcmask 261120
    %v517 = vsel %vm515, %v497, 0
    %v520 = vsel %vm515, %v498, 0
    %522 = vmatpush.bf16.msra.mxu0 0
    %523 = vmatpush.bf16.msra.mxu0 0
    %524 = vmatpush.bf16.msra.mxu0 0
    %525 = vmatpush.bf16.msra.mxu0 0
    %526 = vmatpush.bf16.msra.mxu0 0
    %527 = vmatpush.bf16.msra.mxu0 0
    %528 = vmatpush.bf16.msra.mxu0 %v512
    %529 = vmatpush.bf16.msra.mxu0 %v511
    %530 = vmatmul.bf16.gmra.mxu0 %v517
    %v531 = vpop.f32.mrf.mxu0
    %v532 = vadd.f32 0.0, %v531
    %v533 = vpop.f32.mrf.mxu0
    %v534 = vadd.f32 0.0, %v533
    %535 = vmatmul.bf16.gmra.mxu0 %v520
    %v536 = vpop.f32.mrf.mxu0
    %v537 = vadd.f32 0.0, %v536
    %v538 = vpop.f32.mrf.mxu0
    %v539 = vadd.f32 0.0, %v538
    %540 = vdwg.mxu0
    %545 = vrot.lane.b32.xlu0 %v532, 64
    %v546 = vpop.permute.xlu0 %545
    %547 = vrot.lane.b32.xlu0 %v534, 64
    %v548 = vpop.permute.xlu0 %547
    %549 = vrot.lane.b32.xlu0 %v537, 64
    %v550 = vpop.permute.xlu0 %549
    %551 = vrot.lane.b32.xlu0 %v539, 64
    %v552 = vpop.permute.xlu0 %551
    %v557 = vpack.c.bf16 %v534, %v532
    %v558 = vpack.c.bf16 %v539, %v537
    %v559 = vpack.c.bf16 %v548, %v546
    %v560 = vpack.c.bf16 %v552, %v550
    %vm561 = vcmask 523264
    %v563 = vsel %vm561, %v250, 0
    %v566 = vsel %vm561, %v251, 0
    %v569 = vsel %vm561, %v252, 0
    %v572 = vsel %vm561, %v253, 0
    %v575 = vsel %vm561, %v254, 0
    %v578 = vsel %vm561, %v255, 0
    %v581 = vsel %vm561, %v256, 0
    %v584 = vsel %vm561, %v257, 0
    %586 = vmatpush.bf16.msra.mxu0 0
    %587 = vmatpush.bf16.msra.mxu0 0
    %588 = vmatpush.bf16.msra.mxu0 0
    %589 = vmatpush.bf16.msra.mxu0 0
    %590 = vmatpush.bf16.msra.mxu0 %v560
    %591 = vmatpush.bf16.msra.mxu0 %v559
    %592 = vmatpush.bf16.msra.mxu0 %v558
    %593 = vmatpush.bf16.msra.mxu0 %v557
    %594 = vmatmul.bf16.gmra.mxu0 %v563
    %v595 = vpop.f32.mrf.mxu0
    %v596 = vadd.f32 %v356, %v595
    %v597 = vpop.f32.mrf.mxu0
    %v598 = vadd.f32 %v358, %v597
    %599 = vmatmul.bf16.gmra.mxu0 %v566
    %v600 = vpop.f32.mrf.mxu0
    %v601 = vadd.f32 %v361, %v600
    %v602 = vpop.f32.mrf.mxu0
    %v603 = vadd.f32 %v363, %v602
    %604 = vmatmul.bf16.gmra.mxu0 %v569
    %v605 = vpop.f32.mrf.mxu0
    %v606 = vadd.f32 %v366, %v605
    %v607 = vpop.f32.mrf.mxu0
    %v608 = vadd.f32 %v368, %v607
    %609 = vmatmul.bf16.gmra.mxu0 %v572
    %v610 = vpop.f32.mrf.mxu0
    %v611 = vadd.f32 %v371, %v610
    %v612 = vpop.f32.mrf.mxu0
    %v613 = vadd.f32 %v373, %v612
    %614 = vmatmul.bf16.gmra.mxu0 %v575
    %v615 = vpop.f32.mrf.mxu0
    %v616 = vadd.f32 %v376, %v615
    %v617 = vpop.f32.mrf.mxu0
    %v618 = vadd.f32 %v378, %v617
    %619 = vmatmul.bf16.gmra.mxu0 %v578
    %v620 = vpop.f32.mrf.mxu0
    %v621 = vadd.f32 %v381, %v620
    %v622 = vpop.f32.mrf.mxu0
    %v623 = vadd.f32 %v383, %v622
    %624 = vmatmul.bf16.gmra.mxu0 %v581
    %v625 = vpop.f32.mrf.mxu0
    %v626 = vadd.f32 %v386, %v625
    %v627 = vpop.f32.mrf.mxu0
    %v628 = vadd.f32 %v388, %v627
    %629 = vmatmul.bf16.gmra.mxu0 %v584
    %v630 = vpop.f32.mrf.mxu0
    %v631 = vadd.f32 %v391, %v630
    %v632 = vpop.f32.mrf.mxu0
    %v633 = vadd.f32 %v393, %v632
    %634 = vdwg.mxu0
    %v635 = vsub.f32 0.0, %v596
    %v636 = vsub.f32 0.0, %v598
    %v637 = vsub.f32 0.0, %v601
    %v638 = vsub.f32 0.0, %v603
    %v639 = vsub.f32 0.0, %v606
    %v640 = vsub.f32 0.0, %v608
    %v641 = vsub.f32 0.0, %v611
    %v642 = vsub.f32 0.0, %v613
    %v643 = vsub.f32 0.0, %v616
    %v644 = vsub.f32 0.0, %v618
    %v645 = vsub.f32 0.0, %v621
    %v646 = vsub.f32 0.0, %v623
    %v647 = vsub.f32 0.0, %v626
    %v648 = vsub.f32 0.0, %v628
    %v649 = vsub.f32 0.0, %v631
    %v650 = vsub.f32 0.0, %v633
    %v651 = vmul.f32 %v635, 1.442695
    %v652 = vpow.pop %v651
    %v653 = vmul.f32 %v636, 1.442695
    %v654 = vpow.pop %v653
    %v655 = vmul.f32 %v637, 1.442695
    %v656 = vpow.pop %v655
    %v657 = vmul.f32 %v638, 1.442695
    %v658 = vpow.pop %v657
    %v659 = vmul.f32 %v639, 1.442695
    %v660 = vpow.pop %v659
    %v661 = vmul.f32 %v640, 1.442695
    %v662 = vpow.pop %v661
    %v663 = vmul.f32 %v641, 1.442695
    %v664 = vpow.pop %v663
    %v665 = vmul.f32 %v642, 1.442695
    %v666 = vpow.pop %v665
    %v667 = vmul.f32 %v643, 1.442695
    %v668 = vpow.pop %v667
    %v669 = vmul.f32 %v644, 1.442695
    %v670 = vpow.pop %v669
    %v671 = vmul.f32 %v645, 1.442695
    %v672 = vpow.pop %v671
    %v673 = vmul.f32 %v646, 1.442695
    %v674 = vpow.pop %v673
    %v675 = vmul.f32 %v647, 1.442695
    %v676 = vpow.pop %v675
    %v677 = vmul.f32 %v648, 1.442695
    %v678 = vpow.pop %v677
    %v679 = vmul.f32 %v649, 1.442695
    %v680 = vpow.pop %v679
    %v681 = vmul.f32 %v650, 1.442695
    %v682 = vpow.pop %v681
    %v683 = vadd.f32 %v652, 1.0
    %v684 = vadd.f32 %v654, 1.0
    %v685 = vadd.f32 %v656, 1.0
    %v686 = vadd.f32 %v658, 1.0
    %v687 = vadd.f32 %v660, 1.0
    %v688 = vadd.f32 %v662, 1.0
    %v689 = vadd.f32 %v664, 1.0
    %v690 = vadd.f32 %v666, 1.0
    %v691 = vadd.f32 %v668, 1.0
    %v692 = vadd.f32 %v670, 1.0
    %v693 = vadd.f32 %v672, 1.0
    %v694 = vadd.f32 %v674, 1.0
    %v695 = vadd.f32 %v676, 1.0
    %v696 = vadd.f32 %v678, 1.0
    %v697 = vadd.f32 %v680, 1.0
    %v698 = vadd.f32 %v682, 1.0
    %v699 = vrcp.pop %v683
    %v700 = vrcp.pop %v684
    %v701 = vrcp.pop %v685
    %v702 = vrcp.pop %v686
    %v703 = vrcp.pop %v687
    %v704 = vrcp.pop %v688
    %v705 = vrcp.pop %v689
    %v706 = vrcp.pop %v690
    %v707 = vrcp.pop %v691
    %v708 = vrcp.pop %v692
    %v709 = vrcp.pop %v693
    %v710 = vrcp.pop %v694
    %v711 = vrcp.pop %v695
    %v712 = vrcp.pop %v696
    %v713 = vrcp.pop %v697
    %v714 = vrcp.pop %v698
    %vm715 = vcmp.gt.f32.partialorder %v596, 20.0
    %vm716 = vcmp.gt.f32.partialorder %v598, 20.0
    %vm717 = vcmp.gt.f32.partialorder %v601, 20.0
    %vm718 = vcmp.gt.f32.partialorder %v603, 20.0
    %vm719 = vcmp.gt.f32.partialorder %v606, 20.0
    %vm720 = vcmp.gt.f32.partialorder %v608, 20.0
    %vm721 = vcmp.gt.f32.partialorder %v611, 20.0
    %vm722 = vcmp.gt.f32.partialorder %v613, 20.0
    %vm723 = vcmp.gt.f32.partialorder %v616, 20.0
    %vm724 = vcmp.gt.f32.partialorder %v618, 20.0
    %vm725 = vcmp.gt.f32.partialorder %v621, 20.0
    %vm726 = vcmp.gt.f32.partialorder %v623, 20.0
    %vm727 = vcmp.gt.f32.partialorder %v626, 20.0
    %vm728 = vcmp.gt.f32.partialorder %v628, 20.0
    %vm729 = vcmp.gt.f32.partialorder %v631, 20.0
    %vm730 = vcmp.gt.f32.partialorder %v633, 20.0
    %v731 = vmin.f32 %v596, 20.0
    %v732 = vmin.f32 %v598, 20.0
    %v733 = vmin.f32 %v601, 20.0
    %v734 = vmin.f32 %v603, 20.0
    %v735 = vmin.f32 %v606, 20.0
    %v736 = vmin.f32 %v608, 20.0
    %v737 = vmin.f32 %v611, 20.0
    %v738 = vmin.f32 %v613, 20.0
    %v739 = vmin.f32 %v616, 20.0
    %v740 = vmin.f32 %v618, 20.0
    %v741 = vmin.f32 %v621, 20.0
    %v742 = vmin.f32 %v623, 20.0
    %v743 = vmin.f32 %v626, 20.0
    %v744 = vmin.f32 %v628, 20.0
    %v745 = vmin.f32 %v631, 20.0
    %v746 = vmin.f32 %v633, 20.0
    %v747 = vmul.f32 %v731, 1.442695
    %v748 = vpow.pop %v747
    %v749 = vmul.f32 %v732, 1.442695
    %v750 = vpow.pop %v749
    %v751 = vmul.f32 %v733, 1.442695
    %v752 = vpow.pop %v751
    %v753 = vmul.f32 %v734, 1.442695
    %v754 = vpow.pop %v753
    %v755 = vmul.f32 %v735, 1.442695
    %v756 = vpow.pop %v755
    %v757 = vmul.f32 %v736, 1.442695
    %v758 = vpow.pop %v757
    %v759 = vmul.f32 %v737, 1.442695
    %v760 = vpow.pop %v759
    %v761 = vmul.f32 %v738, 1.442695
    %v762 = vpow.pop %v761
    %v763 = vmul.f32 %v739, 1.442695
    %v764 = vpow.pop %v763
    %v765 = vmul.f32 %v740, 1.442695
    %v766 = vpow.pop %v765
    %v767 = vmul.f32 %v741, 1.442695
    %v768 = vpow.pop %v767
    %v769 = vmul.f32 %v742, 1.442695
    %v770 = vpow.pop %v769
    %v771 = vmul.f32 %v743, 1.442695
    %v772 = vpow.pop %v771
    %v773 = vmul.f32 %v744, 1.442695
    %v774 = vpow.pop %v773
    %v775 = vmul.f32 %v745, 1.442695
    %v776 = vpow.pop %v775
    %v777 = vmul.f32 %v746, 1.442695
    %v778 = vpow.pop %v777
    %v779 = vadd.f32 %v748, 1.0
    %v780 = vlog2.pop %v779
    %v781 = vmul.f32 %v780, 0.6931472
    %v782 = vmul.f32 -0.5, %v748
    %v783 = vadd.f32 %v782, 1.0
    %v784 = vmul.f32 %v783, %v748
    %v785 = vand.u32 2147483647, %v748
    %vm786 = vcmp.lt.f32.partialorder %v785, 0.0004427343
    %v787 = vsel %vm786, %v784, %v781
    %v788 = vadd.f32 %v750, 1.0
    %v789 = vlog2.pop %v788
    %v790 = vmul.f32 %v789, 0.6931472
    %v791 = vmul.f32 -0.5, %v750
    %v792 = vadd.f32 %v791, 1.0
    %v793 = vmul.f32 %v792, %v750
    %v794 = vand.u32 2147483647, %v750
    %vm795 = vcmp.lt.f32.partialorder %v794, 0.0004427343
    %v796 = vsel %vm795, %v793, %v790
    %v797 = vadd.f32 %v752, 1.0
    %v798 = vlog2.pop %v797
    %v799 = vmul.f32 %v798, 0.6931472
    %v800 = vmul.f32 -0.5, %v752
    %v801 = vadd.f32 %v800, 1.0
    %v802 = vmul.f32 %v801, %v752
    %v803 = vand.u32 2147483647, %v752
    %vm804 = vcmp.lt.f32.partialorder %v803, 0.0004427343
    %v805 = vsel %vm804, %v802, %v799
    %v806 = vadd.f32 %v754, 1.0
    %v807 = vlog2.pop %v806
    %v808 = vmul.f32 %v807, 0.6931472
    %v809 = vmul.f32 -0.5, %v754
    %v810 = vadd.f32 %v809, 1.0
    %v811 = vmul.f32 %v810, %v754
    %v812 = vand.u32 2147483647, %v754
    %vm813 = vcmp.lt.f32.partialorder %v812, 0.0004427343
    %v814 = vsel %vm813, %v811, %v808
    %v815 = vadd.f32 %v756, 1.0
    %v816 = vlog2.pop %v815
    %v817 = vmul.f32 %v816, 0.6931472
    %v818 = vmul.f32 -0.5, %v756
    %v819 = vadd.f32 %v818, 1.0
    %v820 = vmul.f32 %v819, %v756
    %v821 = vand.u32 2147483647, %v756
    %vm822 = vcmp.lt.f32.partialorder %v821, 0.0004427343
    %v823 = vsel %vm822, %v820, %v817
    %v824 = vadd.f32 %v758, 1.0
    %v825 = vlog2.pop %v824
    %v826 = vmul.f32 %v825, 0.6931472
    %v827 = vmul.f32 -0.5, %v758
    %v828 = vadd.f32 %v827, 1.0
    %v829 = vmul.f32 %v828, %v758
    %v830 = vand.u32 2147483647, %v758
    %vm831 = vcmp.lt.f32.partialorder %v830, 0.0004427343
    %v832 = vsel %vm831, %v829, %v826
    %v833 = vadd.f32 %v760, 1.0
    %v834 = vlog2.pop %v833
    %v835 = vmul.f32 %v834, 0.6931472
    %v836 = vmul.f32 -0.5, %v760
    %v837 = vadd.f32 %v836, 1.0
    %v838 = vmul.f32 %v837, %v760
    %v839 = vand.u32 2147483647, %v760
    %vm840 = vcmp.lt.f32.partialorder %v839, 0.0004427343
    %v841 = vsel %vm840, %v838, %v835
    %v842 = vadd.f32 %v762, 1.0
    %v843 = vlog2.pop %v842
    %v844 = vmul.f32 %v843, 0.6931472
    %v845 = vmul.f32 -0.5, %v762
    %v846 = vadd.f32 %v845, 1.0
    %v847 = vmul.f32 %v846, %v762
    %v848 = vand.u32 2147483647, %v762
    %vm849 = vcmp.lt.f32.partialorder %v848, 0.0004427343
    %v850 = vsel %vm849, %v847, %v844
    %v851 = vadd.f32 %v764, 1.0
    %v852 = vlog2.pop %v851
    %v853 = vmul.f32 %v852, 0.6931472
    %v854 = vmul.f32 -0.5, %v764
    %v855 = vadd.f32 %v854, 1.0
    %v856 = vmul.f32 %v855, %v764
    %v857 = vand.u32 2147483647, %v764
    %vm858 = vcmp.lt.f32.partialorder %v857, 0.0004427343
    %v859 = vsel %vm858, %v856, %v853
    %v860 = vadd.f32 %v766, 1.0
    %v861 = vlog2.pop %v860
    %v862 = vmul.f32 %v861, 0.6931472
    %v863 = vmul.f32 -0.5, %v766
    %v864 = vadd.f32 %v863, 1.0
    %v865 = vmul.f32 %v864, %v766
    %v866 = vand.u32 2147483647, %v766
    %vm867 = vcmp.lt.f32.partialorder %v866, 0.0004427343
    %v868 = vsel %vm867, %v865, %v862
    %v869 = vadd.f32 %v768, 1.0
    %v870 = vlog2.pop %v869
    %v871 = vmul.f32 %v870, 0.6931472
    %v872 = vmul.f32 -0.5, %v768
    %v873 = vadd.f32 %v872, 1.0
    %v874 = vmul.f32 %v873, %v768
    %v875 = vand.u32 2147483647, %v768
    %vm876 = vcmp.lt.f32.partialorder %v875, 0.0004427343
    %v877 = vsel %vm876, %v874, %v871
    %v878 = vadd.f32 %v770, 1.0
    %v879 = vlog2.pop %v878
    %v880 = vmul.f32 %v879, 0.6931472
    %v881 = vmul.f32 -0.5, %v770
    %v882 = vadd.f32 %v881, 1.0
    %v883 = vmul.f32 %v882, %v770
    %v884 = vand.u32 2147483647, %v770
    %vm885 = vcmp.lt.f32.partialorder %v884, 0.0004427343
    %v886 = vsel %vm885, %v883, %v880
    %v887 = vadd.f32 %v772, 1.0
    %v888 = vlog2.pop %v887
    %v889 = vmul.f32 %v888, 0.6931472
    %v890 = vmul.f32 -0.5, %v772
    %v891 = vadd.f32 %v890, 1.0
    %v892 = vmul.f32 %v891, %v772
    %v893 = vand.u32 2147483647, %v772
    %vm894 = vcmp.lt.f32.partialorder %v893, 0.0004427343
    %v895 = vsel %vm894, %v892, %v889
    %v896 = vadd.f32 %v774, 1.0
    %v897 = vlog2.pop %v896
    %v898 = vmul.f32 %v897, 0.6931472
    %v899 = vmul.f32 -0.5, %v774
    %v900 = vadd.f32 %v899, 1.0
    %v901 = vmul.f32 %v900, %v774
    %v902 = vand.u32 2147483647, %v774
    %vm903 = vcmp.lt.f32.partialorder %v902, 0.0004427343
    %v904 = vsel %vm903, %v901, %v898
    %v905 = vadd.f32 %v776, 1.0
    %v906 = vlog2.pop %v905
    %v907 = vmul.f32 %v906, 0.6931472
    %v908 = vmul.f32 -0.5, %v776
    %v909 = vadd.f32 %v908, 1.0
    %v910 = vmul.f32 %v909, %v776
    %v911 = vand.u32 2147483647, %v776
    %vm912 = vcmp.lt.f32.partialorder %v911, 0.0004427343
    %v913 = vsel %vm912, %v910, %v907
    %v914 = vadd.f32 %v778, 1.0
    %v915 = vlog2.pop %v914
    %v916 = vmul.f32 %v915, 0.6931472
    %v917 = vmul.f32 -0.5, %v778
    %v918 = vadd.f32 %v917, 1.0
    %v919 = vmul.f32 %v918, %v778
    %v920 = vand.u32 2147483647, %v778
    %vm921 = vcmp.lt.f32.partialorder %v920, 0.0004427343
    %v922 = vsel %vm921, %v919, %v916
    %v923 = vsel %vm715, %v596, %v787
    %v924 = vsel %vm716, %v598, %v796
    %v925 = vsel %vm717, %v601, %v805
    %v926 = vsel %vm718, %v603, %v814
    %v927 = vsel %vm719, %v606, %v823
    %v928 = vsel %vm720, %v608, %v832
    %v929 = vsel %vm721, %v611, %v841
    %v930 = vsel %vm722, %v613, %v850
    %v931 = vsel %vm723, %v616, %v859
    %v932 = vsel %vm724, %v618, %v868
    %v933 = vsel %vm725, %v621, %v877
    %v934 = vsel %vm726, %v623, %v886
    %v935 = vsel %vm727, %v626, %v895
    %v936 = vsel %vm728, %v628, %v904
    %v937 = vsel %vm729, %v631, %v913
    %v938 = vsel %vm730, %v633, %v922
    %955 = vrot.lane.b32.xlu0 %v923, 96
    %v956 = vpop.permute.xlu0 %955
    %957 = vrot.lane.b32.xlu0 %v924, 96
    %v958 = vpop.permute.xlu0 %957
    %959 = vrot.lane.b32.xlu0 %v925, 96
    %v960 = vpop.permute.xlu0 %959
    %961 = vrot.lane.b32.xlu0 %v926, 96
    %v962 = vpop.permute.xlu0 %961
    %963 = vrot.lane.b32.xlu0 %v927, 96
    %v964 = vpop.permute.xlu0 %963
    %965 = vrot.lane.b32.xlu0 %v928, 96
    %v966 = vpop.permute.xlu0 %965
    %967 = vrot.lane.b32.xlu0 %v929, 96
    %v968 = vpop.permute.xlu0 %967
    %969 = vrot.lane.b32.xlu0 %v930, 96
    %v970 = vpop.permute.xlu0 %969
    %971 = vrot.lane.b32.xlu0 %v931, 96
    %v972 = vpop.permute.xlu0 %971
    %973 = vrot.lane.b32.xlu0 %v932, 96
    %v974 = vpop.permute.xlu0 %973
    %975 = vrot.lane.b32.xlu0 %v933, 96
    %v976 = vpop.permute.xlu0 %975
    %977 = vrot.lane.b32.xlu0 %v934, 96
    %v978 = vpop.permute.xlu0 %977
    %979 = vrot.lane.b32.xlu0 %v935, 96
    %v980 = vpop.permute.xlu0 %979
    %981 = vrot.lane.b32.xlu0 %v936, 96
    %v982 = vpop.permute.xlu0 %981
    %983 = vrot.lane.b32.xlu0 %v937, 96
    %v984 = vpop.permute.xlu0 %983
    %985 = vrot.lane.b32.xlu0 %v938, 96
    %v986 = vpop.permute.xlu0 %985
    %v1003 = vmul.f32 %v699, %v956
    %v1004 = vmul.f32 %v700, %v958
    %v1005 = vmul.f32 %v701, %v960
    %v1006 = vmul.f32 %v702, %v962
    %v1007 = vmul.f32 %v703, %v964
    %v1008 = vmul.f32 %v704, %v966
    %v1009 = vmul.f32 %v705, %v968
    %v1010 = vmul.f32 %v706, %v970
    %v1011 = vmul.f32 %v707, %v972
    %v1012 = vmul.f32 %v708, %v974
    %v1013 = vmul.f32 %v709, %v976
    %v1014 = vmul.f32 %v710, %v978
    %v1015 = vmul.f32 %v711, %v980
    %v1016 = vmul.f32 %v712, %v982
    %v1017 = vmul.f32 %v713, %v984
    %v1018 = vmul.f32 %v714, %v986
    %v1019 = vpack.c.bf16 %v1004, %v1003
    %v1020 = vpack.c.bf16 %v1006, %v1005
    %v1021 = vpack.c.bf16 %v1008, %v1007
    %v1022 = vpack.c.bf16 %v1010, %v1009
    %v1023 = vpack.c.bf16 %v1012, %v1011
    %v1024 = vpack.c.bf16 %v1014, %v1013
    %v1025 = vpack.c.bf16 %v1016, %v1015
    %v1026 = vpack.c.bf16 %v1018, %v1017
    %1027 = vmatpush.bf16.msra.mxu0 %v1026
    %1028 = vmatpush.bf16.msra.mxu0 %v1025
    %1029 = vmatpush.bf16.msra.mxu0 %v1024
    %1030 = vmatpush.bf16.msra.mxu0 %v1023
    %1031 = vmatpush.bf16.msra.mxu0 %v1022
    %1032 = vmatpush.bf16.msra.mxu0 %v1021
    %1033 = vmatpush.bf16.msra.mxu0 %v1020
    %1034 = vmatpush.bf16.msra.mxu0 %v1019
    %1035 = vmatmul.bf16.gmra.mxu0 %v277
    %v1036 = vpop.f32.mrf.mxu0
    %v1037 = vadd.f32 0.0, %v1036
    %v1038 = vpop.f32.mrf.mxu0
    %v1039 = vadd.f32 0.0, %v1038
    %1040 = vmatmul.bf16.gmra.mxu0 %v278
    %v1041 = vpop.f32.mrf.mxu0
    %v1042 = vadd.f32 0.0, %v1041
    %v1043 = vpop.f32.mrf.mxu0
    %v1044 = vadd.f32 0.0, %v1043
    %1045 = vdwg.mxu0
    %v1046 = vld [vmem:[%s9] sm:$0x1]
    %v1048 = vperm.slane %v1046, 0
    %v1050 = vmul.f32 %v1037, %v1048
    %v1051 = vmul.f32 %v1039, %v1048
    %v1052 = vmul.f32 %v1042, %v1048
    %v1053 = vmul.f32 %v1044, %v1048
    %v1054 = vld [vmem:[%s10] sm:$0x1]
    %v1056 = vperm.slane %v1054, 0
    %v1058 = vadd.f32 %v1050, %v1056
    %v1059 = vadd.f32 %v1051, %v1056
    %v1060 = vadd.f32 %v1052, %v1056
    %v1061 = vadd.f32 %v1053, %v1056
    %v1062 = vadd.f32 %v486, %v1058
    %v1063 = vadd.f32 %v489, %v1059
    %v1064 = vadd.f32 %v492, %v1060
    %v1065 = vadd.f32 %v495, %v1061
    %vm1066 = vcmp.gt.f32.partialorder %v1062, 20.0
    %vm1067 = vcmp.gt.f32.partialorder %v1063, 20.0
    %vm1068 = vcmp.gt.f32.partialorder %v1064, 20.0
    %vm1069 = vcmp.gt.f32.partialorder %v1065, 20.0
    %v1070 = vmin.f32 %v1062, 20.0
    %v1071 = vmin.f32 %v1063, 20.0
    %v1072 = vmin.f32 %v1064, 20.0
    %v1073 = vmin.f32 %v1065, 20.0
    %v1074 = vmul.f32 %v1070, 1.442695
    %v1075 = vpow.pop %v1074
    %v1076 = vmul.f32 %v1071, 1.442695
    %v1077 = vpow.pop %v1076
    %v1078 = vmul.f32 %v1072, 1.442695
    %v1079 = vpow.pop %v1078
    %v1080 = vmul.f32 %v1073, 1.442695
    %v1081 = vpow.pop %v1080
    %v1082 = vadd.f32 %v1075, 1.0
    %v1083 = vlog2.pop %v1082
    %v1084 = vmul.f32 %v1083, 0.6931472
    %v1085 = vmul.f32 -0.5, %v1075
    %v1086 = vadd.f32 %v1085, 1.0
    %v1087 = vmul.f32 %v1086, %v1075
    %v1088 = vand.u32 2147483647, %v1075
    %vm1089 = vcmp.lt.f32.partialorder %v1088, 0.0004427343
    %v1090 = vsel %vm1089, %v1087, %v1084
    %v1091 = vadd.f32 %v1077, 1.0
    %v1092 = vlog2.pop %v1091
    %v1093 = vmul.f32 %v1092, 0.6931472
    %v1094 = vmul.f32 -0.5, %v1077
    %v1095 = vadd.f32 %v1094, 1.0
    %v1096 = vmul.f32 %v1095, %v1077
    %v1097 = vand.u32 2147483647, %v1077
    %vm1098 = vcmp.lt.f32.partialorder %v1097, 0.0004427343
    %v1099 = vsel %vm1098, %v1096, %v1093
    %v1100 = vadd.f32 %v1079, 1.0
    %v1101 = vlog2.pop %v1100
    %v1102 = vmul.f32 %v1101, 0.6931472
    %v1103 = vmul.f32 -0.5, %v1079
    %v1104 = vadd.f32 %v1103, 1.0
    %v1105 = vmul.f32 %v1104, %v1079
    %v1106 = vand.u32 2147483647, %v1079
    %vm1107 = vcmp.lt.f32.partialorder %v1106, 0.0004427343
    %v1108 = vsel %vm1107, %v1105, %v1102
    %v1109 = vadd.f32 %v1081, 1.0
    %v1110 = vlog2.pop %v1109
    %v1111 = vmul.f32 %v1110, 0.6931472
    %v1112 = vmul.f32 -0.5, %v1081
    %v1113 = vadd.f32 %v1112, 1.0
    %v1114 = vmul.f32 %v1113, %v1081
    %v1115 = vand.u32 2147483647, %v1081
    %vm1116 = vcmp.lt.f32.partialorder %v1115, 0.0004427343
    %v1117 = vsel %vm1116, %v1114, %v1111
    %v1118 = vsel %vm1066, %v1062, %v1090
    %v1119 = vsel %vm1067, %v1063, %v1099
    %v1120 = vsel %vm1068, %v1064, %v1108
    %v1121 = vsel %vm1069, %v1065, %v1117
    %v1122 = vpack.c.bf16 %v1119, %v1118
    %v1123 = vpack.c.bf16 %v1121, %v1120
    %s1124 = scalar_lea.vmem %s6, 16
    %v1125 = vld [vmem:[%s1124] sm:$0xf]
    %v1126 = vld [vmem:[%s1124 + $0x4] sm:$0xf]
    %v1127 = vld [vmem:[%s1124 + $0x8] sm:$0xf]
    %v1128 = vld [vmem:[%s1124 + $0xc] sm:$0xf]
    %v1133 = vunpack.c.l.b16 %v1125
    %v1134 = vunpack.c.l.b16 %v1126
    %v1135 = vunpack.c.l.b16 %v1127
    %v1136 = vunpack.c.l.b16 %v1128
    %v1137 = vpack.c.b16 %v1134, %v1133
    %v1138 = vpack.c.b16 %v1136, %v1135
    %v1142 = vsel %vm515, %v1122, 0
    %v1145 = vsel %vm515, %v1123, 0
    %1147 = vmatpush.bf16.msra.mxu0 0
    %1148 = vmatpush.bf16.msra.mxu0 0
    %1149 = vmatpush.bf16.msra.mxu0 0
    %1150 = vmatpush.bf16.msra.mxu0 0
    %1151 = vmatpush.bf16.msra.mxu0 0
    %1152 = vmatpush.bf16.msra.mxu0 0
    %1153 = vmatpush.bf16.msra.mxu0 %v1138
    %1154 = vmatpush.bf16.msra.mxu0 %v1137
    %1155 = vmatmul.bf16.gmra.mxu0 %v1142
    %v1156 = vpop.f32.mrf.mxu0
    %v1157 = vadd.f32 0.0, %v1156
    %v1158 = vpop.f32.mrf.mxu0
    %v1159 = vadd.f32 0.0, %v1158
    %1160 = vmatmul.bf16.gmra.mxu0 %v1145
    %v1161 = vpop.f32.mrf.mxu0
    %v1162 = vadd.f32 0.0, %v1161
    %v1163 = vpop.f32.mrf.mxu0
    %v1164 = vadd.f32 0.0, %v1163
    %1165 = vdwg.mxu0
    %1170 = vrot.lane.b32.xlu0 %v1157, 64
    %v1171 = vpop.permute.xlu0 %1170
    %1172 = vrot.lane.b32.xlu0 %v1159, 64
    %v1173 = vpop.permute.xlu0 %1172
    %1174 = vrot.lane.b32.xlu0 %v1162, 64
    %v1175 = vpop.permute.xlu0 %1174
    %1176 = vrot.lane.b32.xlu0 %v1164, 64
    %v1177 = vpop.permute.xlu0 %1176
    %v1182 = vpack.c.bf16 %v1159, %v1157
    %v1183 = vpack.c.bf16 %v1164, %v1162
    %v1184 = vpack.c.bf16 %v1173, %v1171
    %v1185 = vpack.c.bf16 %v1177, %v1175
    %1202 = vrot.lane.b32.xlu0 %v356, 64
    %v1203 = vpop.permute.xlu0 %1202
    %1204 = vrot.lane.b32.xlu0 %v358, 64
    %v1205 = vpop.permute.xlu0 %1204
    %1206 = vrot.lane.b32.xlu0 %v361, 64
    %v1207 = vpop.permute.xlu0 %1206
    %1208 = vrot.lane.b32.xlu0 %v363, 64
    %v1209 = vpop.permute.xlu0 %1208
    %1210 = vrot.lane.b32.xlu0 %v366, 64
    %v1211 = vpop.permute.xlu0 %1210
    %1212 = vrot.lane.b32.xlu0 %v368, 64
    %v1213 = vpop.permute.xlu0 %1212
    %1214 = vrot.lane.b32.xlu0 %v371, 64
    %v1215 = vpop.permute.xlu0 %1214
    %1216 = vrot.lane.b32.xlu0 %v373, 64
    %v1217 = vpop.permute.xlu0 %1216
    %1218 = vrot.lane.b32.xlu0 %v376, 64
    %v1219 = vpop.permute.xlu0 %1218
    %1220 = vrot.lane.b32.xlu0 %v378, 64
    %v1221 = vpop.permute.xlu0 %1220
    %1222 = vrot.lane.b32.xlu0 %v381, 64
    %v1223 = vpop.permute.xlu0 %1222
    %1224 = vrot.lane.b32.xlu0 %v383, 64
    %v1225 = vpop.permute.xlu0 %1224
    %1226 = vrot.lane.b32.xlu0 %v386, 64
    %v1227 = vpop.permute.xlu0 %1226
    %1228 = vrot.lane.b32.xlu0 %v388, 64
    %v1229 = vpop.permute.xlu0 %1228
    %1230 = vrot.lane.b32.xlu0 %v391, 64
    %v1231 = vpop.permute.xlu0 %1230
    %1232 = vrot.lane.b32.xlu0 %v393, 64
    %v1233 = vpop.permute.xlu0 %1232
    %1250 = vmatpush.bf16.msra.mxu0 0
    %1251 = vmatpush.bf16.msra.mxu0 0
    %1252 = vmatpush.bf16.msra.mxu0 0
    %1253 = vmatpush.bf16.msra.mxu0 0
    %1254 = vmatpush.bf16.msra.mxu0 %v1185
    %1255 = vmatpush.bf16.msra.mxu0 %v1184
    %1256 = vmatpush.bf16.msra.mxu0 %v1183
    %1257 = vmatpush.bf16.msra.mxu0 %v1182
    %1258 = vmatmul.bf16.gmra.mxu0 %v563
    %v1259 = vpop.f32.mrf.mxu0
    %v1260 = vadd.f32 %v1203, %v1259
    %v1261 = vpop.f32.mrf.mxu0
    %v1262 = vadd.f32 %v1205, %v1261
    %1263 = vmatmul.bf16.gmra.mxu0 %v566
    %v1264 = vpop.f32.mrf.mxu0
    %v1265 = vadd.f32 %v1207, %v1264
    %v1266 = vpop.f32.mrf.mxu0
    %v1267 = vadd.f32 %v1209, %v1266
    %1268 = vmatmul.bf16.gmra.mxu0 %v569
    %v1269 = vpop.f32.mrf.mxu0
    %v1270 = vadd.f32 %v1211, %v1269
    %v1271 = vpop.f32.mrf.mxu0
    %v1272 = vadd.f32 %v1213, %v1271
    %1273 = vmatmul.bf16.gmra.mxu0 %v572
    %v1274 = vpop.f32.mrf.mxu0
    %v1275 = vadd.f32 %v1215, %v1274
    %v1276 = vpop.f32.mrf.mxu0
    %v1277 = vadd.f32 %v1217, %v1276
    %1278 = vmatmul.bf16.gmra.mxu0 %v575
    %v1279 = vpop.f32.mrf.mxu0
    %v1280 = vadd.f32 %v1219, %v1279
    %v1281 = vpop.f32.mrf.mxu0
    %v1282 = vadd.f32 %v1221, %v1281
    %1283 = vmatmul.bf16.gmra.mxu0 %v578
    %v1284 = vpop.f32.mrf.mxu0
    %v1285 = vadd.f32 %v1223, %v1284
    %v1286 = vpop.f32.mrf.mxu0
    %v1287 = vadd.f32 %v1225, %v1286
    %1288 = vmatmul.bf16.gmra.mxu0 %v581
    %v1289 = vpop.f32.mrf.mxu0
    %v1290 = vadd.f32 %v1227, %v1289
    %v1291 = vpop.f32.mrf.mxu0
    %v1292 = vadd.f32 %v1229, %v1291
    %1293 = vmatmul.bf16.gmra.mxu0 %v584
    %v1294 = vpop.f32.mrf.mxu0
    %v1295 = vadd.f32 %v1231, %v1294
    %v1296 = vpop.f32.mrf.mxu0
    %v1297 = vadd.f32 %v1233, %v1296
    %1298 = vdwg.mxu0
    %v1299 = vsub.f32 0.0, %v1260
    %v1300 = vsub.f32 0.0, %v1262
    %v1301 = vsub.f32 0.0, %v1265
    %v1302 = vsub.f32 0.0, %v1267
    %v1303 = vsub.f32 0.0, %v1270
    %v1304 = vsub.f32 0.0, %v1272
    %v1305 = vsub.f32 0.0, %v1275
    %v1306 = vsub.f32 0.0, %v1277
    %v1307 = vsub.f32 0.0, %v1280
    %v1308 = vsub.f32 0.0, %v1282
    %v1309 = vsub.f32 0.0, %v1285
    %v1310 = vsub.f32 0.0, %v1287
    %v1311 = vsub.f32 0.0, %v1290
    %v1312 = vsub.f32 0.0, %v1292
    %v1313 = vsub.f32 0.0, %v1295
    %v1314 = vsub.f32 0.0, %v1297
    %v1315 = vmul.f32 %v1299, 1.442695
    %v1316 = vpow.pop %v1315
    %v1317 = vmul.f32 %v1300, 1.442695
    %v1318 = vpow.pop %v1317
    %v1319 = vmul.f32 %v1301, 1.442695
    %v1320 = vpow.pop %v1319
    %v1321 = vmul.f32 %v1302, 1.442695
    %v1322 = vpow.pop %v1321
    %v1323 = vmul.f32 %v1303, 1.442695
    %v1324 = vpow.pop %v1323
    %v1325 = vmul.f32 %v1304, 1.442695
    %v1326 = vpow.pop %v1325
    %v1327 = vmul.f32 %v1305, 1.442695
    %v1328 = vpow.pop %v1327
    %v1329 = vmul.f32 %v1306, 1.442695
    %v1330 = vpow.pop %v1329
    %v1331 = vmul.f32 %v1307, 1.442695
    %v1332 = vpow.pop %v1331
    %v1333 = vmul.f32 %v1308, 1.442695
    %v1334 = vpow.pop %v1333
    %v1335 = vmul.f32 %v1309, 1.442695
    %v1336 = vpow.pop %v1335
    %v1337 = vmul.f32 %v1310, 1.442695
    %v1338 = vpow.pop %v1337
    %v1339 = vmul.f32 %v1311, 1.442695
    %v1340 = vpow.pop %v1339
    %v1341 = vmul.f32 %v1312, 1.442695
    %v1342 = vpow.pop %v1341
    %v1343 = vmul.f32 %v1313, 1.442695
    %v1344 = vpow.pop %v1343
    %v1345 = vmul.f32 %v1314, 1.442695
    %v1346 = vpow.pop %v1345
    %v1347 = vadd.f32 %v1316, 1.0
    %v1348 = vadd.f32 %v1318, 1.0
    %v1349 = vadd.f32 %v1320, 1.0
    %v1350 = vadd.f32 %v1322, 1.0
    %v1351 = vadd.f32 %v1324, 1.0
    %v1352 = vadd.f32 %v1326, 1.0
    %v1353 = vadd.f32 %v1328, 1.0
    %v1354 = vadd.f32 %v1330, 1.0
    %v1355 = vadd.f32 %v1332, 1.0
    %v1356 = vadd.f32 %v1334, 1.0
    %v1357 = vadd.f32 %v1336, 1.0
    %v1358 = vadd.f32 %v1338, 1.0
    %v1359 = vadd.f32 %v1340, 1.0
    %v1360 = vadd.f32 %v1342, 1.0
    %v1361 = vadd.f32 %v1344, 1.0
    %v1362 = vadd.f32 %v1346, 1.0
    %v1363 = vrcp.pop %v1347
    %v1364 = vrcp.pop %v1348
    %v1365 = vrcp.pop %v1349
    %v1366 = vrcp.pop %v1350
    %v1367 = vrcp.pop %v1351
    %v1368 = vrcp.pop %v1352
    %v1369 = vrcp.pop %v1353
    %v1370 = vrcp.pop %v1354
    %v1371 = vrcp.pop %v1355
    %v1372 = vrcp.pop %v1356
    %v1373 = vrcp.pop %v1357
    %v1374 = vrcp.pop %v1358
    %v1375 = vrcp.pop %v1359
    %v1376 = vrcp.pop %v1360
    %v1377 = vrcp.pop %v1361
    %v1378 = vrcp.pop %v1362
    %vm1379 = vcmp.gt.f32.partialorder %v1260, 20.0
    %vm1380 = vcmp.gt.f32.partialorder %v1262, 20.0
    %vm1381 = vcmp.gt.f32.partialorder %v1265, 20.0
    %vm1382 = vcmp.gt.f32.partialorder %v1267, 20.0
    %vm1383 = vcmp.gt.f32.partialorder %v1270, 20.0
    %vm1384 = vcmp.gt.f32.partialorder %v1272, 20.0
    %vm1385 = vcmp.gt.f32.partialorder %v1275, 20.0
    %vm1386 = vcmp.gt.f32.partialorder %v1277, 20.0
    %vm1387 = vcmp.gt.f32.partialorder %v1280, 20.0
    %vm1388 = vcmp.gt.f32.partialorder %v1282, 20.0
    %vm1389 = vcmp.gt.f32.partialorder %v1285, 20.0
    %vm1390 = vcmp.gt.f32.partialorder %v1287, 20.0
    %vm1391 = vcmp.gt.f32.partialorder %v1290, 20.0
    %vm1392 = vcmp.gt.f32.partialorder %v1292, 20.0
    %vm1393 = vcmp.gt.f32.partialorder %v1295, 20.0
    %vm1394 = vcmp.gt.f32.partialorder %v1297, 20.0
    %v1395 = vmin.f32 %v1260, 20.0
    %v1396 = vmin.f32 %v1262, 20.0
    %v1397 = vmin.f32 %v1265, 20.0
    %v1398 = vmin.f32 %v1267, 20.0
    %v1399 = vmin.f32 %v1270, 20.0
    %v1400 = vmin.f32 %v1272, 20.0
    %v1401 = vmin.f32 %v1275, 20.0
    %v1402 = vmin.f32 %v1277, 20.0
    %v1403 = vmin.f32 %v1280, 20.0
    %v1404 = vmin.f32 %v1282, 20.0
    %v1405 = vmin.f32 %v1285, 20.0
    %v1406 = vmin.f32 %v1287, 20.0
    %v1407 = vmin.f32 %v1290, 20.0
    %v1408 = vmin.f32 %v1292, 20.0
    %v1409 = vmin.f32 %v1295, 20.0
    %v1410 = vmin.f32 %v1297, 20.0
    %v1411 = vmul.f32 %v1395, 1.442695
    %v1412 = vpow.pop %v1411
    %v1413 = vmul.f32 %v1396, 1.442695
    %v1414 = vpow.pop %v1413
    %v1415 = vmul.f32 %v1397, 1.442695
    %v1416 = vpow.pop %v1415
    %v1417 = vmul.f32 %v1398, 1.442695
    %v1418 = vpow.pop %v1417
    %v1419 = vmul.f32 %v1399, 1.442695
    %v1420 = vpow.pop %v1419
    %v1421 = vmul.f32 %v1400, 1.442695
    %v1422 = vpow.pop %v1421
    %v1423 = vmul.f32 %v1401, 1.442695
    %v1424 = vpow.pop %v1423
    %v1425 = vmul.f32 %v1402, 1.442695
    %v1426 = vpow.pop %v1425
    %v1427 = vmul.f32 %v1403, 1.442695
    %v1428 = vpow.pop %v1427
    %v1429 = vmul.f32 %v1404, 1.442695
    %v1430 = vpow.pop %v1429
    %v1431 = vmul.f32 %v1405, 1.442695
    %v1432 = vpow.pop %v1431
    %v1433 = vmul.f32 %v1406, 1.442695
    %v1434 = vpow.pop %v1433
    %v1435 = vmul.f32 %v1407, 1.442695
    %v1436 = vpow.pop %v1435
    %v1437 = vmul.f32 %v1408, 1.442695
    %v1438 = vpow.pop %v1437
    %v1439 = vmul.f32 %v1409, 1.442695
    %v1440 = vpow.pop %v1439
    %v1441 = vmul.f32 %v1410, 1.442695
    %v1442 = vpow.pop %v1441
    %v1443 = vadd.f32 %v1412, 1.0
    %v1444 = vlog2.pop %v1443
    %v1445 = vmul.f32 %v1444, 0.6931472
    %v1446 = vmul.f32 -0.5, %v1412
    %v1447 = vadd.f32 %v1446, 1.0
    %v1448 = vmul.f32 %v1447, %v1412
    %v1449 = vand.u32 2147483647, %v1412
    %vm1450 = vcmp.lt.f32.partialorder %v1449, 0.0004427343
    %v1451 = vsel %vm1450, %v1448, %v1445
    %v1452 = vadd.f32 %v1414, 1.0
    %v1453 = vlog2.pop %v1452
    %v1454 = vmul.f32 %v1453, 0.6931472
    %v1455 = vmul.f32 -0.5, %v1414
    %v1456 = vadd.f32 %v1455, 1.0
    %v1457 = vmul.f32 %v1456, %v1414
    %v1458 = vand.u32 2147483647, %v1414
    %vm1459 = vcmp.lt.f32.partialorder %v1458, 0.0004427343
    %v1460 = vsel %vm1459, %v1457, %v1454
    %v1461 = vadd.f32 %v1416, 1.0
    %v1462 = vlog2.pop %v1461
    %v1463 = vmul.f32 %v1462, 0.6931472
    %v1464 = vmul.f32 -0.5, %v1416
    %v1465 = vadd.f32 %v1464, 1.0
    %v1466 = vmul.f32 %v1465, %v1416
    %v1467 = vand.u32 2147483647, %v1416
    %vm1468 = vcmp.lt.f32.partialorder %v1467, 0.0004427343
    %v1469 = vsel %vm1468, %v1466, %v1463
    %v1470 = vadd.f32 %v1418, 1.0
    %v1471 = vlog2.pop %v1470
    %v1472 = vmul.f32 %v1471, 0.6931472
    %v1473 = vmul.f32 -0.5, %v1418
    %v1474 = vadd.f32 %v1473, 1.0
    %v1475 = vmul.f32 %v1474, %v1418
    %v1476 = vand.u32 2147483647, %v1418
    %vm1477 = vcmp.lt.f32.partialorder %v1476, 0.0004427343
    %v1478 = vsel %vm1477, %v1475, %v1472
    %v1479 = vadd.f32 %v1420, 1.0
    %v1480 = vlog2.pop %v1479
    %v1481 = vmul.f32 %v1480, 0.6931472
    %v1482 = vmul.f32 -0.5, %v1420
    %v1483 = vadd.f32 %v1482, 1.0
    %v1484 = vmul.f32 %v1483, %v1420
    %v1485 = vand.u32 2147483647, %v1420
    %vm1486 = vcmp.lt.f32.partialorder %v1485, 0.0004427343
    %v1487 = vsel %vm1486, %v1484, %v1481
    %v1488 = vadd.f32 %v1422, 1.0
    %v1489 = vlog2.pop %v1488
    %v1490 = vmul.f32 %v1489, 0.6931472
    %v1491 = vmul.f32 -0.5, %v1422
    %v1492 = vadd.f32 %v1491, 1.0
    %v1493 = vmul.f32 %v1492, %v1422
    %v1494 = vand.u32 2147483647, %v1422
    %vm1495 = vcmp.lt.f32.partialorder %v1494, 0.0004427343
    %v1496 = vsel %vm1495, %v1493, %v1490
    %v1497 = vadd.f32 %v1424, 1.0
    %v1498 = vlog2.pop %v1497
    %v1499 = vmul.f32 %v1498, 0.6931472
    %v1500 = vmul.f32 -0.5, %v1424
    %v1501 = vadd.f32 %v1500, 1.0
    %v1502 = vmul.f32 %v1501, %v1424
    %v1503 = vand.u32 2147483647, %v1424
    %vm1504 = vcmp.lt.f32.partialorder %v1503, 0.0004427343
    %v1505 = vsel %vm1504, %v1502, %v1499
    %v1506 = vadd.f32 %v1426, 1.0
    %v1507 = vlog2.pop %v1506
    %v1508 = vmul.f32 %v1507, 0.6931472
    %v1509 = vmul.f32 -0.5, %v1426
    %v1510 = vadd.f32 %v1509, 1.0
    %v1511 = vmul.f32 %v1510, %v1426
    %v1512 = vand.u32 2147483647, %v1426
    %vm1513 = vcmp.lt.f32.partialorder %v1512, 0.0004427343
    %v1514 = vsel %vm1513, %v1511, %v1508
    %v1515 = vadd.f32 %v1428, 1.0
    %v1516 = vlog2.pop %v1515
    %v1517 = vmul.f32 %v1516, 0.6931472
    %v1518 = vmul.f32 -0.5, %v1428
    %v1519 = vadd.f32 %v1518, 1.0
    %v1520 = vmul.f32 %v1519, %v1428
    %v1521 = vand.u32 2147483647, %v1428
    %vm1522 = vcmp.lt.f32.partialorder %v1521, 0.0004427343
    %v1523 = vsel %vm1522, %v1520, %v1517
    %v1524 = vadd.f32 %v1430, 1.0
    %v1525 = vlog2.pop %v1524
    %v1526 = vmul.f32 %v1525, 0.6931472
    %v1527 = vmul.f32 -0.5, %v1430
    %v1528 = vadd.f32 %v1527, 1.0
    %v1529 = vmul.f32 %v1528, %v1430
    %v1530 = vand.u32 2147483647, %v1430
    %vm1531 = vcmp.lt.f32.partialorder %v1530, 0.0004427343
    %v1532 = vsel %vm1531, %v1529, %v1526
    %v1533 = vadd.f32 %v1432, 1.0
    %v1534 = vlog2.pop %v1533
    %v1535 = vmul.f32 %v1534, 0.6931472
    %v1536 = vmul.f32 -0.5, %v1432
    %v1537 = vadd.f32 %v1536, 1.0
    %v1538 = vmul.f32 %v1537, %v1432
    %v1539 = vand.u32 2147483647, %v1432
    %vm1540 = vcmp.lt.f32.partialorder %v1539, 0.0004427343
    %v1541 = vsel %vm1540, %v1538, %v1535
    %v1542 = vadd.f32 %v1434, 1.0
    %v1543 = vlog2.pop %v1542
    %v1544 = vmul.f32 %v1543, 0.6931472
    %v1545 = vmul.f32 -0.5, %v1434
    %v1546 = vadd.f32 %v1545, 1.0
    %v1547 = vmul.f32 %v1546, %v1434
    %v1548 = vand.u32 2147483647, %v1434
    %vm1549 = vcmp.lt.f32.partialorder %v1548, 0.0004427343
    %v1550 = vsel %vm1549, %v1547, %v1544
    %v1551 = vadd.f32 %v1436, 1.0
    %v1552 = vlog2.pop %v1551
    %v1553 = vmul.f32 %v1552, 0.6931472
    %v1554 = vmul.f32 -0.5, %v1436
    %v1555 = vadd.f32 %v1554, 1.0
    %v1556 = vmul.f32 %v1555, %v1436
    %v1557 = vand.u32 2147483647, %v1436
    %vm1558 = vcmp.lt.f32.partialorder %v1557, 0.0004427343
    %v1559 = vsel %vm1558, %v1556, %v1553
    %v1560 = vadd.f32 %v1438, 1.0
    %v1561 = vlog2.pop %v1560
    %v1562 = vmul.f32 %v1561, 0.6931472
    %v1563 = vmul.f32 -0.5, %v1438
    %v1564 = vadd.f32 %v1563, 1.0
    %v1565 = vmul.f32 %v1564, %v1438
    %v1566 = vand.u32 2147483647, %v1438
    %vm1567 = vcmp.lt.f32.partialorder %v1566, 0.0004427343
    %v1568 = vsel %vm1567, %v1565, %v1562
    %v1569 = vadd.f32 %v1440, 1.0
    %v1570 = vlog2.pop %v1569
    %v1571 = vmul.f32 %v1570, 0.6931472
    %v1572 = vmul.f32 -0.5, %v1440
    %v1573 = vadd.f32 %v1572, 1.0
    %v1574 = vmul.f32 %v1573, %v1440
    %v1575 = vand.u32 2147483647, %v1440
    %vm1576 = vcmp.lt.f32.partialorder %v1575, 0.0004427343
    %v1577 = vsel %vm1576, %v1574, %v1571
    %v1578 = vadd.f32 %v1442, 1.0
    %v1579 = vlog2.pop %v1578
    %v1580 = vmul.f32 %v1579, 0.6931472
    %v1581 = vmul.f32 -0.5, %v1442
    %v1582 = vadd.f32 %v1581, 1.0
    %v1583 = vmul.f32 %v1582, %v1442
    %v1584 = vand.u32 2147483647, %v1442
    %vm1585 = vcmp.lt.f32.partialorder %v1584, 0.0004427343
    %v1586 = vsel %vm1585, %v1583, %v1580
    %v1587 = vsel %vm1379, %v1260, %v1451
    %v1588 = vsel %vm1380, %v1262, %v1460
    %v1589 = vsel %vm1381, %v1265, %v1469
    %v1590 = vsel %vm1382, %v1267, %v1478
    %v1591 = vsel %vm1383, %v1270, %v1487
    %v1592 = vsel %vm1384, %v1272, %v1496
    %v1593 = vsel %vm1385, %v1275, %v1505
    %v1594 = vsel %vm1386, %v1277, %v1514
    %v1595 = vsel %vm1387, %v1280, %v1523
    %v1596 = vsel %vm1388, %v1282, %v1532
    %v1597 = vsel %vm1389, %v1285, %v1541
    %v1598 = vsel %vm1390, %v1287, %v1550
    %v1599 = vsel %vm1391, %v1290, %v1559
    %v1600 = vsel %vm1392, %v1292, %v1568
    %v1601 = vsel %vm1393, %v1295, %v1577
    %v1602 = vsel %vm1394, %v1297, %v1586
    %1619 = vrot.lane.b32.xlu0 %v1587, 96
    %v1620 = vpop.permute.xlu0 %1619
    %1621 = vrot.lane.b32.xlu0 %v1588, 96
    %v1622 = vpop.permute.xlu0 %1621
    %1623 = vrot.lane.b32.xlu0 %v1589, 96
    %v1624 = vpop.permute.xlu0 %1623
    %1625 = vrot.lane.b32.xlu0 %v1590, 96
    %v1626 = vpop.permute.xlu0 %1625
    %1627 = vrot.lane.b32.xlu0 %v1591, 96
    %v1628 = vpop.permute.xlu0 %1627
    %1629 = vrot.lane.b32.xlu0 %v1592, 96
    %v1630 = vpop.permute.xlu0 %1629
    %1631 = vrot.lane.b32.xlu0 %v1593, 96
    %v1632 = vpop.permute.xlu0 %1631
    %1633 = vrot.lane.b32.xlu0 %v1594, 96
    %v1634 = vpop.permute.xlu0 %1633
    %1635 = vrot.lane.b32.xlu0 %v1595, 96
    %v1636 = vpop.permute.xlu0 %1635
    %1637 = vrot.lane.b32.xlu0 %v1596, 96
    %v1638 = vpop.permute.xlu0 %1637
    %1639 = vrot.lane.b32.xlu0 %v1597, 96
    %v1640 = vpop.permute.xlu0 %1639
    %1641 = vrot.lane.b32.xlu0 %v1598, 96
    %v1642 = vpop.permute.xlu0 %1641
    %1643 = vrot.lane.b32.xlu0 %v1599, 96
    %v1644 = vpop.permute.xlu0 %1643
    %1645 = vrot.lane.b32.xlu0 %v1600, 96
    %v1646 = vpop.permute.xlu0 %1645
    %1647 = vrot.lane.b32.xlu0 %v1601, 96
    %v1648 = vpop.permute.xlu0 %1647
    %1649 = vrot.lane.b32.xlu0 %v1602, 96
    %v1650 = vpop.permute.xlu0 %1649
    %v1667 = vmul.f32 %v1363, %v1620
    %v1668 = vmul.f32 %v1364, %v1622
    %v1669 = vmul.f32 %v1365, %v1624
    %v1670 = vmul.f32 %v1366, %v1626
    %v1671 = vmul.f32 %v1367, %v1628
    %v1672 = vmul.f32 %v1368, %v1630
    %v1673 = vmul.f32 %v1369, %v1632
    %v1674 = vmul.f32 %v1370, %v1634
    %v1675 = vmul.f32 %v1371, %v1636
    %v1676 = vmul.f32 %v1372, %v1638
    %v1677 = vmul.f32 %v1373, %v1640
    %v1678 = vmul.f32 %v1374, %v1642
    %v1679 = vmul.f32 %v1375, %v1644
    %v1680 = vmul.f32 %v1376, %v1646
    %v1681 = vmul.f32 %v1377, %v1648
    %v1682 = vmul.f32 %v1378, %v1650
    %v1683 = vpack.c.bf16 %v1668, %v1667
    %v1684 = vpack.c.bf16 %v1670, %v1669
    %v1685 = vpack.c.bf16 %v1672, %v1671
    %v1686 = vpack.c.bf16 %v1674, %v1673
    %v1687 = vpack.c.bf16 %v1676, %v1675
    %v1688 = vpack.c.bf16 %v1678, %v1677
    %v1689 = vpack.c.bf16 %v1680, %v1679
    %v1690 = vpack.c.bf16 %v1682, %v1681
    %1691 = vmatpush.bf16.msra.mxu0 %v1690
    %1692 = vmatpush.bf16.msra.mxu0 %v1689
    %1693 = vmatpush.bf16.msra.mxu0 %v1688
    %1694 = vmatpush.bf16.msra.mxu0 %v1687
    %1695 = vmatpush.bf16.msra.mxu0 %v1686
    %1696 = vmatpush.bf16.msra.mxu0 %v1685
    %1697 = vmatpush.bf16.msra.mxu0 %v1684
    %1698 = vmatpush.bf16.msra.mxu0 %v1683
    %1699 = vmatmul.bf16.gmra.mxu0 %v277
    %v1700 = vpop.f32.mrf.mxu0
    %v1701 = vadd.f32 0.0, %v1700
    %v1702 = vpop.f32.mrf.mxu0
    %v1703 = vadd.f32 0.0, %v1702
    %1704 = vmatmul.bf16.gmra.mxu0 %v278
    %v1705 = vpop.f32.mrf.mxu0
    %v1706 = vadd.f32 0.0, %v1705
    %v1707 = vpop.f32.mrf.mxu0
    %v1708 = vadd.f32 0.0, %v1707
    %1709 = vdwg.mxu0
    %s1710 = scalar_lea.vmem %s9, 1
    %v1711 = vld [vmem:[%s1710] sm:$0x1]
    %v1713 = vperm.slane %v1711, 0
    %v1715 = vmul.f32 %v1701, %v1713
    %v1716 = vmul.f32 %v1703, %v1713
    %v1717 = vmul.f32 %v1706, %v1713
    %v1718 = vmul.f32 %v1708, %v1713
    %s1719 = scalar_lea.vmem %s10, 1
    %v1720 = vld [vmem:[%s1719] sm:$0x1]
    %v1722 = vperm.slane %v1720, 0
    %v1724 = vadd.f32 %v1715, %v1722
    %v1725 = vadd.f32 %v1716, %v1722
    %v1726 = vadd.f32 %v1717, %v1722
    %v1727 = vadd.f32 %v1718, %v1722
    %v1728 = vadd.f32 %v1118, %v1724
    %v1729 = vadd.f32 %v1119, %v1725
    %v1730 = vadd.f32 %v1120, %v1726
    %v1731 = vadd.f32 %v1121, %v1727
    %vm1732 = vcmp.gt.f32.partialorder %v1728, 20.0
    %vm1733 = vcmp.gt.f32.partialorder %v1729, 20.0
    %vm1734 = vcmp.gt.f32.partialorder %v1730, 20.0
    %vm1735 = vcmp.gt.f32.partialorder %v1731, 20.0
    %v1736 = vmin.f32 %v1728, 20.0
    %v1737 = vmin.f32 %v1729, 20.0
    %v1738 = vmin.f32 %v1730, 20.0
    %v1739 = vmin.f32 %v1731, 20.0
    %v1740 = vmul.f32 %v1736, 1.442695
    %v1741 = vpow.pop %v1740
    %v1742 = vmul.f32 %v1737, 1.442695
    %v1743 = vpow.pop %v1742
    %v1744 = vmul.f32 %v1738, 1.442695
    %v1745 = vpow.pop %v1744
    %v1746 = vmul.f32 %v1739, 1.442695
    %v1747 = vpow.pop %v1746
    %v1748 = vadd.f32 %v1741, 1.0
    %v1749 = vlog2.pop %v1748
    %v1750 = vmul.f32 %v1749, 0.6931472
    %v1751 = vmul.f32 -0.5, %v1741
    %v1752 = vadd.f32 %v1751, 1.0
    %v1753 = vmul.f32 %v1752, %v1741
    %v1754 = vand.u32 2147483647, %v1741
    %vm1755 = vcmp.lt.f32.partialorder %v1754, 0.0004427343
    %v1756 = vsel %vm1755, %v1753, %v1750
    %v1757 = vadd.f32 %v1743, 1.0
    %v1758 = vlog2.pop %v1757
    %v1759 = vmul.f32 %v1758, 0.6931472
    %v1760 = vmul.f32 -0.5, %v1743
    %v1761 = vadd.f32 %v1760, 1.0
    %v1762 = vmul.f32 %v1761, %v1743
    %v1763 = vand.u32 2147483647, %v1743
    %vm1764 = vcmp.lt.f32.partialorder %v1763, 0.0004427343
    %v1765 = vsel %vm1764, %v1762, %v1759
    %v1766 = vadd.f32 %v1745, 1.0
    %v1767 = vlog2.pop %v1766
    %v1768 = vmul.f32 %v1767, 0.6931472
    %v1769 = vmul.f32 -0.5, %v1745
    %v1770 = vadd.f32 %v1769, 1.0
    %v1771 = vmul.f32 %v1770, %v1745
    %v1772 = vand.u32 2147483647, %v1745
    %vm1773 = vcmp.lt.f32.partialorder %v1772, 0.0004427343
    %v1774 = vsel %vm1773, %v1771, %v1768
    %v1775 = vadd.f32 %v1747, 1.0
    %v1776 = vlog2.pop %v1775
    %v1777 = vmul.f32 %v1776, 0.6931472
    %v1778 = vmul.f32 -0.5, %v1747
    %v1779 = vadd.f32 %v1778, 1.0
    %v1780 = vmul.f32 %v1779, %v1747
    %v1781 = vand.u32 2147483647, %v1747
    %vm1782 = vcmp.lt.f32.partialorder %v1781, 0.0004427343
    %v1783 = vsel %vm1782, %v1780, %v1777
    %v1784 = vsel %vm1732, %v1728, %v1756
    %v1785 = vsel %vm1733, %v1729, %v1765
    %v1786 = vsel %vm1734, %v1730, %v1774
    %v1787 = vsel %vm1735, %v1731, %v1783
    %v1788 = vpack.c.bf16 %v1785, %v1784
    %v1789 = vpack.c.bf16 %v1787, %v1786
    %s1790 = scalar_lea.vmem %s6, 32
    %v1791 = vld [vmem:[%s1790] sm:$0xf]
    %v1792 = vld [vmem:[%s1790 + $0x4] sm:$0xf]
    %v1793 = vld [vmem:[%s1790 + $0x8] sm:$0xf]
    %v1794 = vld [vmem:[%s1790 + $0xc] sm:$0xf]
    %v1799 = vunpack.c.l.b16 %v1791
    %v1800 = vunpack.c.l.b16 %v1792
    %v1801 = vunpack.c.l.b16 %v1793
    %v1802 = vunpack.c.l.b16 %v1794
    %v1803 = vpack.c.b16 %v1800, %v1799
    %v1804 = vpack.c.b16 %v1802, %v1801
    %v1808 = vsel %vm515, %v1788, 0
    %v1811 = vsel %vm515, %v1789, 0
    %1813 = vmatpush.bf16.msra.mxu0 0
    %1814 = vmatpush.bf16.msra.mxu0 0
    %1815 = vmatpush.bf16.msra.mxu0 0
    %1816 = vmatpush.bf16.msra.mxu0 0
    %1817 = vmatpush.bf16.msra.mxu0 0
    %1818 = vmatpush.bf16.msra.mxu0 0
    %1819 = vmatpush.bf16.msra.mxu0 %v1804
    %1820 = vmatpush.bf16.msra.mxu0 %v1803
    %1821 = vmatmul.bf16.gmra.mxu0 %v1808
    %v1822 = vpop.f32.mrf.mxu0
    %v1823 = vadd.f32 0.0, %v1822
    %v1824 = vpop.f32.mrf.mxu0
    %v1825 = vadd.f32 0.0, %v1824
    %1826 = vmatmul.bf16.gmra.mxu0 %v1811
    %v1827 = vpop.f32.mrf.mxu0
    %v1828 = vadd.f32 0.0, %v1827
    %v1829 = vpop.f32.mrf.mxu0
    %v1830 = vadd.f32 0.0, %v1829
    %1831 = vdwg.mxu0
    %1836 = vrot.lane.b32.xlu0 %v1823, 64
    %v1837 = vpop.permute.xlu0 %1836
    %1838 = vrot.lane.b32.xlu0 %v1825, 64
    %v1839 = vpop.permute.xlu0 %1838
    %1840 = vrot.lane.b32.xlu0 %v1828, 64
    %v1841 = vpop.permute.xlu0 %1840
    %1842 = vrot.lane.b32.xlu0 %v1830, 64
    %v1843 = vpop.permute.xlu0 %1842
    %v1848 = vpack.c.bf16 %v1825, %v1823
    %v1849 = vpack.c.bf16 %v1830, %v1828
    %v1850 = vpack.c.bf16 %v1839, %v1837
    %v1851 = vpack.c.bf16 %v1843, %v1841
    %1852 = vmatpush.bf16.msra.mxu0 0
    %1853 = vmatpush.bf16.msra.mxu0 0
    %1854 = vmatpush.bf16.msra.mxu0 0
    %1855 = vmatpush.bf16.msra.mxu0 0
    %1856 = vmatpush.bf16.msra.mxu0 %v1851
    %1857 = vmatpush.bf16.msra.mxu0 %v1850
    %1858 = vmatpush.bf16.msra.mxu0 %v1849
    %1859 = vmatpush.bf16.msra.mxu0 %v1848
    %1860 = vmatmul.bf16.gmra.mxu0 %v563
    %v1861 = vpop.f32.mrf.mxu0
    %v1862 = vadd.f32 %v405, %v1861
    %v1863 = vpop.f32.mrf.mxu0
    %v1864 = vadd.f32 %v407, %v1863
    %1865 = vmatmul.bf16.gmra.mxu0 %v566
    %v1866 = vpop.f32.mrf.mxu0
    %v1867 = vadd.f32 %v410, %v1866
    %v1868 = vpop.f32.mrf.mxu0
    %v1869 = vadd.f32 %v412, %v1868
    %1870 = vmatmul.bf16.gmra.mxu0 %v569
    %v1871 = vpop.f32.mrf.mxu0
    %v1872 = vadd.f32 %v415, %v1871
    %v1873 = vpop.f32.mrf.mxu0
    %v1874 = vadd.f32 %v417, %v1873
    %1875 = vmatmul.bf16.gmra.mxu0 %v572
    %v1876 = vpop.f32.mrf.mxu0
    %v1877 = vadd.f32 %v420, %v1876
    %v1878 = vpop.f32.mrf.mxu0
    %v1879 = vadd.f32 %v422, %v1878
    %1880 = vmatmul.bf16.gmra.mxu0 %v575
    %v1881 = vpop.f32.mrf.mxu0
    %v1882 = vadd.f32 %v425, %v1881
    %v1883 = vpop.f32.mrf.mxu0
    %v1884 = vadd.f32 %v427, %v1883
    %1885 = vmatmul.bf16.gmra.mxu0 %v578
    %v1886 = vpop.f32.mrf.mxu0
    %v1887 = vadd.f32 %v430, %v1886
    %v1888 = vpop.f32.mrf.mxu0
    %v1889 = vadd.f32 %v432, %v1888
    %1890 = vmatmul.bf16.gmra.mxu0 %v581
    %v1891 = vpop.f32.mrf.mxu0
    %v1892 = vadd.f32 %v435, %v1891
    %v1893 = vpop.f32.mrf.mxu0
    %v1894 = vadd.f32 %v437, %v1893
    %1895 = vmatmul.bf16.gmra.mxu0 %v584
    %v1896 = vpop.f32.mrf.mxu0
    %v1897 = vadd.f32 %v440, %v1896
    %v1898 = vpop.f32.mrf.mxu0
    %v1899 = vadd.f32 %v442, %v1898
    %1900 = vdwg.mxu0
    %v1901 = vsub.f32 0.0, %v1862
    %v1902 = vsub.f32 0.0, %v1864
    %v1903 = vsub.f32 0.0, %v1867
    %v1904 = vsub.f32 0.0, %v1869
    %v1905 = vsub.f32 0.0, %v1872
    %v1906 = vsub.f32 0.0, %v1874
    %v1907 = vsub.f32 0.0, %v1877
    %v1908 = vsub.f32 0.0, %v1879
    %v1909 = vsub.f32 0.0, %v1882
    %v1910 = vsub.f32 0.0, %v1884
    %v1911 = vsub.f32 0.0, %v1887
    %v1912 = vsub.f32 0.0, %v1889
    %v1913 = vsub.f32 0.0, %v1892
    %v1914 = vsub.f32 0.0, %v1894
    %v1915 = vsub.f32 0.0, %v1897
    %v1916 = vsub.f32 0.0, %v1899
    %v1917 = vmul.f32 %v1901, 1.442695
    %v1918 = vpow.pop %v1917
    %v1919 = vmul.f32 %v1902, 1.442695
    %v1920 = vpow.pop %v1919
    %v1921 = vmul.f32 %v1903, 1.442695
    %v1922 = vpow.pop %v1921
    %v1923 = vmul.f32 %v1904, 1.442695
    %v1924 = vpow.pop %v1923
    %v1925 = vmul.f32 %v1905, 1.442695
    %v1926 = vpow.pop %v1925
    %v1927 = vmul.f32 %v1906, 1.442695
    %v1928 = vpow.pop %v1927
    %v1929 = vmul.f32 %v1907, 1.442695
    %v1930 = vpow.pop %v1929
    %v1931 = vmul.f32 %v1908, 1.442695
    %v1932 = vpow.pop %v1931
    %v1933 = vmul.f32 %v1909, 1.442695
    %v1934 = vpow.pop %v1933
    %v1935 = vmul.f32 %v1910, 1.442695
    %v1936 = vpow.pop %v1935
    %v1937 = vmul.f32 %v1911, 1.442695
    %v1938 = vpow.pop %v1937
    %v1939 = vmul.f32 %v1912, 1.442695
    %v1940 = vpow.pop %v1939
    %v1941 = vmul.f32 %v1913, 1.442695
    %v1942 = vpow.pop %v1941
    %v1943 = vmul.f32 %v1914, 1.442695
    %v1944 = vpow.pop %v1943
    %v1945 = vmul.f32 %v1915, 1.442695
    %v1946 = vpow.pop %v1945
    %v1947 = vmul.f32 %v1916, 1.442695
    %v1948 = vpow.pop %v1947
    %v1949 = vadd.f32 %v1918, 1.0
    %v1950 = vadd.f32 %v1920, 1.0
    %v1951 = vadd.f32 %v1922, 1.0
    %v1952 = vadd.f32 %v1924, 1.0
    %v1953 = vadd.f32 %v1926, 1.0
    %v1954 = vadd.f32 %v1928, 1.0
    %v1955 = vadd.f32 %v1930, 1.0
    %v1956 = vadd.f32 %v1932, 1.0
    %v1957 = vadd.f32 %v1934, 1.0
    %v1958 = vadd.f32 %v1936, 1.0
    %v1959 = vadd.f32 %v1938, 1.0
    %v1960 = vadd.f32 %v1940, 1.0
    %v1961 = vadd.f32 %v1942, 1.0
    %v1962 = vadd.f32 %v1944, 1.0
    %v1963 = vadd.f32 %v1946, 1.0
    %v1964 = vadd.f32 %v1948, 1.0
    %v1965 = vrcp.pop %v1949
    %v1966 = vrcp.pop %v1950
    %v1967 = vrcp.pop %v1951
    %v1968 = vrcp.pop %v1952
    %v1969 = vrcp.pop %v1953
    %v1970 = vrcp.pop %v1954
    %v1971 = vrcp.pop %v1955
    %v1972 = vrcp.pop %v1956
    %v1973 = vrcp.pop %v1957
    %v1974 = vrcp.pop %v1958
    %v1975 = vrcp.pop %v1959
    %v1976 = vrcp.pop %v1960
    %v1977 = vrcp.pop %v1961
    %v1978 = vrcp.pop %v1962
    %v1979 = vrcp.pop %v1963
    %v1980 = vrcp.pop %v1964
    %vm1981 = vcmp.gt.f32.partialorder %v1862, 20.0
    %vm1982 = vcmp.gt.f32.partialorder %v1864, 20.0
    %vm1983 = vcmp.gt.f32.partialorder %v1867, 20.0
    %vm1984 = vcmp.gt.f32.partialorder %v1869, 20.0
    %vm1985 = vcmp.gt.f32.partialorder %v1872, 20.0
    %vm1986 = vcmp.gt.f32.partialorder %v1874, 20.0
    %vm1987 = vcmp.gt.f32.partialorder %v1877, 20.0
    %vm1988 = vcmp.gt.f32.partialorder %v1879, 20.0
    %vm1989 = vcmp.gt.f32.partialorder %v1882, 20.0
    %vm1990 = vcmp.gt.f32.partialorder %v1884, 20.0
    %vm1991 = vcmp.gt.f32.partialorder %v1887, 20.0
    %vm1992 = vcmp.gt.f32.partialorder %v1889, 20.0
    %vm1993 = vcmp.gt.f32.partialorder %v1892, 20.0
    %vm1994 = vcmp.gt.f32.partialorder %v1894, 20.0
    %vm1995 = vcmp.gt.f32.partialorder %v1897, 20.0
    %vm1996 = vcmp.gt.f32.partialorder %v1899, 20.0
    %v1997 = vmin.f32 %v1862, 20.0
    %v1998 = vmin.f32 %v1864, 20.0
    %v1999 = vmin.f32 %v1867, 20.0
    %v2000 = vmin.f32 %v1869, 20.0
    %v2001 = vmin.f32 %v1872, 20.0
    %v2002 = vmin.f32 %v1874, 20.0
    %v2003 = vmin.f32 %v1877, 20.0
    %v2004 = vmin.f32 %v1879, 20.0
    %v2005 = vmin.f32 %v1882, 20.0
    %v2006 = vmin.f32 %v1884, 20.0
    %v2007 = vmin.f32 %v1887, 20.0
    %v2008 = vmin.f32 %v1889, 20.0
    %v2009 = vmin.f32 %v1892, 20.0
    %v2010 = vmin.f32 %v1894, 20.0
    %v2011 = vmin.f32 %v1897, 20.0
    %v2012 = vmin.f32 %v1899, 20.0
    %v2013 = vmul.f32 %v1997, 1.442695
    %v2014 = vpow.pop %v2013
    %v2015 = vmul.f32 %v1998, 1.442695
    %v2016 = vpow.pop %v2015
    %v2017 = vmul.f32 %v1999, 1.442695
    %v2018 = vpow.pop %v2017
    %v2019 = vmul.f32 %v2000, 1.442695
    %v2020 = vpow.pop %v2019
    %v2021 = vmul.f32 %v2001, 1.442695
    %v2022 = vpow.pop %v2021
    %v2023 = vmul.f32 %v2002, 1.442695
    %v2024 = vpow.pop %v2023
    %v2025 = vmul.f32 %v2003, 1.442695
    %v2026 = vpow.pop %v2025
    %v2027 = vmul.f32 %v2004, 1.442695
    %v2028 = vpow.pop %v2027
    %v2029 = vmul.f32 %v2005, 1.442695
    %v2030 = vpow.pop %v2029
    %v2031 = vmul.f32 %v2006, 1.442695
    %v2032 = vpow.pop %v2031
    %v2033 = vmul.f32 %v2007, 1.442695
    %v2034 = vpow.pop %v2033
    %v2035 = vmul.f32 %v2008, 1.442695
    %v2036 = vpow.pop %v2035
    %v2037 = vmul.f32 %v2009, 1.442695
    %v2038 = vpow.pop %v2037
    %v2039 = vmul.f32 %v2010, 1.442695
    %v2040 = vpow.pop %v2039
    %v2041 = vmul.f32 %v2011, 1.442695
    %v2042 = vpow.pop %v2041
    %v2043 = vmul.f32 %v2012, 1.442695
    %v2044 = vpow.pop %v2043
    %v2045 = vadd.f32 %v2014, 1.0
    %v2046 = vlog2.pop %v2045
    %v2047 = vmul.f32 %v2046, 0.6931472
    %v2048 = vmul.f32 -0.5, %v2014
    %v2049 = vadd.f32 %v2048, 1.0
    %v2050 = vmul.f32 %v2049, %v2014
    %v2051 = vand.u32 2147483647, %v2014
    %vm2052 = vcmp.lt.f32.partialorder %v2051, 0.0004427343
    %v2053 = vsel %vm2052, %v2050, %v2047
    %v2054 = vadd.f32 %v2016, 1.0
    %v2055 = vlog2.pop %v2054
    %v2056 = vmul.f32 %v2055, 0.6931472
    %v2057 = vmul.f32 -0.5, %v2016
    %v2058 = vadd.f32 %v2057, 1.0
    %v2059 = vmul.f32 %v2058, %v2016
    %v2060 = vand.u32 2147483647, %v2016
    %vm2061 = vcmp.lt.f32.partialorder %v2060, 0.0004427343
    %v2062 = vsel %vm2061, %v2059, %v2056
    %v2063 = vadd.f32 %v2018, 1.0
    %v2064 = vlog2.pop %v2063
    %v2065 = vmul.f32 %v2064, 0.6931472
    %v2066 = vmul.f32 -0.5, %v2018
    %v2067 = vadd.f32 %v2066, 1.0
    %v2068 = vmul.f32 %v2067, %v2018
    %v2069 = vand.u32 2147483647, %v2018
    %vm2070 = vcmp.lt.f32.partialorder %v2069, 0.0004427343
    %v2071 = vsel %vm2070, %v2068, %v2065
    %v2072 = vadd.f32 %v2020, 1.0
    %v2073 = vlog2.pop %v2072
    %v2074 = vmul.f32 %v2073, 0.6931472
    %v2075 = vmul.f32 -0.5, %v2020
    %v2076 = vadd.f32 %v2075, 1.0
    %v2077 = vmul.f32 %v2076, %v2020
    %v2078 = vand.u32 2147483647, %v2020
    %vm2079 = vcmp.lt.f32.partialorder %v2078, 0.0004427343
    %v2080 = vsel %vm2079, %v2077, %v2074
    %v2081 = vadd.f32 %v2022, 1.0
    %v2082 = vlog2.pop %v2081
    %v2083 = vmul.f32 %v2082, 0.6931472
    %v2084 = vmul.f32 -0.5, %v2022
    %v2085 = vadd.f32 %v2084, 1.0
    %v2086 = vmul.f32 %v2085, %v2022
    %v2087 = vand.u32 2147483647, %v2022
    %vm2088 = vcmp.lt.f32.partialorder %v2087, 0.0004427343
    %v2089 = vsel %vm2088, %v2086, %v2083
    %v2090 = vadd.f32 %v2024, 1.0
    %v2091 = vlog2.pop %v2090
    %v2092 = vmul.f32 %v2091, 0.6931472
    %v2093 = vmul.f32 -0.5, %v2024
    %v2094 = vadd.f32 %v2093, 1.0
    %v2095 = vmul.f32 %v2094, %v2024
    %v2096 = vand.u32 2147483647, %v2024
    %vm2097 = vcmp.lt.f32.partialorder %v2096, 0.0004427343
    %v2098 = vsel %vm2097, %v2095, %v2092
    %v2099 = vadd.f32 %v2026, 1.0
    %v2100 = vlog2.pop %v2099
    %v2101 = vmul.f32 %v2100, 0.6931472
    %v2102 = vmul.f32 -0.5, %v2026
    %v2103 = vadd.f32 %v2102, 1.0
    %v2104 = vmul.f32 %v2103, %v2026
    %v2105 = vand.u32 2147483647, %v2026
    %vm2106 = vcmp.lt.f32.partialorder %v2105, 0.0004427343
    %v2107 = vsel %vm2106, %v2104, %v2101
    %v2108 = vadd.f32 %v2028, 1.0
    %v2109 = vlog2.pop %v2108
    %v2110 = vmul.f32 %v2109, 0.6931472
    %v2111 = vmul.f32 -0.5, %v2028
    %v2112 = vadd.f32 %v2111, 1.0
    %v2113 = vmul.f32 %v2112, %v2028
    %v2114 = vand.u32 2147483647, %v2028
    %vm2115 = vcmp.lt.f32.partialorder %v2114, 0.0004427343
    %v2116 = vsel %vm2115, %v2113, %v2110
    %v2117 = vadd.f32 %v2030, 1.0
    %v2118 = vlog2.pop %v2117
    %v2119 = vmul.f32 %v2118, 0.6931472
    %v2120 = vmul.f32 -0.5, %v2030
    %v2121 = vadd.f32 %v2120, 1.0
    %v2122 = vmul.f32 %v2121, %v2030
    %v2123 = vand.u32 2147483647, %v2030
    %vm2124 = vcmp.lt.f32.partialorder %v2123, 0.0004427343
    %v2125 = vsel %vm2124, %v2122, %v2119
    %v2126 = vadd.f32 %v2032, 1.0
    %v2127 = vlog2.pop %v2126
    %v2128 = vmul.f32 %v2127, 0.6931472
    %v2129 = vmul.f32 -0.5, %v2032
    %v2130 = vadd.f32 %v2129, 1.0
    %v2131 = vmul.f32 %v2130, %v2032
    %v2132 = vand.u32 2147483647, %v2032
    %vm2133 = vcmp.lt.f32.partialorder %v2132, 0.0004427343
    %v2134 = vsel %vm2133, %v2131, %v2128
    %v2135 = vadd.f32 %v2034, 1.0
    %v2136 = vlog2.pop %v2135
    %v2137 = vmul.f32 %v2136, 0.6931472
    %v2138 = vmul.f32 -0.5, %v2034
    %v2139 = vadd.f32 %v2138, 1.0
    %v2140 = vmul.f32 %v2139, %v2034
    %v2141 = vand.u32 2147483647, %v2034
    %vm2142 = vcmp.lt.f32.partialorder %v2141, 0.0004427343
    %v2143 = vsel %vm2142, %v2140, %v2137
    %v2144 = vadd.f32 %v2036, 1.0
    %v2145 = vlog2.pop %v2144
    %v2146 = vmul.f32 %v2145, 0.6931472
    %v2147 = vmul.f32 -0.5, %v2036
    %v2148 = vadd.f32 %v2147, 1.0
    %v2149 = vmul.f32 %v2148, %v2036
    %v2150 = vand.u32 2147483647, %v2036
    %vm2151 = vcmp.lt.f32.partialorder %v2150, 0.0004427343
    %v2152 = vsel %vm2151, %v2149, %v2146
    %v2153 = vadd.f32 %v2038, 1.0
    %v2154 = vlog2.pop %v2153
    %v2155 = vmul.f32 %v2154, 0.6931472
    %v2156 = vmul.f32 -0.5, %v2038
    %v2157 = vadd.f32 %v2156, 1.0
    %v2158 = vmul.f32 %v2157, %v2038
    %v2159 = vand.u32 2147483647, %v2038
    %vm2160 = vcmp.lt.f32.partialorder %v2159, 0.0004427343
    %v2161 = vsel %vm2160, %v2158, %v2155
    %v2162 = vadd.f32 %v2040, 1.0
    %v2163 = vlog2.pop %v2162
    %v2164 = vmul.f32 %v2163, 0.6931472
    %v2165 = vmul.f32 -0.5, %v2040
    %v2166 = vadd.f32 %v2165, 1.0
    %v2167 = vmul.f32 %v2166, %v2040
    %v2168 = vand.u32 2147483647, %v2040
    %vm2169 = vcmp.lt.f32.partialorder %v2168, 0.0004427343
    %v2170 = vsel %vm2169, %v2167, %v2164
    %v2171 = vadd.f32 %v2042, 1.0
    %v2172 = vlog2.pop %v2171
    %v2173 = vmul.f32 %v2172, 0.6931472
    %v2174 = vmul.f32 -0.5, %v2042
    %v2175 = vadd.f32 %v2174, 1.0
    %v2176 = vmul.f32 %v2175, %v2042
    %v2177 = vand.u32 2147483647, %v2042
    %vm2178 = vcmp.lt.f32.partialorder %v2177, 0.0004427343
    %v2179 = vsel %vm2178, %v2176, %v2173
    %v2180 = vadd.f32 %v2044, 1.0
    %v2181 = vlog2.pop %v2180
    %v2182 = vmul.f32 %v2181, 0.6931472
    %v2183 = vmul.f32 -0.5, %v2044
    %v2184 = vadd.f32 %v2183, 1.0
    %v2185 = vmul.f32 %v2184, %v2044
    %v2186 = vand.u32 2147483647, %v2044
    %vm2187 = vcmp.lt.f32.partialorder %v2186, 0.0004427343
    %v2188 = vsel %vm2187, %v2185, %v2182
    %v2189 = vsel %vm1981, %v1862, %v2053
    %v2190 = vsel %vm1982, %v1864, %v2062
    %v2191 = vsel %vm1983, %v1867, %v2071
    %v2192 = vsel %vm1984, %v1869, %v2080
    %v2193 = vsel %vm1985, %v1872, %v2089
    %v2194 = vsel %vm1986, %v1874, %v2098
    %v2195 = vsel %vm1987, %v1877, %v2107
    %v2196 = vsel %vm1988, %v1879, %v2116
    %v2197 = vsel %vm1989, %v1882, %v2125
    %v2198 = vsel %vm1990, %v1884, %v2134
    %v2199 = vsel %vm1991, %v1887, %v2143
    %v2200 = vsel %vm1992, %v1889, %v2152
    %v2201 = vsel %vm1993, %v1892, %v2161
    %v2202 = vsel %vm1994, %v1894, %v2170
    %v2203 = vsel %vm1995, %v1897, %v2179
    %v2204 = vsel %vm1996, %v1899, %v2188
    %2221 = vrot.lane.b32.xlu0 %v2189, 96
    %v2222 = vpop.permute.xlu0 %2221
    %2223 = vrot.lane.b32.xlu0 %v2190, 96
    %v2224 = vpop.permute.xlu0 %2223
    %2225 = vrot.lane.b32.xlu0 %v2191, 96
    %v2226 = vpop.permute.xlu0 %2225
    %2227 = vrot.lane.b32.xlu0 %v2192, 96
    %v2228 = vpop.permute.xlu0 %2227
    %2229 = vrot.lane.b32.xlu0 %v2193, 96
    %v2230 = vpop.permute.xlu0 %2229
    %2231 = vrot.lane.b32.xlu0 %v2194, 96
    %v2232 = vpop.permute.xlu0 %2231
    %2233 = vrot.lane.b32.xlu0 %v2195, 96
    %v2234 = vpop.permute.xlu0 %2233
    %2235 = vrot.lane.b32.xlu0 %v2196, 96
    %v2236 = vpop.permute.xlu0 %2235
    %2237 = vrot.lane.b32.xlu0 %v2197, 96
    %v2238 = vpop.permute.xlu0 %2237
    %2239 = vrot.lane.b32.xlu0 %v2198, 96
    %v2240 = vpop.permute.xlu0 %2239
    %2241 = vrot.lane.b32.xlu0 %v2199, 96
    %v2242 = vpop.permute.xlu0 %2241
    %2243 = vrot.lane.b32.xlu0 %v2200, 96
    %v2244 = vpop.permute.xlu0 %2243
    %2245 = vrot.lane.b32.xlu0 %v2201, 96
    %v2246 = vpop.permute.xlu0 %2245
    %2247 = vrot.lane.b32.xlu0 %v2202, 96
    %v2248 = vpop.permute.xlu0 %2247
    %2249 = vrot.lane.b32.xlu0 %v2203, 96
    %v2250 = vpop.permute.xlu0 %2249
    %2251 = vrot.lane.b32.xlu0 %v2204, 96
    %v2252 = vpop.permute.xlu0 %2251
    %v2269 = vmul.f32 %v1965, %v2222
    %v2270 = vmul.f32 %v1966, %v2224
    %v2271 = vmul.f32 %v1967, %v2226
    %v2272 = vmul.f32 %v1968, %v2228
    %v2273 = vmul.f32 %v1969, %v2230
    %v2274 = vmul.f32 %v1970, %v2232
    %v2275 = vmul.f32 %v1971, %v2234
    %v2276 = vmul.f32 %v1972, %v2236
    %v2277 = vmul.f32 %v1973, %v2238
    %v2278 = vmul.f32 %v1974, %v2240
    %v2279 = vmul.f32 %v1975, %v2242
    %v2280 = vmul.f32 %v1976, %v2244
    %v2281 = vmul.f32 %v1977, %v2246
    %v2282 = vmul.f32 %v1978, %v2248
    %v2283 = vmul.f32 %v1979, %v2250
    %v2284 = vmul.f32 %v1980, %v2252
    %v2285 = vpack.c.bf16 %v2270, %v2269
    %v2286 = vpack.c.bf16 %v2272, %v2271
    %v2287 = vpack.c.bf16 %v2274, %v2273
    %v2288 = vpack.c.bf16 %v2276, %v2275
    %v2289 = vpack.c.bf16 %v2278, %v2277
    %v2290 = vpack.c.bf16 %v2280, %v2279
    %v2291 = vpack.c.bf16 %v2282, %v2281
    %v2292 = vpack.c.bf16 %v2284, %v2283
    %2293 = vmatpush.bf16.msra.mxu0 %v2292
    %2294 = vmatpush.bf16.msra.mxu0 %v2291
    %2295 = vmatpush.bf16.msra.mxu0 %v2290
    %2296 = vmatpush.bf16.msra.mxu0 %v2289
    %2297 = vmatpush.bf16.msra.mxu0 %v2288
    %2298 = vmatpush.bf16.msra.mxu0 %v2287
    %2299 = vmatpush.bf16.msra.mxu0 %v2286
    %2300 = vmatpush.bf16.msra.mxu0 %v2285
    %2301 = vmatmul.bf16.gmra.mxu0 %v277
    %v2302 = vpop.f32.mrf.mxu0
    %v2303 = vadd.f32 0.0, %v2302
    %v2304 = vpop.f32.mrf.mxu0
    %v2305 = vadd.f32 0.0, %v2304
    %2306 = vmatmul.bf16.gmra.mxu0 %v278
    %v2307 = vpop.f32.mrf.mxu0
    %v2308 = vadd.f32 0.0, %v2307
    %v2309 = vpop.f32.mrf.mxu0
    %v2310 = vadd.f32 0.0, %v2309
    %2311 = vdwg.mxu0
    %s2312 = scalar_lea.vmem %s9, 2
    %v2313 = vld [vmem:[%s2312] sm:$0x1]
    %v2315 = vperm.slane %v2313, 0
    %v2317 = vmul.f32 %v2303, %v2315
    %v2318 = vmul.f32 %v2305, %v2315
    %v2319 = vmul.f32 %v2308, %v2315
    %v2320 = vmul.f32 %v2310, %v2315
    %s2321 = scalar_lea.vmem %s10, 2
    %v2322 = vld [vmem:[%s2321] sm:$0x1]
    %v2324 = vperm.slane %v2322, 0
    %v2326 = vadd.f32 %v2317, %v2324
    %v2327 = vadd.f32 %v2318, %v2324
    %v2328 = vadd.f32 %v2319, %v2324
    %v2329 = vadd.f32 %v2320, %v2324
    %v2330 = vadd.f32 %v1784, %v2326
    %v2331 = vadd.f32 %v1785, %v2327
    %v2332 = vadd.f32 %v1786, %v2328
    %v2333 = vadd.f32 %v1787, %v2329
    %vm2334 = vcmp.gt.f32.partialorder %v2330, 20.0
    %vm2335 = vcmp.gt.f32.partialorder %v2331, 20.0
    %vm2336 = vcmp.gt.f32.partialorder %v2332, 20.0
    %vm2337 = vcmp.gt.f32.partialorder %v2333, 20.0
    %v2338 = vmin.f32 %v2330, 20.0
    %v2339 = vmin.f32 %v2331, 20.0
    %v2340 = vmin.f32 %v2332, 20.0
    %v2341 = vmin.f32 %v2333, 20.0
    %v2342 = vmul.f32 %v2338, 1.442695
    %v2343 = vpow.pop %v2342
    %v2344 = vmul.f32 %v2339, 1.442695
    %v2345 = vpow.pop %v2344
    %v2346 = vmul.f32 %v2340, 1.442695
    %v2347 = vpow.pop %v2346
    %v2348 = vmul.f32 %v2341, 1.442695
    %v2349 = vpow.pop %v2348
    %v2350 = vadd.f32 %v2343, 1.0
    %v2351 = vlog2.pop %v2350
    %v2352 = vmul.f32 %v2351, 0.6931472
    %v2353 = vmul.f32 -0.5, %v2343
    %v2354 = vadd.f32 %v2353, 1.0
    %v2355 = vmul.f32 %v2354, %v2343
    %v2356 = vand.u32 2147483647, %v2343
    %vm2357 = vcmp.lt.f32.partialorder %v2356, 0.0004427343
    %v2358 = vsel %vm2357, %v2355, %v2352
    %v2359 = vadd.f32 %v2345, 1.0
    %v2360 = vlog2.pop %v2359
    %v2361 = vmul.f32 %v2360, 0.6931472
    %v2362 = vmul.f32 -0.5, %v2345
    %v2363 = vadd.f32 %v2362, 1.0
    %v2364 = vmul.f32 %v2363, %v2345
    %v2365 = vand.u32 2147483647, %v2345
    %vm2366 = vcmp.lt.f32.partialorder %v2365, 0.0004427343
    %v2367 = vsel %vm2366, %v2364, %v2361
    %v2368 = vadd.f32 %v2347, 1.0
    %v2369 = vlog2.pop %v2368
    %v2370 = vmul.f32 %v2369, 0.6931472
    %v2371 = vmul.f32 -0.5, %v2347
    %v2372 = vadd.f32 %v2371, 1.0
    %v2373 = vmul.f32 %v2372, %v2347
    %v2374 = vand.u32 2147483647, %v2347
    %vm2375 = vcmp.lt.f32.partialorder %v2374, 0.0004427343
    %v2376 = vsel %vm2375, %v2373, %v2370
    %v2377 = vadd.f32 %v2349, 1.0
    %v2378 = vlog2.pop %v2377
    %v2379 = vmul.f32 %v2378, 0.6931472
    %v2380 = vmul.f32 -0.5, %v2349
    %v2381 = vadd.f32 %v2380, 1.0
    %v2382 = vmul.f32 %v2381, %v2349
    %v2383 = vand.u32 2147483647, %v2349
    %vm2384 = vcmp.lt.f32.partialorder %v2383, 0.0004427343
    %v2385 = vsel %vm2384, %v2382, %v2379
    %v2386 = vsel %vm2334, %v2330, %v2358
    %v2387 = vsel %vm2335, %v2331, %v2367
    %v2388 = vsel %vm2336, %v2332, %v2376
    %v2389 = vsel %vm2337, %v2333, %v2385
    %v2390 = vpack.c.bf16 %v2387, %v2386
    %v2391 = vpack.c.bf16 %v2389, %v2388
    %s2392 = scalar_lea.vmem %s6, 48
    %v2393 = vld [vmem:[%s2392] sm:$0xf]
    %v2394 = vld [vmem:[%s2392 + $0x4] sm:$0xf]
    %v2395 = vld [vmem:[%s2392 + $0x8] sm:$0xf]
    %v2396 = vld [vmem:[%s2392 + $0xc] sm:$0xf]
    %v2401 = vunpack.c.l.b16 %v2393
    %v2402 = vunpack.c.l.b16 %v2394
    %v2403 = vunpack.c.l.b16 %v2395
    %v2404 = vunpack.c.l.b16 %v2396
    %v2405 = vpack.c.b16 %v2402, %v2401
    %v2406 = vpack.c.b16 %v2404, %v2403
    %v2410 = vsel %vm515, %v2390, 0
    %v2413 = vsel %vm515, %v2391, 0
    %2415 = vmatpush.bf16.msra.mxu0 0
    %2416 = vmatpush.bf16.msra.mxu0 0
    %2417 = vmatpush.bf16.msra.mxu0 0
    %2418 = vmatpush.bf16.msra.mxu0 0
    %2419 = vmatpush.bf16.msra.mxu0 0
    %2420 = vmatpush.bf16.msra.mxu0 0
    %2421 = vmatpush.bf16.msra.mxu0 %v2406
    %2422 = vmatpush.bf16.msra.mxu0 %v2405
    %2423 = vmatmul.bf16.gmra.mxu0 %v2410
    %v2424 = vpop.f32.mrf.mxu0
    %v2425 = vadd.f32 0.0, %v2424
    %v2426 = vpop.f32.mrf.mxu0
    %v2427 = vadd.f32 0.0, %v2426
    %2428 = vmatmul.bf16.gmra.mxu0 %v2413
    %v2429 = vpop.f32.mrf.mxu0
    %v2430 = vadd.f32 0.0, %v2429
    %v2431 = vpop.f32.mrf.mxu0
    %v2432 = vadd.f32 0.0, %v2431
    %2433 = vdwg.mxu0
    %2438 = vrot.lane.b32.xlu0 %v2425, 64
    %v2439 = vpop.permute.xlu0 %2438
    %2440 = vrot.lane.b32.xlu0 %v2427, 64
    %v2441 = vpop.permute.xlu0 %2440
    %2442 = vrot.lane.b32.xlu0 %v2430, 64
    %v2443 = vpop.permute.xlu0 %2442
    %2444 = vrot.lane.b32.xlu0 %v2432, 64
    %v2445 = vpop.permute.xlu0 %2444
    %v2450 = vpack.c.bf16 %v2427, %v2425
    %v2451 = vpack.c.bf16 %v2432, %v2430
    %v2452 = vpack.c.bf16 %v2441, %v2439
    %v2453 = vpack.c.bf16 %v2445, %v2443
    %2470 = vrot.lane.b32.xlu0 %v405, 64
    %v2471 = vpop.permute.xlu0 %2470
    %2472 = vrot.lane.b32.xlu0 %v407, 64
    %v2473 = vpop.permute.xlu0 %2472
    %2474 = vrot.lane.b32.xlu0 %v410, 64
    %v2475 = vpop.permute.xlu0 %2474
    %2476 = vrot.lane.b32.xlu0 %v412, 64
    %v2477 = vpop.permute.xlu0 %2476
    %2478 = vrot.lane.b32.xlu0 %v415, 64
    %v2479 = vpop.permute.xlu0 %2478
    %2480 = vrot.lane.b32.xlu0 %v417, 64
    %v2481 = vpop.permute.xlu0 %2480
    %2482 = vrot.lane.b32.xlu0 %v420, 64
    %v2483 = vpop.permute.xlu0 %2482
    %2484 = vrot.lane.b32.xlu0 %v422, 64
    %v2485 = vpop.permute.xlu0 %2484
    %2486 = vrot.lane.b32.xlu0 %v425, 64
    %v2487 = vpop.permute.xlu0 %2486
    %2488 = vrot.lane.b32.xlu0 %v427, 64
    %v2489 = vpop.permute.xlu0 %2488
    %2490 = vrot.lane.b32.xlu0 %v430, 64
    %v2491 = vpop.permute.xlu0 %2490
    %2492 = vrot.lane.b32.xlu0 %v432, 64
    %v2493 = vpop.permute.xlu0 %2492
    %2494 = vrot.lane.b32.xlu0 %v435, 64
    %v2495 = vpop.permute.xlu0 %2494
    %2496 = vrot.lane.b32.xlu0 %v437, 64
    %v2497 = vpop.permute.xlu0 %2496
    %2498 = vrot.lane.b32.xlu0 %v440, 64
    %v2499 = vpop.permute.xlu0 %2498
    %2500 = vrot.lane.b32.xlu0 %v442, 64
    %v2501 = vpop.permute.xlu0 %2500
    %2518 = vmatpush.bf16.msra.mxu0 0
    %2519 = vmatpush.bf16.msra.mxu0 0
    %2520 = vmatpush.bf16.msra.mxu0 0
    %2521 = vmatpush.bf16.msra.mxu0 0
    %2522 = vmatpush.bf16.msra.mxu0 %v2453
    %2523 = vmatpush.bf16.msra.mxu0 %v2452
    %2524 = vmatpush.bf16.msra.mxu0 %v2451
    %2525 = vmatpush.bf16.msra.mxu0 %v2450
    %2526 = vmatmul.bf16.gmra.mxu0 %v563
    %v2527 = vpop.f32.mrf.mxu0
    %v2528 = vadd.f32 %v2471, %v2527
    %v2529 = vpop.f32.mrf.mxu0
    %v2530 = vadd.f32 %v2473, %v2529
    %2531 = vmatmul.bf16.gmra.mxu0 %v566
    %v2532 = vpop.f32.mrf.mxu0
    %v2533 = vadd.f32 %v2475, %v2532
    %v2534 = vpop.f32.mrf.mxu0
    %v2535 = vadd.f32 %v2477, %v2534
    %2536 = vmatmul.bf16.gmra.mxu0 %v569
    %v2537 = vpop.f32.mrf.mxu0
    %v2538 = vadd.f32 %v2479, %v2537
    %v2539 = vpop.f32.mrf.mxu0
    %v2540 = vadd.f32 %v2481, %v2539
    %2541 = vmatmul.bf16.gmra.mxu0 %v572
    %v2542 = vpop.f32.mrf.mxu0
    %v2543 = vadd.f32 %v2483, %v2542
    %v2544 = vpop.f32.mrf.mxu0
    %v2545 = vadd.f32 %v2485, %v2544
    %2546 = vmatmul.bf16.gmra.mxu0 %v575
    %v2547 = vpop.f32.mrf.mxu0
    %v2548 = vadd.f32 %v2487, %v2547
    %v2549 = vpop.f32.mrf.mxu0
    %v2550 = vadd.f32 %v2489, %v2549
    %2551 = vmatmul.bf16.gmra.mxu0 %v578
    %v2552 = vpop.f32.mrf.mxu0
    %v2553 = vadd.f32 %v2491, %v2552
    %v2554 = vpop.f32.mrf.mxu0
    %v2555 = vadd.f32 %v2493, %v2554
    %2556 = vmatmul.bf16.gmra.mxu0 %v581
    %v2557 = vpop.f32.mrf.mxu0
    %v2558 = vadd.f32 %v2495, %v2557
    %v2559 = vpop.f32.mrf.mxu0
    %v2560 = vadd.f32 %v2497, %v2559
    %2561 = vmatmul.bf16.gmra.mxu0 %v584
    %v2562 = vpop.f32.mrf.mxu0
    %v2563 = vadd.f32 %v2499, %v2562
    %v2564 = vpop.f32.mrf.mxu0
    %v2565 = vadd.f32 %v2501, %v2564
    %2566 = vdwg.mxu0
    %v2567 = vsub.f32 0.0, %v2528
    %v2568 = vsub.f32 0.0, %v2530
    %v2569 = vsub.f32 0.0, %v2533
    %v2570 = vsub.f32 0.0, %v2535
    %v2571 = vsub.f32 0.0, %v2538
    %v2572 = vsub.f32 0.0, %v2540
    %v2573 = vsub.f32 0.0, %v2543
    %v2574 = vsub.f32 0.0, %v2545
    %v2575 = vsub.f32 0.0, %v2548
    %v2576 = vsub.f32 0.0, %v2550
    %v2577 = vsub.f32 0.0, %v2553
    %v2578 = vsub.f32 0.0, %v2555
    %v2579 = vsub.f32 0.0, %v2558
    %v2580 = vsub.f32 0.0, %v2560
    %v2581 = vsub.f32 0.0, %v2563
    %v2582 = vsub.f32 0.0, %v2565
    %v2583 = vmul.f32 %v2567, 1.442695
    %v2584 = vpow.pop %v2583
    %v2585 = vmul.f32 %v2568, 1.442695
    %v2586 = vpow.pop %v2585
    %v2587 = vmul.f32 %v2569, 1.442695
    %v2588 = vpow.pop %v2587
    %v2589 = vmul.f32 %v2570, 1.442695
    %v2590 = vpow.pop %v2589
    %v2591 = vmul.f32 %v2571, 1.442695
    %v2592 = vpow.pop %v2591
    %v2593 = vmul.f32 %v2572, 1.442695
    %v2594 = vpow.pop %v2593
    %v2595 = vmul.f32 %v2573, 1.442695
    %v2596 = vpow.pop %v2595
    %v2597 = vmul.f32 %v2574, 1.442695
    %v2598 = vpow.pop %v2597
    %v2599 = vmul.f32 %v2575, 1.442695
    %v2600 = vpow.pop %v2599
    %v2601 = vmul.f32 %v2576, 1.442695
    %v2602 = vpow.pop %v2601
    %v2603 = vmul.f32 %v2577, 1.442695
    %v2604 = vpow.pop %v2603
    %v2605 = vmul.f32 %v2578, 1.442695
    %v2606 = vpow.pop %v2605
    %v2607 = vmul.f32 %v2579, 1.442695
    %v2608 = vpow.pop %v2607
    %v2609 = vmul.f32 %v2580, 1.442695
    %v2610 = vpow.pop %v2609
    %v2611 = vmul.f32 %v2581, 1.442695
    %v2612 = vpow.pop %v2611
    %v2613 = vmul.f32 %v2582, 1.442695
    %v2614 = vpow.pop %v2613
    %v2615 = vadd.f32 %v2584, 1.0
    %v2616 = vadd.f32 %v2586, 1.0
    %v2617 = vadd.f32 %v2588, 1.0
    %v2618 = vadd.f32 %v2590, 1.0
    %v2619 = vadd.f32 %v2592, 1.0
    %v2620 = vadd.f32 %v2594, 1.0
    %v2621 = vadd.f32 %v2596, 1.0
    %v2622 = vadd.f32 %v2598, 1.0
    %v2623 = vadd.f32 %v2600, 1.0
    %v2624 = vadd.f32 %v2602, 1.0
    %v2625 = vadd.f32 %v2604, 1.0
    %v2626 = vadd.f32 %v2606, 1.0
    %v2627 = vadd.f32 %v2608, 1.0
    %v2628 = vadd.f32 %v2610, 1.0
    %v2629 = vadd.f32 %v2612, 1.0
    %v2630 = vadd.f32 %v2614, 1.0
    %v2631 = vrcp.pop %v2615
    %v2632 = vrcp.pop %v2616
    %v2633 = vrcp.pop %v2617
    %v2634 = vrcp.pop %v2618
    %v2635 = vrcp.pop %v2619
    %v2636 = vrcp.pop %v2620
    %v2637 = vrcp.pop %v2621
    %v2638 = vrcp.pop %v2622
    %v2639 = vrcp.pop %v2623
    %v2640 = vrcp.pop %v2624
    %v2641 = vrcp.pop %v2625
    %v2642 = vrcp.pop %v2626
    %v2643 = vrcp.pop %v2627
    %v2644 = vrcp.pop %v2628
    %v2645 = vrcp.pop %v2629
    %v2646 = vrcp.pop %v2630
    %vm2647 = vcmp.gt.f32.partialorder %v2528, 20.0
    %vm2648 = vcmp.gt.f32.partialorder %v2530, 20.0
    %vm2649 = vcmp.gt.f32.partialorder %v2533, 20.0
    %vm2650 = vcmp.gt.f32.partialorder %v2535, 20.0
    %vm2651 = vcmp.gt.f32.partialorder %v2538, 20.0
    %vm2652 = vcmp.gt.f32.partialorder %v2540, 20.0
    %vm2653 = vcmp.gt.f32.partialorder %v2543, 20.0
    %vm2654 = vcmp.gt.f32.partialorder %v2545, 20.0
    %vm2655 = vcmp.gt.f32.partialorder %v2548, 20.0
    %vm2656 = vcmp.gt.f32.partialorder %v2550, 20.0
    %vm2657 = vcmp.gt.f32.partialorder %v2553, 20.0
    %vm2658 = vcmp.gt.f32.partialorder %v2555, 20.0
    %vm2659 = vcmp.gt.f32.partialorder %v2558, 20.0
    %vm2660 = vcmp.gt.f32.partialorder %v2560, 20.0
    %vm2661 = vcmp.gt.f32.partialorder %v2563, 20.0
    %vm2662 = vcmp.gt.f32.partialorder %v2565, 20.0
    %v2663 = vmin.f32 %v2528, 20.0
    %v2664 = vmin.f32 %v2530, 20.0
    %v2665 = vmin.f32 %v2533, 20.0
    %v2666 = vmin.f32 %v2535, 20.0
    %v2667 = vmin.f32 %v2538, 20.0
    %v2668 = vmin.f32 %v2540, 20.0
    %v2669 = vmin.f32 %v2543, 20.0
    %v2670 = vmin.f32 %v2545, 20.0
    %v2671 = vmin.f32 %v2548, 20.0
    %v2672 = vmin.f32 %v2550, 20.0
    %v2673 = vmin.f32 %v2553, 20.0
    %v2674 = vmin.f32 %v2555, 20.0
    %v2675 = vmin.f32 %v2558, 20.0
    %v2676 = vmin.f32 %v2560, 20.0
    %v2677 = vmin.f32 %v2563, 20.0
    %v2678 = vmin.f32 %v2565, 20.0
    %v2679 = vmul.f32 %v2663, 1.442695
    %v2680 = vpow.pop %v2679
    %v2681 = vmul.f32 %v2664, 1.442695
    %v2682 = vpow.pop %v2681
    %v2683 = vmul.f32 %v2665, 1.442695
    %v2684 = vpow.pop %v2683
    %v2685 = vmul.f32 %v2666, 1.442695
    %v2686 = vpow.pop %v2685
    %v2687 = vmul.f32 %v2667, 1.442695
    %v2688 = vpow.pop %v2687
    %v2689 = vmul.f32 %v2668, 1.442695
    %v2690 = vpow.pop %v2689
    %v2691 = vmul.f32 %v2669, 1.442695
    %v2692 = vpow.pop %v2691
    %v2693 = vmul.f32 %v2670, 1.442695
    %v2694 = vpow.pop %v2693
    %v2695 = vmul.f32 %v2671, 1.442695
    %v2696 = vpow.pop %v2695
    %v2697 = vmul.f32 %v2672, 1.442695
    %v2698 = vpow.pop %v2697
    %v2699 = vmul.f32 %v2673, 1.442695
    %v2700 = vpow.pop %v2699
    %v2701 = vmul.f32 %v2674, 1.442695
    %v2702 = vpow.pop %v2701
    %v2703 = vmul.f32 %v2675, 1.442695
    %v2704 = vpow.pop %v2703
    %v2705 = vmul.f32 %v2676, 1.442695
    %v2706 = vpow.pop %v2705
    %v2707 = vmul.f32 %v2677, 1.442695
    %v2708 = vpow.pop %v2707
    %v2709 = vmul.f32 %v2678, 1.442695
    %v2710 = vpow.pop %v2709
    %v2711 = vadd.f32 %v2680, 1.0
    %v2712 = vlog2.pop %v2711
    %v2713 = vmul.f32 %v2712, 0.6931472
    %v2714 = vmul.f32 -0.5, %v2680
    %v2715 = vadd.f32 %v2714, 1.0
    %v2716 = vmul.f32 %v2715, %v2680
    %v2717 = vand.u32 2147483647, %v2680
    %vm2718 = vcmp.lt.f32.partialorder %v2717, 0.0004427343
    %v2719 = vsel %vm2718, %v2716, %v2713
    %v2720 = vadd.f32 %v2682, 1.0
    %v2721 = vlog2.pop %v2720
    %v2722 = vmul.f32 %v2721, 0.6931472
    %v2723 = vmul.f32 -0.5, %v2682
    %v2724 = vadd.f32 %v2723, 1.0
    %v2725 = vmul.f32 %v2724, %v2682
    %v2726 = vand.u32 2147483647, %v2682
    %vm2727 = vcmp.lt.f32.partialorder %v2726, 0.0004427343
    %v2728 = vsel %vm2727, %v2725, %v2722
    %v2729 = vadd.f32 %v2684, 1.0
    %v2730 = vlog2.pop %v2729
    %v2731 = vmul.f32 %v2730, 0.6931472
    %v2732 = vmul.f32 -0.5, %v2684
    %v2733 = vadd.f32 %v2732, 1.0
    %v2734 = vmul.f32 %v2733, %v2684
    %v2735 = vand.u32 2147483647, %v2684
    %vm2736 = vcmp.lt.f32.partialorder %v2735, 0.0004427343
    %v2737 = vsel %vm2736, %v2734, %v2731
    %v2738 = vadd.f32 %v2686, 1.0
    %v2739 = vlog2.pop %v2738
    %v2740 = vmul.f32 %v2739, 0.6931472
    %v2741 = vmul.f32 -0.5, %v2686
    %v2742 = vadd.f32 %v2741, 1.0
    %v2743 = vmul.f32 %v2742, %v2686
    %v2744 = vand.u32 2147483647, %v2686
    %vm2745 = vcmp.lt.f32.partialorder %v2744, 0.0004427343
    %v2746 = vsel %vm2745, %v2743, %v2740
    %v2747 = vadd.f32 %v2688, 1.0
    %v2748 = vlog2.pop %v2747
    %v2749 = vmul.f32 %v2748, 0.6931472
    %v2750 = vmul.f32 -0.5, %v2688
    %v2751 = vadd.f32 %v2750, 1.0
    %v2752 = vmul.f32 %v2751, %v2688
    %v2753 = vand.u32 2147483647, %v2688
    %vm2754 = vcmp.lt.f32.partialorder %v2753, 0.0004427343
    %v2755 = vsel %vm2754, %v2752, %v2749
    %v2756 = vadd.f32 %v2690, 1.0
    %v2757 = vlog2.pop %v2756
    %v2758 = vmul.f32 %v2757, 0.6931472
    %v2759 = vmul.f32 -0.5, %v2690
    %v2760 = vadd.f32 %v2759, 1.0
    %v2761 = vmul.f32 %v2760, %v2690
    %v2762 = vand.u32 2147483647, %v2690
    %vm2763 = vcmp.lt.f32.partialorder %v2762, 0.0004427343
    %v2764 = vsel %vm2763, %v2761, %v2758
    %v2765 = vadd.f32 %v2692, 1.0
    %v2766 = vlog2.pop %v2765
    %v2767 = vmul.f32 %v2766, 0.6931472
    %v2768 = vmul.f32 -0.5, %v2692
    %v2769 = vadd.f32 %v2768, 1.0
    %v2770 = vmul.f32 %v2769, %v2692
    %v2771 = vand.u32 2147483647, %v2692
    %vm2772 = vcmp.lt.f32.partialorder %v2771, 0.0004427343
    %v2773 = vsel %vm2772, %v2770, %v2767
    %v2774 = vadd.f32 %v2694, 1.0
    %v2775 = vlog2.pop %v2774
    %v2776 = vmul.f32 %v2775, 0.6931472
    %v2777 = vmul.f32 -0.5, %v2694
    %v2778 = vadd.f32 %v2777, 1.0
    %v2779 = vmul.f32 %v2778, %v2694
    %v2780 = vand.u32 2147483647, %v2694
    %vm2781 = vcmp.lt.f32.partialorder %v2780, 0.0004427343
    %v2782 = vsel %vm2781, %v2779, %v2776
    %v2783 = vadd.f32 %v2696, 1.0
    %v2784 = vlog2.pop %v2783
    %v2785 = vmul.f32 %v2784, 0.6931472
    %v2786 = vmul.f32 -0.5, %v2696
    %v2787 = vadd.f32 %v2786, 1.0
    %v2788 = vmul.f32 %v2787, %v2696
    %v2789 = vand.u32 2147483647, %v2696
    %vm2790 = vcmp.lt.f32.partialorder %v2789, 0.0004427343
    %v2791 = vsel %vm2790, %v2788, %v2785
    %v2792 = vadd.f32 %v2698, 1.0
    %v2793 = vlog2.pop %v2792
    %v2794 = vmul.f32 %v2793, 0.6931472
    %v2795 = vmul.f32 -0.5, %v2698
    %v2796 = vadd.f32 %v2795, 1.0
    %v2797 = vmul.f32 %v2796, %v2698
    %v2798 = vand.u32 2147483647, %v2698
    %vm2799 = vcmp.lt.f32.partialorder %v2798, 0.0004427343
    %v2800 = vsel %vm2799, %v2797, %v2794
    %v2801 = vadd.f32 %v2700, 1.0
    %v2802 = vlog2.pop %v2801
    %v2803 = vmul.f32 %v2802, 0.6931472
    %v2804 = vmul.f32 -0.5, %v2700
    %v2805 = vadd.f32 %v2804, 1.0
    %v2806 = vmul.f32 %v2805, %v2700
    %v2807 = vand.u32 2147483647, %v2700
    %vm2808 = vcmp.lt.f32.partialorder %v2807, 0.0004427343
    %v2809 = vsel %vm2808, %v2806, %v2803
    %v2810 = vadd.f32 %v2702, 1.0
    %v2811 = vlog2.pop %v2810
    %v2812 = vmul.f32 %v2811, 0.6931472
    %v2813 = vmul.f32 -0.5, %v2702
    %v2814 = vadd.f32 %v2813, 1.0
    %v2815 = vmul.f32 %v2814, %v2702
    %v2816 = vand.u32 2147483647, %v2702
    %vm2817 = vcmp.lt.f32.partialorder %v2816, 0.0004427343
    %v2818 = vsel %vm2817, %v2815, %v2812
    %v2819 = vadd.f32 %v2704, 1.0
    %v2820 = vlog2.pop %v2819
    %v2821 = vmul.f32 %v2820, 0.6931472
    %v2822 = vmul.f32 -0.5, %v2704
    %v2823 = vadd.f32 %v2822, 1.0
    %v2824 = vmul.f32 %v2823, %v2704
    %v2825 = vand.u32 2147483647, %v2704
    %vm2826 = vcmp.lt.f32.partialorder %v2825, 0.0004427343
    %v2827 = vsel %vm2826, %v2824, %v2821
    %v2828 = vadd.f32 %v2706, 1.0
    %v2829 = vlog2.pop %v2828
    %v2830 = vmul.f32 %v2829, 0.6931472
    %v2831 = vmul.f32 -0.5, %v2706
    %v2832 = vadd.f32 %v2831, 1.0
    %v2833 = vmul.f32 %v2832, %v2706
    %v2834 = vand.u32 2147483647, %v2706
    %vm2835 = vcmp.lt.f32.partialorder %v2834, 0.0004427343
    %v2836 = vsel %vm2835, %v2833, %v2830
    %v2837 = vadd.f32 %v2708, 1.0
    %v2838 = vlog2.pop %v2837
    %v2839 = vmul.f32 %v2838, 0.6931472
    %v2840 = vmul.f32 -0.5, %v2708
    %v2841 = vadd.f32 %v2840, 1.0
    %v2842 = vmul.f32 %v2841, %v2708
    %v2843 = vand.u32 2147483647, %v2708
    %vm2844 = vcmp.lt.f32.partialorder %v2843, 0.0004427343
    %v2845 = vsel %vm2844, %v2842, %v2839
    %v2846 = vadd.f32 %v2710, 1.0
    %v2847 = vlog2.pop %v2846
    %v2848 = vmul.f32 %v2847, 0.6931472
    %v2849 = vmul.f32 -0.5, %v2710
    %v2850 = vadd.f32 %v2849, 1.0
    %v2851 = vmul.f32 %v2850, %v2710
    %v2852 = vand.u32 2147483647, %v2710
    %vm2853 = vcmp.lt.f32.partialorder %v2852, 0.0004427343
    %v2854 = vsel %vm2853, %v2851, %v2848
    %v2855 = vsel %vm2647, %v2528, %v2719
    %v2856 = vsel %vm2648, %v2530, %v2728
    %v2857 = vsel %vm2649, %v2533, %v2737
    %v2858 = vsel %vm2650, %v2535, %v2746
    %v2859 = vsel %vm2651, %v2538, %v2755
    %v2860 = vsel %vm2652, %v2540, %v2764
    %v2861 = vsel %vm2653, %v2543, %v2773
    %v2862 = vsel %vm2654, %v2545, %v2782
    %v2863 = vsel %vm2655, %v2548, %v2791
    %v2864 = vsel %vm2656, %v2550, %v2800
    %v2865 = vsel %vm2657, %v2553, %v2809
    %v2866 = vsel %vm2658, %v2555, %v2818
    %v2867 = vsel %vm2659, %v2558, %v2827
    %v2868 = vsel %vm2660, %v2560, %v2836
    %v2869 = vsel %vm2661, %v2563, %v2845
    %v2870 = vsel %vm2662, %v2565, %v2854
    %2887 = vrot.lane.b32.xlu0 %v2855, 96
    %v2888 = vpop.permute.xlu0 %2887
    %2889 = vrot.lane.b32.xlu0 %v2856, 96
    %v2890 = vpop.permute.xlu0 %2889
    %2891 = vrot.lane.b32.xlu0 %v2857, 96
    %v2892 = vpop.permute.xlu0 %2891
    %2893 = vrot.lane.b32.xlu0 %v2858, 96
    %v2894 = vpop.permute.xlu0 %2893
    %2895 = vrot.lane.b32.xlu0 %v2859, 96
    %v2896 = vpop.permute.xlu0 %2895
    %2897 = vrot.lane.b32.xlu0 %v2860, 96
    %v2898 = vpop.permute.xlu0 %2897
    %2899 = vrot.lane.b32.xlu0 %v2861, 96
    %v2900 = vpop.permute.xlu0 %2899
    %2901 = vrot.lane.b32.xlu0 %v2862, 96
    %v2902 = vpop.permute.xlu0 %2901
    %2903 = vrot.lane.b32.xlu0 %v2863, 96
    %v2904 = vpop.permute.xlu0 %2903
    %2905 = vrot.lane.b32.xlu0 %v2864, 96
    %v2906 = vpop.permute.xlu0 %2905
    %2907 = vrot.lane.b32.xlu0 %v2865, 96
    %v2908 = vpop.permute.xlu0 %2907
    %2909 = vrot.lane.b32.xlu0 %v2866, 96
    %v2910 = vpop.permute.xlu0 %2909
    %2911 = vrot.lane.b32.xlu0 %v2867, 96
    %v2912 = vpop.permute.xlu0 %2911
    %2913 = vrot.lane.b32.xlu0 %v2868, 96
    %v2914 = vpop.permute.xlu0 %2913
    %2915 = vrot.lane.b32.xlu0 %v2869, 96
    %v2916 = vpop.permute.xlu0 %2915
    %2917 = vrot.lane.b32.xlu0 %v2870, 96
    %v2918 = vpop.permute.xlu0 %2917
    %v2935 = vmul.f32 %v2631, %v2888
    %v2936 = vmul.f32 %v2632, %v2890
    %v2937 = vmul.f32 %v2633, %v2892
    %v2938 = vmul.f32 %v2634, %v2894
    %v2939 = vmul.f32 %v2635, %v2896
    %v2940 = vmul.f32 %v2636, %v2898
    %v2941 = vmul.f32 %v2637, %v2900
    %v2942 = vmul.f32 %v2638, %v2902
    %v2943 = vmul.f32 %v2639, %v2904
    %v2944 = vmul.f32 %v2640, %v2906
    %v2945 = vmul.f32 %v2641, %v2908
    %v2946 = vmul.f32 %v2642, %v2910
    %v2947 = vmul.f32 %v2643, %v2912
    %v2948 = vmul.f32 %v2644, %v2914
    %v2949 = vmul.f32 %v2645, %v2916
    %v2950 = vmul.f32 %v2646, %v2918
    %v2951 = vpack.c.bf16 %v2936, %v2935
    %v2952 = vpack.c.bf16 %v2938, %v2937
    %v2953 = vpack.c.bf16 %v2940, %v2939
    %v2954 = vpack.c.bf16 %v2942, %v2941
    %v2955 = vpack.c.bf16 %v2944, %v2943
    %v2956 = vpack.c.bf16 %v2946, %v2945
    %v2957 = vpack.c.bf16 %v2948, %v2947
    %v2958 = vpack.c.bf16 %v2950, %v2949
    %2959 = vmatpush.bf16.msra.mxu0 %v2958
    %2960 = vmatpush.bf16.msra.mxu0 %v2957
    %2961 = vmatpush.bf16.msra.mxu0 %v2956
    %2962 = vmatpush.bf16.msra.mxu0 %v2955
    %2963 = vmatpush.bf16.msra.mxu0 %v2954
    %2964 = vmatpush.bf16.msra.mxu0 %v2953
    %2965 = vmatpush.bf16.msra.mxu0 %v2952
    %2966 = vmatpush.bf16.msra.mxu0 %v2951
    %2967 = vmatmul.bf16.gmra.mxu0 %v277
    %v2968 = vpop.f32.mrf.mxu0
    %v2969 = vadd.f32 0.0, %v2968
    %v2970 = vpop.f32.mrf.mxu0
    %v2971 = vadd.f32 0.0, %v2970
    %2972 = vmatmul.bf16.gmra.mxu0 %v278
    %v2973 = vpop.f32.mrf.mxu0
    %v2974 = vadd.f32 0.0, %v2973
    %v2975 = vpop.f32.mrf.mxu0
    %v2976 = vadd.f32 0.0, %v2975
    %2977 = vdwg.mxu0
    %s2978 = scalar_lea.vmem %s9, 3
    %v2979 = vld [vmem:[%s2978] sm:$0x1]
    %v2981 = vperm.slane %v2979, 0
    %v2983 = vmul.f32 %v2969, %v2981
    %v2984 = vmul.f32 %v2971, %v2981
    %v2985 = vmul.f32 %v2974, %v2981
    %v2986 = vmul.f32 %v2976, %v2981
    %s2987 = scalar_lea.vmem %s10, 3
    %v2988 = vld [vmem:[%s2987] sm:$0x1]
    %v2990 = vperm.slane %v2988, 0
    %v2992 = vadd.f32 %v2983, %v2990
    %v2993 = vadd.f32 %v2984, %v2990
    %v2994 = vadd.f32 %v2985, %v2990
    %v2995 = vadd.f32 %v2986, %v2990
    %v2996 = vadd.f32 %v2386, %v2992
    %v2997 = vadd.f32 %v2387, %v2993
    %v2998 = vadd.f32 %v2388, %v2994
    %v2999 = vadd.f32 %v2389, %v2995
    %vm3000 = vcmp.gt.f32.partialorder %v2996, 20.0
    %vm3001 = vcmp.gt.f32.partialorder %v2997, 20.0
    %vm3002 = vcmp.gt.f32.partialorder %v2998, 20.0
    %vm3003 = vcmp.gt.f32.partialorder %v2999, 20.0
    %v3004 = vmin.f32 %v2996, 20.0
    %v3005 = vmin.f32 %v2997, 20.0
    %v3006 = vmin.f32 %v2998, 20.0
    %v3007 = vmin.f32 %v2999, 20.0
    %v3008 = vmul.f32 %v3004, 1.442695
    %v3009 = vpow.pop %v3008
    %v3010 = vmul.f32 %v3005, 1.442695
    %v3011 = vpow.pop %v3010
    %v3012 = vmul.f32 %v3006, 1.442695
    %v3013 = vpow.pop %v3012
    %v3014 = vmul.f32 %v3007, 1.442695
    %v3015 = vpow.pop %v3014
    %v3016 = vadd.f32 %v3009, 1.0
    %v3017 = vlog2.pop %v3016
    %v3018 = vmul.f32 %v3017, 0.6931472
    %v3019 = vmul.f32 -0.5, %v3009
    %v3020 = vadd.f32 %v3019, 1.0
    %v3021 = vmul.f32 %v3020, %v3009
    %v3022 = vand.u32 2147483647, %v3009
    %vm3023 = vcmp.lt.f32.partialorder %v3022, 0.0004427343
    %v3024 = vsel %vm3023, %v3021, %v3018
    %v3025 = vadd.f32 %v3011, 1.0
    %v3026 = vlog2.pop %v3025
    %v3027 = vmul.f32 %v3026, 0.6931472
    %v3028 = vmul.f32 -0.5, %v3011
    %v3029 = vadd.f32 %v3028, 1.0
    %v3030 = vmul.f32 %v3029, %v3011
    %v3031 = vand.u32 2147483647, %v3011
    %vm3032 = vcmp.lt.f32.partialorder %v3031, 0.0004427343
    %v3033 = vsel %vm3032, %v3030, %v3027
    %v3034 = vadd.f32 %v3013, 1.0
    %v3035 = vlog2.pop %v3034
    %v3036 = vmul.f32 %v3035, 0.6931472
    %v3037 = vmul.f32 -0.5, %v3013
    %v3038 = vadd.f32 %v3037, 1.0
    %v3039 = vmul.f32 %v3038, %v3013
    %v3040 = vand.u32 2147483647, %v3013
    %vm3041 = vcmp.lt.f32.partialorder %v3040, 0.0004427343
    %v3042 = vsel %vm3041, %v3039, %v3036
    %v3043 = vadd.f32 %v3015, 1.0
    %v3044 = vlog2.pop %v3043
    %v3045 = vmul.f32 %v3044, 0.6931472
    %v3046 = vmul.f32 -0.5, %v3015
    %v3047 = vadd.f32 %v3046, 1.0
    %v3048 = vmul.f32 %v3047, %v3015
    %v3049 = vand.u32 2147483647, %v3015
    %vm3050 = vcmp.lt.f32.partialorder %v3049, 0.0004427343
    %v3051 = vsel %vm3050, %v3048, %v3045
    %v3052 = vsel %vm3000, %v2996, %v3024
    %v3053 = vsel %vm3001, %v2997, %v3033
    %v3054 = vsel %vm3002, %v2998, %v3042
    %v3055 = vsel %vm3003, %v2999, %v3051
    %3056 = vst.msk [vmem:[#allocation2] sm:$0xff] %vm515, %v3052
    %3057 = vst.msk [vmem:[#allocation2 + $0x8] sm:$0xff] %vm515, %v3053
    %3058 = vst.msk [vmem:[#allocation2 + $0x10] sm:$0xff] %vm515, %v3054
    %3059 = vst.msk [vmem:[#allocation2 + $0x18] sm:$0xff] %vm515, %v3055
    // Predicated region
    $region46: #{_descriptor_network_impl.1} parent=1 // pred_check
      _
    $region47: #{_descriptor_network_impl.1} parent=1 // pred_check_branch
      %3061 = sbr.rel (0) target = $region49
    $region48: #{_descriptor_network_impl.1} parent=1 // pred_region
      %3063 = vsyncadd [#allocation3], 0
      %s3064 = sshll.u32 [#allocation2], 4
      %s3065 = int_to_ptr.vmem [resolvable:$true] %s3064
      %s3066 = sshll.u32 %s11, 4
      %s3067 = int_to_ptr.hbm [resolvable:$true] %s3066
      %3072 = dma.vmem_to_hbm [thread:$0]  %s3065, 512, %s3067, [#allocation3], 128, 128, 8
    $region49: #{_descriptor_network_impl.1} parent=1 // pred_fallthru
      _
    // Predicated region
    $region50: #{_descriptor_network_impl.1} parent=1 // pred_check
      _
    $region51: #{_descriptor_network_impl.1} parent=1 // pred_check_branch
      %3074 = sbr.rel (0) target = $region53
    $region52: #{_descriptor_network_impl.1} parent=1 // pred_region
      %3076 = dma.done [#allocation3], 512
    $region53: #{_descriptor_network_impl.1} parent=1 // pred_fallthru
      _
    %3077 = vsyncpa [#allocation3], 1

</llo_original>
